<compile_context>
chip_gen: v5e
topology: v5e:2x2
jax: 0.10.0
libtpu: 0.0.40
codegen_flags: <defaults>
</compile_context>

<pallas_src>
import functools

import numpy as np
import jax
import jax.numpy as jnp
from jax.experimental import pallas as pl
from jax.experimental.pallas import tpu as pltpu

LN_EPS = 1e-5  # torch.nn.LayerNorm default eps


# ----------------------------- in-kernel helpers -----------------------------

def _erf(x):
    # Abramowitz & Stegun 7.1.26 polynomial, |err| < 1.5e-7 (float32-exact).
    a1, a2, a3, a4, a5 = (0.254829592, -0.284496736, 1.421413741,
                          -1.453152027, 1.061405429)
    p = 0.3275911
    sgn = jnp.where(x >= 0.0, 1.0, -1.0)
    ax = jnp.abs(x)
    t = 1.0 / (1.0 + p * ax)
    poly = ((((a5 * t + a4) * t + a3) * t + a2) * t + a1) * t
    return sgn * (1.0 - poly * jnp.exp(-ax * ax))


def _gelu_exact(x):
    # nn.GELU (erf form).
    # TODO(synk): lax.erf has no Mosaic lowering; float32-accurate polynomial erf.
    return 0.5 * x * (1.0 + _erf(x * 0.7071067811865476))


def _layernorm(x, w, b):
    mean = jnp.mean(x, axis=-1, keepdims=True)
    xc = x - mean
    var = jnp.mean(xc * xc, axis=-1, keepdims=True)
    return xc * jax.lax.rsqrt(var + LN_EPS) * w + b


# --------------------------------- fused kernel -------------------------------

def fused_forward_kernel(
    # inputs (per-batch activation block + resident weights)
    xp_ref, patch_w, base_ref,
    e_ln1w, e_ln1b, e_qkvw, e_qkvb, e_projw, e_projb,
    e_ln2w, e_ln2b, e_fc1w, e_fc1b, e_fc2w, e_fc2b,
    norm_w, norm_b,
    d_embw, d_embb, d_pos,
    d_ln1w, d_ln1b, d_qkvw, d_qkvb, d_projw, d_projb,
    d_ln2w, d_ln2b, d_fc1w, d_fc1b, d_fc2w, d_fc2b,
    d_normw, d_normb,
    # output
    out_ref,
    *, S, enc_heads, dec_heads):
  """Whole SPRTransformer forward for ONE batch element (grid axis = batch)."""
  S_pad = xp_ref.shape[0]

  # Valid-key additive mask: keys at positions >= S (pad rows) are masked.
  col = jax.lax.broadcasted_iota(jnp.int32, (S_pad, S_pad), 1)
  mask = jnp.where(col < S, 0.0, -1e30).astype(jnp.float32)

  # Patch embed (Conv2d k=s=patch expressed as one aligned matmul).  xp has a
  # zero row at the cls slot and zero pad rows; base holds cls+pos+conv-bias.
  x = jnp.dot(xp_ref[...], patch_w[...],
              preferred_element_type=jnp.float32) + base_ref[...]

  def block(x, ln1w, ln1b, qkvw, qkvb, pw, pb, ln2w, ln2b,
            f1w, f1b, f2w, f2b, nheads):
    """One ViT Block: x += MHA(LN1(x)); x += MLP(LN2(x))."""
    Dm = x.shape[1]
    hd = Dm // nheads
    h = _layernorm(x, ln1w, ln1b)
    # Fused qkv matmul; 1/sqrt(head_dim) is pre-folded into the q columns.
    qkv = jnp.dot(h, qkvw, preferred_element_type=jnp.float32) + qkvb
    q = qkv[:, :Dm]
    k = qkv[:, Dm:2 * Dm]
    v = qkv[:, 2 * Dm:]
    acc = None
    # TODO(synk): at larger head counts / dims, replace the per-head Python
    # loop with one batched 'hqd,hkd->hqk' einsum per layer.
    for hh in range(nheads):
      lo = hh * hd
      qh, kh, vh = q[:, lo:lo + hd], k[:, lo:lo + hd], v[:, lo:lo + hd]
      s = jax.lax.dot_general(qh, kh, (((1,), (1,)), ((), ())),
                              preferred_element_type=jnp.float32)
      s = s + mask
      s = s - jnp.max(s, axis=-1, keepdims=True)
      pexp = jnp.exp(s)
      pexp = pexp * pl.reciprocal(jnp.sum(pexp, axis=-1, keepdims=True),
                                  approx=True)
      head = jnp.dot(pexp, vh, preferred_element_type=jnp.float32)
      # Accumulate each head straight into the output projection (no concat).
      contrib = jnp.dot(head, pw[lo:lo + hd, :],
                        preferred_element_type=jnp.float32)
      acc = contrib if acc is None else acc + contrib
    x = x + acc + pb
    h2 = _layernorm(x, ln2w, ln2b)
    h2 = jnp.dot(h2, f1w, preferred_element_type=jnp.float32) + f1b
    h2 = _gelu_exact(h2)
    h2 = jnp.dot(h2, f2w, preferred_element_type=jnp.float32) + f2b
    return x + h2

  # ---- encoder blocks (statically unrolled; depth is tiny here) ----
  # TODO(synk): at real ViT depth/width, move layers onto a grid axis with
  # per-layer weight BlockSpecs so layer l+1 weights prefetch under layer l.
  for l in range(e_ln1w.shape[0]):
    x = block(x, e_ln1w[l], e_ln1b[l], e_qkvw[l], e_qkvb[l],
              e_projw[l], e_projb[l], e_ln2w[l], e_ln2b[l],
              e_fc1w[l], e_fc1b[l], e_fc2w[l], e_fc2b[l], enc_heads)
  x = _layernorm(x, norm_w[...], norm_b[...])

  # ---- decoder embed + decoder pos embed ----
  x = jnp.dot(x, d_embw[...], preferred_element_type=jnp.float32) + d_embb[...]
  x = x + d_pos[...]

  # ---- decoder blocks ----
  for l in range(d_ln1w.shape[0]):
    x = block(x, d_ln1w[l], d_ln1b[l], d_qkvw[l], d_qkvb[l],
              d_projw[l], d_projb[l], d_ln2w[l], d_ln2b[l],
              d_fc1w[l], d_fc1b[l], d_fc2w[l], d_fc2b[l], dec_heads)
  out_ref[...] = _layernorm(x, d_normw[...], d_normb[...])


# --------------------------- params / pos embeddings ---------------------------

def _sincos_1d(dim, pos):
  omega = np.arange(dim // 2, dtype=np.float32) / (dim / 2.0)
  omega = 1.0 / (10000.0 ** omega)
  out = np.einsum("m,d->md", pos.reshape(-1).astype(np.float32), omega)
  return np.concatenate([np.sin(out), np.cos(out)], axis=1)


def get_2d_sincos_pos_embed(embed_dim, grid_size, cls_token=False):
  gh = np.arange(grid_size, dtype=np.float32)
  gw = np.arange(grid_size, dtype=np.float32)
  grid = np.meshgrid(gw, gh)                      # w goes first (matches MAE)
  grid = np.stack(grid, axis=0).reshape(2, 1, grid_size, grid_size)
  emb = np.concatenate([_sincos_1d(embed_dim // 2, grid[0]),
                        _sincos_1d(embed_dim // 2, grid[1])], axis=1)
  if cls_token:
    emb = np.concatenate([np.zeros((1, embed_dim), np.float32), emb], axis=0)
  return emb.astype(np.float32)


def _xavier(key, shape):
  fan_in, fan_out = shape
  limit = float(np.sqrt(6.0 / (fan_in + fan_out)))
  return jax.random.uniform(key, shape, jnp.float32, -limit, limit)


def make_block_stack(key, num_layers, D, hidden, num_heads):
  """Stacked (layer-major) ViT block params; q columns carry the attn scale."""
  hd = D // num_heads
  scale = float(hd) ** -0.5

  def one(k):
    ks = jax.random.split(k, 4)
    qkv_w = _xavier(ks[0], (D, 3 * D)).at[:, :D].multiply(scale)  # fold 1/sqrt(hd)
    return dict(
        ln1_w=jnp.ones((1, D), jnp.float32), ln1_b=jnp.zeros((1, D), jnp.float32),
        qkv_w=qkv_w, qkv_b=jnp.zeros((1, 3 * D), jnp.float32),
        proj_w=_xavier(ks[1], (D, D)), proj_b=jnp.zeros((1, D), jnp.float32),
        ln2_w=jnp.ones((1, D), jnp.float32), ln2_b=jnp.zeros((1, D), jnp.float32),
        fc1_w=_xavier(ks[2], (D, hidden)), fc1_b=jnp.zeros((1, hidden), jnp.float32),
        fc2_w=_xavier(ks[3], (hidden, D)), fc2_b=jnp.zeros((1, D), jnp.float32),
    )

  blocks = [one(k) for k in jax.random.split(key, num_layers)]
  return {name: jnp.stack([b[name] for b in blocks]) for name in blocks[0]}


def make_params(key, cfg):
  D = cfg["embed_dim"]
  C = cfg["in_chans"]
  p = cfg["patch_size"]
  Ddec = cfg["out_patch_size"] ** 2 * cfg["out_chans"]
  hgrid = cfg["img_size"] // p
  k0, k1, k2, ke, kd = jax.random.split(key, 5)
  return dict(
      # NOTE: conv weight is generated directly as (C*p*p, D); real PyTorch
      # Conv2d weights would need a (D,C,p,p)->(C*p*p,D) permute to match.
      patch_w=_xavier(k0, (C * p * p, D)),
      patch_b=jnp.zeros((1, D), jnp.float32),
      cls_token=0.02 * jax.random.normal(k1, (1, 1, D), jnp.float32),
      pos_embed=jnp.asarray(get_2d_sincos_pos_embed(D, hgrid, True))[None],
      norm_w=jnp.ones((1, D), jnp.float32), norm_b=jnp.zeros((1, D), jnp.float32),
      dec_embed_w=_xavier(k2, (D, Ddec)),
      dec_embed_b=jnp.zeros((1, Ddec), jnp.float32),
      dec_pos_embed=jnp.asarray(get_2d_sincos_pos_embed(Ddec, hgrid, True))[None],
      dec_norm_w=jnp.ones((1, Ddec), jnp.float32),
      dec_norm_b=jnp.zeros((1, Ddec), jnp.float32),
      enc=make_block_stack(ke, cfg["depth"], D, int(D * cfg["mlp_ratio"]),
                           cfg["num_heads"]),
      dec=make_block_stack(kd, cfg["decoder_depth"], Ddec,
                           int(Ddec * cfg["mlp_ratio"]), cfg["decoder_num_heads"]),
  )


# --------------------------------- forward ------------------------------------

def spr_forward(x, params, cfg, color="green"):
  B = x.shape[0]
  C = cfg["in_chans"]
  p = cfg["patch_size"]
  hgrid = cfg["img_size"] // p
  N = hgrid * hgrid
  D = cfg["embed_dim"]
  Dd = cfg["out_patch_size"] ** 2 * cfg["out_chans"]
  S = N + 1
  S_pad = ((S + 7) // 8) * 8
  Cpp = C * p * p

  # ---- XLA glue (pure layout / parameter packing) ----
  xp = x.reshape(B, C, hgrid, p, hgrid, p)
  xp = xp.transpose(0, 2, 4, 1, 3, 5).reshape(B, N, Cpp)
  # zero row at cls slot + zero pad rows -> one aligned matmul per batch in-kernel
  xp_pad = jnp.pad(xp, ((0, 0), (1, S_pad - 1 - N), (0, 0))).reshape(B * S_pad, Cpp)

  # (S_pad, D) base table: row 0 = pos[0]+cls_token, rows 1..N = pos + conv bias,
  # pad rows zero.  Shared across batch (added in-kernel per grid step).
  base = params["pos_embed"][0]
  base = base.at[0].add(params["cls_token"][0, 0])
  base = base.at[1:].add(params["patch_b"][0])
  base = jnp.pad(base, ((0, S_pad - S), (0, 0)))

  dec_pos = jnp.pad(params["dec_pos_embed"][0], ((0, S_pad - S), (0, 0)))

  e, d = params["enc"], params["dec"]
  args = [
      xp_pad, params["patch_w"], base,
      e["ln1_w"], e["ln1_b"], e["qkv_w"], e["qkv_b"], e["proj_w"], e["proj_b"],
      e["ln2_w"], e["ln2_b"], e["fc1_w"], e["fc1_b"], e["fc2_w"], e["fc2_b"],
      params["norm_w"], params["norm_b"],
      params["dec_embed_w"], params["dec_embed_b"], dec_pos,
      d["ln1_w"], d["ln1_b"], d["qkv_w"], d["qkv_b"], d["proj_w"], d["proj_b"],
      d["ln2_w"], d["ln2_b"], d["fc1_w"], d["fc1_b"], d["fc2_w"], d["fc2_b"],
      params["dec_norm_w"], params["dec_norm_b"],
  ]

  def const_spec(shape):
    # Constant block index across the batch grid -> fetched once, VMEM-resident.
    return pl.BlockSpec(tuple(shape), lambda b: (0,) * len(shape))

  in_specs = ([pl.BlockSpec((S_pad, Cpp), lambda b: (b, 0))] +
              [const_spec(a.shape) for a in args[1:]])

  kern = functools.partial(fused_forward_kernel, S=S,
                           enc_heads=cfg["num_heads"],
                           dec_heads=cfg["decoder_num_heads"])

  seq = pl.pallas_call(
      kern,
      grid=(B,),
      in_specs=in_specs,
      out_specs=pl.BlockSpec((S_pad, Dd), lambda b: (b, 0)),
      out_shape=jax.ShapeDtypeStruct((B * S_pad, Dd), jnp.float32),
      compiler_params=pltpu.CompilerParams(
          dimension_semantics=("parallel",)),   # megacore sharding on v7x
  )(*args)

  # ---- drop cls token + padding, unpatchify, optional max-pool ----
  seq = seq.reshape(B, S_pad, Dd)
  yd = seq[:, 1:1 + N, :]                       # (B, N, out_patch^2 * 1)
  po = cfg["out_patch_size"]
  h = w = int(round(N ** 0.5))
  yd = yd.reshape(B, h, w, po, po, 1)
  yd = jnp.einsum("nhwpqc->nchpwq", yd)
  imgs = yd.reshape(B, 1, h * po, w * po)
  if color != "green":                          # nn.MaxPool2d(kernel_size=(1, 2))
    Bn, Cc, Hh, Ww = imgs.shape
    imgs = imgs.reshape(Bn, Cc, Hh, Ww // 2, 2).max(axis=-1)
  return imgs


# ----------------------------------- main --------------------------------------

if __name__ == "__main__":
  cfg = dict(img_size=32, patch_size=16, in_chans=2, embed_dim=64, depth=2,
             num_heads=4, out_patch_size=8, out_chans=1, decoder_depth=2,
             decoder_num_heads=4, mlp_ratio=4.0)

  key = jax.random.PRNGKey(0)
  kparam, kx = jax.random.split(key)
  params = make_params(kparam, cfg)

  x = jax.random.normal(
      kx, (2, cfg["in_chans"], cfg["img_size"], cfg["img_size"]), jnp.float32)

  fwd = jax.jit(lambda xx, pp: spr_forward(xx, pp, cfg, color="green"))
  out = fwd(x, params)
  jax.block_until_ready(out)

  assert out.shape == (2, 1, 16, 16), out.shape
  assert bool(jnp.all(jnp.isfinite(out)))
  print("KERNEL_OK")
</pallas_src>

<mosaic_0001>
module attributes {stable_mosaic.version = 11 : i64} {
  func.func @fused_forward_kernel(%arg0: i32, %arg1: memref<8x512xf32, #tpu.memory_space<vmem>>, %arg2: memref<512x64xf32, #tpu.memory_space<vmem>>, %arg3: memref<8x64xf32, #tpu.memory_space<vmem>>, %arg4: memref<2x1x64xf32, #tpu.memory_space<vmem>>, %arg5: memref<2x1x64xf32, #tpu.memory_space<vmem>>, %arg6: memref<2x64x192xf32, #tpu.memory_space<vmem>>, %arg7: memref<2x1x192xf32, #tpu.memory_space<vmem>>, %arg8: memref<2x64x64xf32, #tpu.memory_space<vmem>>, %arg9: memref<2x1x64xf32, #tpu.memory_space<vmem>>, %arg10: memref<2x1x64xf32, #tpu.memory_space<vmem>>, %arg11: memref<2x1x64xf32, #tpu.memory_space<vmem>>, %arg12: memref<2x64x256xf32, #tpu.memory_space<vmem>>, %arg13: memref<2x1x256xf32, #tpu.memory_space<vmem>>, %arg14: memref<2x256x64xf32, #tpu.memory_space<vmem>>, %arg15: memref<2x1x64xf32, #tpu.memory_space<vmem>>, %arg16: memref<1x64xf32, #tpu.memory_space<vmem>>, %arg17: memref<1x64xf32, #tpu.memory_space<vmem>>, %arg18: memref<64x64xf32, #tpu.memory_space<vmem>>, %arg19: memref<1x64xf32, #tpu.memory_space<vmem>>, %arg20: memref<8x64xf32, #tpu.memory_space<vmem>>, %arg21: memref<2x1x64xf32, #tpu.memory_space<vmem>>, %arg22: memref<2x1x64xf32, #tpu.memory_space<vmem>>, %arg23: memref<2x64x192xf32, #tpu.memory_space<vmem>>, %arg24: memref<2x1x192xf32, #tpu.memory_space<vmem>>, %arg25: memref<2x64x64xf32, #tpu.memory_space<vmem>>, %arg26: memref<2x1x64xf32, #tpu.memory_space<vmem>>, %arg27: memref<2x1x64xf32, #tpu.memory_space<vmem>>, %arg28: memref<2x1x64xf32, #tpu.memory_space<vmem>>, %arg29: memref<2x64x256xf32, #tpu.memory_space<vmem>>, %arg30: memref<2x1x256xf32, #tpu.memory_space<vmem>>, %arg31: memref<2x256x64xf32, #tpu.memory_space<vmem>>, %arg32: memref<2x1x64xf32, #tpu.memory_space<vmem>>, %arg33: memref<1x64xf32, #tpu.memory_space<vmem>>, %arg34: memref<1x64xf32, #tpu.memory_space<vmem>>, %arg35: memref<8x64xf32, #tpu.memory_space<vmem>>) attributes {dimension_semantics = [#tpu.dimension_semantics<parallel>], iteration_bounds = array<i64: 2>, scalar_prefetch = 0 : i64, scratch_operands = 0 : i64, tpu.core_type = #tpu.core_type<tc>, window_params = [{transform_indices = @transform_0, window_bounds = array<i64: 8, 512>}, {pipeline_mode = #tpu.pipeline_mode<synchronous>, transform_indices = @transform_1, window_bounds = array<i64: 512, 64>}, {pipeline_mode = #tpu.pipeline_mode<synchronous>, transform_indices = @transform_2, window_bounds = array<i64: 8, 64>}, {pipeline_mode = #tpu.pipeline_mode<synchronous>, transform_indices = @transform_3, window_bounds = array<i64: 2, 1, 64>}, {pipeline_mode = #tpu.pipeline_mode<synchronous>, transform_indices = @transform_4, window_bounds = array<i64: 2, 1, 64>}, {pipeline_mode = #tpu.pipeline_mode<synchronous>, transform_indices = @transform_5, window_bounds = array<i64: 2, 64, 192>}, {pipeline_mode = #tpu.pipeline_mode<synchronous>, transform_indices = @transform_6, window_bounds = array<i64: 2, 1, 192>}, {pipeline_mode = #tpu.pipeline_mode<synchronous>, transform_indices = @transform_7, window_bounds = array<i64: 2, 64, 64>}, {pipeline_mode = #tpu.pipeline_mode<synchronous>, transform_indices = @transform_8, window_bounds = array<i64: 2, 1, 64>}, {pipeline_mode = #tpu.pipeline_mode<synchronous>, transform_indices = @transform_9, window_bounds = array<i64: 2, 1, 64>}, {pipeline_mode = #tpu.pipeline_mode<synchronous>, transform_indices = @transform_10, window_bounds = array<i64: 2, 1, 64>}, {pipeline_mode = #tpu.pipeline_mode<synchronous>, transform_indices = @transform_11, window_bounds = array<i64: 2, 64, 256>}, {pipeline_mode = #tpu.pipeline_mode<synchronous>, transform_indices = @transform_12, window_bounds = array<i64: 2, 1, 256>}, {pipeline_mode = #tpu.pipeline_mode<synchronous>, transform_indices = @transform_13, window_bounds = array<i64: 2, 256, 64>}, {pipeline_mode = #tpu.pipeline_mode<synchronous>, transform_indices = @transform_14, window_bounds = array<i64: 2, 1, 64>}, {pipeline_mode = #tpu.pipeline_mode<synchronous>, transform_indices = @transform_15, window_bounds = array<i64: 1, 64>}, {pipeline_mode = #tpu.pipeline_mode<synchronous>, transform_indices = @transform_16, window_bounds = array<i64: 1, 64>}, {pipeline_mode = #tpu.pipeline_mode<synchronous>, transform_indices = @transform_17, window_bounds = array<i64: 64, 64>}, {pipeline_mode = #tpu.pipeline_mode<synchronous>, transform_indices = @transform_18, window_bounds = array<i64: 1, 64>}, {pipeline_mode = #tpu.pipeline_mode<synchronous>, transform_indices = @transform_19, window_bounds = array<i64: 8, 64>}, {pipeline_mode = #tpu.pipeline_mode<synchronous>, transform_indices = @transform_20, window_bounds = array<i64: 2, 1, 64>}, {pipeline_mode = #tpu.pipeline_mode<synchronous>, transform_indices = @transform_21, window_bounds = array<i64: 2, 1, 64>}, {pipeline_mode = #tpu.pipeline_mode<synchronous>, transform_indices = @transform_22, window_bounds = array<i64: 2, 64, 192>}, {pipeline_mode = #tpu.pipeline_mode<synchronous>, transform_indices = @transform_23, window_bounds = array<i64: 2, 1, 192>}, {pipeline_mode = #tpu.pipeline_mode<synchronous>, transform_indices = @transform_24, window_bounds = array<i64: 2, 64, 64>}, {pipeline_mode = #tpu.pipeline_mode<synchronous>, transform_indices = @transform_25, window_bounds = array<i64: 2, 1, 64>}, {pipeline_mode = #tpu.pipeline_mode<synchronous>, transform_indices = @transform_26, window_bounds = array<i64: 2, 1, 64>}, {pipeline_mode = #tpu.pipeline_mode<synchronous>, transform_indices = @transform_27, window_bounds = array<i64: 2, 1, 64>}, {pipeline_mode = #tpu.pipeline_mode<synchronous>, transform_indices = @transform_28, window_bounds = array<i64: 2, 64, 256>}, {pipeline_mode = #tpu.pipeline_mode<synchronous>, transform_indices = @transform_29, window_bounds = array<i64: 2, 1, 256>}, {pipeline_mode = #tpu.pipeline_mode<synchronous>, transform_indices = @transform_30, window_bounds = array<i64: 2, 256, 64>}, {pipeline_mode = #tpu.pipeline_mode<synchronous>, transform_indices = @transform_31, window_bounds = array<i64: 2, 1, 64>}, {pipeline_mode = #tpu.pipeline_mode<synchronous>, transform_indices = @transform_32, window_bounds = array<i64: 1, 64>}, {pipeline_mode = #tpu.pipeline_mode<synchronous>, transform_indices = @transform_33, window_bounds = array<i64: 1, 64>}, {transform_indices = @transform_34, window_bounds = array<i64: 8, 64>}]} {
    %0 = tpu.iota {dimensions = array<i32: 1>} : vector<8x8xi32>
    %c5_i32 = arith.constant 5 : i32
    %1 = vector.broadcast %c5_i32 : i32 to vector<8x8xi32>
    %2 = arith.cmpi slt, %0, %1 : vector<8x8xi32>
    %cst = arith.constant 0.000000e+00 : f32
    %cst_0 = arith.constant -1.000000e+30 : f32
    %3 = vector.broadcast %cst : f32 to vector<8x8xf32>
    %4 = vector.broadcast %cst_0 : f32 to vector<8x8xf32>
    %5 = arith.select %2, %3, %4 : vector<8x8xi1>, vector<8x8xf32>
    %c0 = arith.constant 0 : index
    %c0_1 = arith.constant 0 : index
    %6 = vector.load %arg1[%c0, %c0_1] : memref<8x512xf32, #tpu.memory_space<vmem>>, vector<8x512xf32>
    %c0_2 = arith.constant 0 : index
    %c0_3 = arith.constant 0 : index
    %7 = vector.load %arg2[%c0_2, %c0_3] : memref<512x64xf32, #tpu.memory_space<vmem>>, vector<512x64xf32>
    %cst_4 = arith.constant dense<0.000000e+00> : vector<8x64xf32>
    %8 = tpu.matmul %6, %7, %cst_4 {dimension_numbers = #tpu.dot_dimension_numbers<[1], [0], [0], [1], [0, 0, 1, 1], [], []>} : vector<8x512xf32>, vector<512x64xf32>, vector<8x64xf32> -> vector<8x64xf32>
    %c0_5 = arith.constant 0 : index
    %c0_6 = arith.constant 0 : index
    %9 = vector.load %arg3[%c0_5, %c0_6] : memref<8x64xf32, #tpu.memory_space<vmem>>, vector<8x64xf32>
    %10 = arith.addf %8, %9 : vector<8x64xf32>
    %c0_7 = arith.constant 0 : index
    %c0_8 = arith.constant 0 : index
    %c0_9 = arith.constant 0 : index
    %11 = vector.load %arg4[%c0_7, %c0_8, %c0_9] : memref<2x1x64xf32, #tpu.memory_space<vmem>>, vector<1x1x64xf32>
    %12 = vector.shape_cast %11 : vector<1x1x64xf32> to vector<1x64xf32>
    %c0_10 = arith.constant 0 : index
    %c0_11 = arith.constant 0 : index
    %c0_12 = arith.constant 0 : index
    %13 = vector.load %arg5[%c0_10, %c0_11, %c0_12] : memref<2x1x64xf32, #tpu.memory_space<vmem>>, vector<1x1x64xf32>
    %14 = vector.shape_cast %13 : vector<1x1x64xf32> to vector<1x64xf32>
    %c0_13 = arith.constant 0 : index
    %c0_14 = arith.constant 0 : index
    %c0_15 = arith.constant 0 : index
    %15 = vector.load %arg6[%c0_13, %c0_14, %c0_15] : memref<2x64x192xf32, #tpu.memory_space<vmem>>, vector<1x64x192xf32>
    %16 = vector.shape_cast %15 : vector<1x64x192xf32> to vector<64x192xf32>
    %c0_16 = arith.constant 0 : index
    %c0_17 = arith.constant 0 : index
    %c0_18 = arith.constant 0 : index
    %17 = vector.load %arg7[%c0_16, %c0_17, %c0_18] : memref<2x1x192xf32, #tpu.memory_space<vmem>>, vector<1x1x192xf32>
    %18 = vector.shape_cast %17 : vector<1x1x192xf32> to vector<1x192xf32>
    %c0_19 = arith.constant 0 : index
    %c0_20 = arith.constant 0 : index
    %c0_21 = arith.constant 0 : index
    %19 = vector.load %arg8[%c0_19, %c0_20, %c0_21] : memref<2x64x64xf32, #tpu.memory_space<vmem>>, vector<1x64x64xf32>
    %20 = vector.shape_cast %19 : vector<1x64x64xf32> to vector<64x64xf32>
    %c0_22 = arith.constant 0 : index
    %c0_23 = arith.constant 0 : index
    %c0_24 = arith.constant 0 : index
    %21 = vector.load %arg9[%c0_22, %c0_23, %c0_24] : memref<2x1x64xf32, #tpu.memory_space<vmem>>, vector<1x1x64xf32>
    %22 = vector.shape_cast %21 : vector<1x1x64xf32> to vector<1x64xf32>
    %c0_25 = arith.constant 0 : index
    %c0_26 = arith.constant 0 : index
    %c0_27 = arith.constant 0 : index
    %23 = vector.load %arg10[%c0_25, %c0_26, %c0_27] : memref<2x1x64xf32, #tpu.memory_space<vmem>>, vector<1x1x64xf32>
    %24 = vector.shape_cast %23 : vector<1x1x64xf32> to vector<1x64xf32>
    %c0_28 = arith.constant 0 : index
    %c0_29 = arith.constant 0 : index
    %c0_30 = arith.constant 0 : index
    %25 = vector.load %arg11[%c0_28, %c0_29, %c0_30] : memref<2x1x64xf32, #tpu.memory_space<vmem>>, vector<1x1x64xf32>
    %26 = vector.shape_cast %25 : vector<1x1x64xf32> to vector<1x64xf32>
    %c0_31 = arith.constant 0 : index
    %c0_32 = arith.constant 0 : index
    %c0_33 = arith.constant 0 : index
    %27 = vector.load %arg12[%c0_31, %c0_32, %c0_33] : memref<2x64x256xf32, #tpu.memory_space<vmem>>, vector<1x64x256xf32>
    %28 = vector.shape_cast %27 : vector<1x64x256xf32> to vector<64x256xf32>
    %c0_34 = arith.constant 0 : index
    %c0_35 = arith.constant 0 : index
    %c0_36 = arith.constant 0 : index
    %29 = vector.load %arg13[%c0_34, %c0_35, %c0_36] : memref<2x1x256xf32, #tpu.memory_space<vmem>>, vector<1x1x256xf32>
    %30 = vector.shape_cast %29 : vector<1x1x256xf32> to vector<1x256xf32>
    %c0_37 = arith.constant 0 : index
    %c0_38 = arith.constant 0 : index
    %c0_39 = arith.constant 0 : index
    %31 = vector.load %arg14[%c0_37, %c0_38, %c0_39] : memref<2x256x64xf32, #tpu.memory_space<vmem>>, vector<1x256x64xf32>
    %32 = vector.shape_cast %31 : vector<1x256x64xf32> to vector<256x64xf32>
    %c0_40 = arith.constant 0 : index
    %c0_41 = arith.constant 0 : index
    %c0_42 = arith.constant 0 : index
    %33 = vector.load %arg15[%c0_40, %c0_41, %c0_42] : memref<2x1x64xf32, #tpu.memory_space<vmem>>, vector<1x1x64xf32>
    %34 = vector.shape_cast %33 : vector<1x1x64xf32> to vector<1x64xf32>
    %cst_43 = arith.constant dense<0.000000e+00> : vector<8xf32>
    %35 = vector.multi_reduction <add>, %10, %cst_43 [1] : vector<8x64xf32> to vector<8xf32>
    %36 = vector.shape_cast %35 : vector<8xf32> to vector<8x1xf32>
    %cst_44 = arith.constant 6.400000e+01 : f32
    %37 = vector.broadcast %cst_44 : f32 to vector<8x1xf32>
    %38 = arith.divf %36, %37 : vector<8x1xf32>
    %39 = vector.broadcast %38 : vector<8x1xf32> to vector<8x64xf32>
    %40 = arith.subf %10, %39 : vector<8x64xf32>
    %41 = arith.mulf %40, %40 : vector<8x64xf32>
    %cst_45 = arith.constant dense<0.000000e+00> : vector<8xf32>
    %42 = vector.multi_reduction <add>, %41, %cst_45 [1] : vector<8x64xf32> to vector<8xf32>
    %43 = vector.shape_cast %42 : vector<8xf32> to vector<8x1xf32>
    %cst_46 = arith.constant 6.400000e+01 : f32
    %44 = vector.broadcast %cst_46 : f32 to vector<8x1xf32>
    %45 = arith.divf %43, %44 : vector<8x1xf32>
    %cst_47 = arith.constant 9.99999974E-6 : f32
    %46 = vector.broadcast %cst_47 : f32 to vector<8x1xf32>
    %47 = arith.addf %45, %46 : vector<8x1xf32>
    %48 = math.rsqrt %47 : vector<8x1xf32>
    %49 = vector.broadcast %48 : vector<8x1xf32> to vector<8x64xf32>
    %50 = arith.mulf %40, %49 : vector<8x64xf32>
    %51 = vector.broadcast %12 : vector<1x64xf32> to vector<8x64xf32>
    %52 = arith.mulf %50, %51 : vector<8x64xf32>
    %53 = vector.broadcast %14 : vector<1x64xf32> to vector<8x64xf32>
    %54 = arith.addf %52, %53 : vector<8x64xf32>
    %cst_48 = arith.constant dense<0.000000e+00> : vector<8x192xf32>
    %55 = tpu.matmul %54, %16, %cst_48 {dimension_numbers = #tpu.dot_dimension_numbers<[1], [0], [0], [1], [0, 0, 1, 1], [], []>} : vector<8x64xf32>, vector<64x192xf32>, vector<8x192xf32> -> vector<8x192xf32>
    %56 = vector.broadcast %18 : vector<1x192xf32> to vector<8x192xf32>
    %57 = arith.addf %55, %56 : vector<8x192xf32>
    %58 = vector.extract_strided_slice %57 {offsets = [0, 0], sizes = [8, 64], strides = [1, 1]} : vector<8x192xf32> to vector<8x64xf32>
    %59 = vector.extract_strided_slice %57 {offsets = [0, 64], sizes = [8, 64], strides = [1, 1]} : vector<8x192xf32> to vector<8x64xf32>
    %60 = vector.extract_strided_slice %57 {offsets = [0, 128], sizes = [8, 64], strides = [1, 1]} : vector<8x192xf32> to vector<8x64xf32>
    %61 = vector.extract_strided_slice %58 {offsets = [0, 0], sizes = [8, 16], strides = [1, 1]} : vector<8x64xf32> to vector<8x16xf32>
    %62 = vector.extract_strided_slice %59 {offsets = [0, 0], sizes = [8, 16], strides = [1, 1]} : vector<8x64xf32> to vector<8x16xf32>
    %63 = vector.extract_strided_slice %60 {offsets = [0, 0], sizes = [8, 16], strides = [1, 1]} : vector<8x64xf32> to vector<8x16xf32>
    %cst_49 = arith.constant dense<0.000000e+00> : vector<8x8xf32>
    %64 = tpu.matmul %61, %62, %cst_49 {dimension_numbers = #tpu.dot_dimension_numbers<[1], [1], [0], [0], [0, 0, 1, 0], [], []>} : vector<8x16xf32>, vector<8x16xf32>, vector<8x8xf32> -> vector<8x8xf32>
    %65 = arith.addf %64, %5 : vector<8x8xf32>
    %cst_50 = arith.constant dense<0xFF800000> : vector<8xf32>
    %66 = vector.multi_reduction <maximumf>, %65, %cst_50 [1] : vector<8x8xf32> to vector<8xf32>
    %67 = vector.shape_cast %66 : vector<8xf32> to vector<8x1xf32>
    %68 = vector.broadcast %67 : vector<8x1xf32> to vector<8x8xf32>
    %69 = arith.subf %65, %68 : vector<8x8xf32>
    %70 = math.exp %69 : vector<8x8xf32>
    %cst_51 = arith.constant dense<0.000000e+00> : vector<8xf32>
    %71 = vector.multi_reduction <add>, %70, %cst_51 [1] : vector<8x8xf32> to vector<8xf32>
    %72 = vector.shape_cast %71 : vector<8xf32> to vector<8x1xf32>
    %73 = tpu.reciprocal %72 {approx = true} : vector<8x1xf32> -> vector<8x1xf32>
    %74 = vector.broadcast %73 : vector<8x1xf32> to vector<8x8xf32>
    %75 = arith.mulf %70, %74 : vector<8x8xf32>
    %cst_52 = arith.constant dense<0.000000e+00> : vector<8x16xf32>
    %76 = tpu.matmul %75, %63, %cst_52 {dimension_numbers = #tpu.dot_dimension_numbers<[1], [0], [0], [1], [0, 0, 1, 1], [], []>} : vector<8x8xf32>, vector<8x16xf32>, vector<8x16xf32> -> vector<8x16xf32>
    %77 = vector.extract_strided_slice %20 {offsets = [0, 0], sizes = [16, 64], strides = [1, 1]} : vector<64x64xf32> to vector<16x64xf32>
    %cst_53 = arith.constant dense<0.000000e+00> : vector<8x64xf32>
    %78 = tpu.matmul %76, %77, %cst_53 {dimension_numbers = #tpu.dot_dimension_numbers<[1], [0], [0], [1], [0, 0, 1, 1], [], []>} : vector<8x16xf32>, vector<16x64xf32>, vector<8x64xf32> -> vector<8x64xf32>
    %79 = vector.extract_strided_slice %58 {offsets = [0, 16], sizes = [8, 16], strides = [1, 1]} : vector<8x64xf32> to vector<8x16xf32>
    %80 = vector.extract_strided_slice %59 {offsets = [0, 16], sizes = [8, 16], strides = [1, 1]} : vector<8x64xf32> to vector<8x16xf32>
    %81 = vector.extract_strided_slice %60 {offsets = [0, 16], sizes = [8, 16], strides = [1, 1]} : vector<8x64xf32> to vector<8x16xf32>
    %cst_54 = arith.constant dense<0.000000e+00> : vector<8x8xf32>
    %82 = tpu.matmul %79, %80, %cst_54 {dimension_numbers = #tpu.dot_dimension_numbers<[1], [1], [0], [0], [0, 0, 1, 0], [], []>} : vector<8x16xf32>, vector<8x16xf32>, vector<8x8xf32> -> vector<8x8xf32>
    %83 = arith.addf %82, %5 : vector<8x8xf32>
    %cst_55 = arith.constant dense<0xFF800000> : vector<8xf32>
    %84 = vector.multi_reduction <maximumf>, %83, %cst_55 [1] : vector<8x8xf32> to vector<8xf32>
    %85 = vector.shape_cast %84 : vector<8xf32> to vector<8x1xf32>
    %86 = vector.broadcast %85 : vector<8x1xf32> to vector<8x8xf32>
    %87 = arith.subf %83, %86 : vector<8x8xf32>
    %88 = math.exp %87 : vector<8x8xf32>
    %cst_56 = arith.constant dense<0.000000e+00> : vector<8xf32>
    %89 = vector.multi_reduction <add>, %88, %cst_56 [1] : vector<8x8xf32> to vector<8xf32>
    %90 = vector.shape_cast %89 : vector<8xf32> to vector<8x1xf32>
    %91 = tpu.reciprocal %90 {approx = true} : vector<8x1xf32> -> vector<8x1xf32>
    %92 = vector.broadcast %91 : vector<8x1xf32> to vector<8x8xf32>
    %93 = arith.mulf %88, %92 : vector<8x8xf32>
    %cst_57 = arith.constant dense<0.000000e+00> : vector<8x16xf32>
    %94 = tpu.matmul %93, %81, %cst_57 {dimension_numbers = #tpu.dot_dimension_numbers<[1], [0], [0], [1], [0, 0, 1, 1], [], []>} : vector<8x8xf32>, vector<8x16xf32>, vector<8x16xf32> -> vector<8x16xf32>
    %95 = vector.extract_strided_slice %20 {offsets = [16, 0], sizes = [16, 64], strides = [1, 1]} : vector<64x64xf32> to vector<16x64xf32>
    %cst_58 = arith.constant dense<0.000000e+00> : vector<8x64xf32>
    %96 = tpu.matmul %94, %95, %cst_58 {dimension_numbers = #tpu.dot_dimension_numbers<[1], [0], [0], [1], [0, 0, 1, 1], [], []>} : vector<8x16xf32>, vector<16x64xf32>, vector<8x64xf32> -> vector<8x64xf32>
    %97 = arith.addf %78, %96 : vector<8x64xf32>
    %98 = vector.extract_strided_slice %58 {offsets = [0, 32], sizes = [8, 16], strides = [1, 1]} : vector<8x64xf32> to vector<8x16xf32>
    %99 = vector.extract_strided_slice %59 {offsets = [0, 32], sizes = [8, 16], strides = [1, 1]} : vector<8x64xf32> to vector<8x16xf32>
    %100 = vector.extract_strided_slice %60 {offsets = [0, 32], sizes = [8, 16], strides = [1, 1]} : vector<8x64xf32> to vector<8x16xf32>
    %cst_59 = arith.constant dense<0.000000e+00> : vector<8x8xf32>
    %101 = tpu.matmul %98, %99, %cst_59 {dimension_numbers = #tpu.dot_dimension_numbers<[1], [1], [0], [0], [0, 0, 1, 0], [], []>} : vector<8x16xf32>, vector<8x16xf32>, vector<8x8xf32> -> vector<8x8xf32>
    %102 = arith.addf %101, %5 : vector<8x8xf32>
    %cst_60 = arith.constant dense<0xFF800000> : vector<8xf32>
    %103 = vector.multi_reduction <maximumf>, %102, %cst_60 [1] : vector<8x8xf32> to vector<8xf32>
    %104 = vector.shape_cast %103 : vector<8xf32> to vector<8x1xf32>
    %105 = vector.broadcast %104 : vector<8x1xf32> to vector<8x8xf32>
    %106 = arith.subf %102, %105 : vector<8x8xf32>
    %107 = math.exp %106 : vector<8x8xf32>
    %cst_61 = arith.constant dense<0.000000e+00> : vector<8xf32>
    %108 = vector.multi_reduction <add>, %107, %cst_61 [1] : vector<8x8xf32> to vector<8xf32>
    %109 = vector.shape_cast %108 : vector<8xf32> to vector<8x1xf32>
    %110 = tpu.reciprocal %109 {approx = true} : vector<8x1xf32> -> vector<8x1xf32>
    %111 = vector.broadcast %110 : vector<8x1xf32> to vector<8x8xf32>
    %112 = arith.mulf %107, %111 : vector<8x8xf32>
    %cst_62 = arith.constant dense<0.000000e+00> : vector<8x16xf32>
    %113 = tpu.matmul %112, %100, %cst_62 {dimension_numbers = #tpu.dot_dimension_numbers<[1], [0], [0], [1], [0, 0, 1, 1], [], []>} : vector<8x8xf32>, vector<8x16xf32>, vector<8x16xf32> -> vector<8x16xf32>
    %114 = vector.extract_strided_slice %20 {offsets = [32, 0], sizes = [16, 64], strides = [1, 1]} : vector<64x64xf32> to vector<16x64xf32>
    %cst_63 = arith.constant dense<0.000000e+00> : vector<8x64xf32>
    %115 = tpu.matmul %113, %114, %cst_63 {dimension_numbers = #tpu.dot_dimension_numbers<[1], [0], [0], [1], [0, 0, 1, 1], [], []>} : vector<8x16xf32>, vector<16x64xf32>, vector<8x64xf32> -> vector<8x64xf32>
    %116 = arith.addf %97, %115 : vector<8x64xf32>
    %117 = vector.extract_strided_slice %58 {offsets = [0, 48], sizes = [8, 16], strides = [1, 1]} : vector<8x64xf32> to vector<8x16xf32>
    %118 = vector.extract_strided_slice %59 {offsets = [0, 48], sizes = [8, 16], strides = [1, 1]} : vector<8x64xf32> to vector<8x16xf32>
    %119 = vector.extract_strided_slice %60 {offsets = [0, 48], sizes = [8, 16], strides = [1, 1]} : vector<8x64xf32> to vector<8x16xf32>
    %cst_64 = arith.constant dense<0.000000e+00> : vector<8x8xf32>
    %120 = tpu.matmul %117, %118, %cst_64 {dimension_numbers = #tpu.dot_dimension_numbers<[1], [1], [0], [0], [0, 0, 1, 0], [], []>} : vector<8x16xf32>, vector<8x16xf32>, vector<8x8xf32> -> vector<8x8xf32>
    %121 = arith.addf %120, %5 : vector<8x8xf32>
    %cst_65 = arith.constant dense<0xFF800000> : vector<8xf32>
    %122 = vector.multi_reduction <maximumf>, %121, %cst_65 [1] : vector<8x8xf32> to vector<8xf32>
    %123 = vector.shape_cast %122 : vector<8xf32> to vector<8x1xf32>
    %124 = vector.broadcast %123 : vector<8x1xf32> to vector<8x8xf32>
    %125 = arith.subf %121, %124 : vector<8x8xf32>
    %126 = math.exp %125 : vector<8x8xf32>
    %cst_66 = arith.constant dense<0.000000e+00> : vector<8xf32>
    %127 = vector.multi_reduction <add>, %126, %cst_66 [1] : vector<8x8xf32> to vector<8xf32>
    %128 = vector.shape_cast %127 : vector<8xf32> to vector<8x1xf32>
    %129 = tpu.reciprocal %128 {approx = true} : vector<8x1xf32> -> vector<8x1xf32>
    %130 = vector.broadcast %129 : vector<8x1xf32> to vector<8x8xf32>
    %131 = arith.mulf %126, %130 : vector<8x8xf32>
    %cst_67 = arith.constant dense<0.000000e+00> : vector<8x16xf32>
    %132 = tpu.matmul %131, %119, %cst_67 {dimension_numbers = #tpu.dot_dimension_numbers<[1], [0], [0], [1], [0, 0, 1, 1], [], []>} : vector<8x8xf32>, vector<8x16xf32>, vector<8x16xf32> -> vector<8x16xf32>
    %133 = vector.extract_strided_slice %20 {offsets = [48, 0], sizes = [16, 64], strides = [1, 1]} : vector<64x64xf32> to vector<16x64xf32>
    %cst_68 = arith.constant dense<0.000000e+00> : vector<8x64xf32>
    %134 = tpu.matmul %132, %133, %cst_68 {dimension_numbers = #tpu.dot_dimension_numbers<[1], [0], [0], [1], [0, 0, 1, 1], [], []>} : vector<8x16xf32>, vector<16x64xf32>, vector<8x64xf32> -> vector<8x64xf32>
    %135 = arith.addf %116, %134 : vector<8x64xf32>
    %136 = arith.addf %10, %135 : vector<8x64xf32>
    %137 = vector.broadcast %22 : vector<1x64xf32> to vector<8x64xf32>
    %138 = arith.addf %136, %137 : vector<8x64xf32>
    %cst_69 = arith.constant dense<0.000000e+00> : vector<8xf32>
    %139 = vector.multi_reduction <add>, %138, %cst_69 [1] : vector<8x64xf32> to vector<8xf32>
    %140 = vector.shape_cast %139 : vector<8xf32> to vector<8x1xf32>
    %cst_70 = arith.constant 6.400000e+01 : f32
    %141 = vector.broadcast %cst_70 : f32 to vector<8x1xf32>
    %142 = arith.divf %140, %141 : vector<8x1xf32>
    %143 = vector.broadcast %142 : vector<8x1xf32> to vector<8x64xf32>
    %144 = arith.subf %138, %143 : vector<8x64xf32>
    %145 = arith.mulf %144, %144 : vector<8x64xf32>
    %cst_71 = arith.constant dense<0.000000e+00> : vector<8xf32>
    %146 = vector.multi_reduction <add>, %145, %cst_71 [1] : vector<8x64xf32> to vector<8xf32>
    %147 = vector.shape_cast %146 : vector<8xf32> to vector<8x1xf32>
    %cst_72 = arith.constant 6.400000e+01 : f32
    %148 = vector.broadcast %cst_72 : f32 to vector<8x1xf32>
    %149 = arith.divf %147, %148 : vector<8x1xf32>
    %cst_73 = arith.constant 9.99999974E-6 : f32
    %150 = vector.broadcast %cst_73 : f32 to vector<8x1xf32>
    %151 = arith.addf %149, %150 : vector<8x1xf32>
    %152 = math.rsqrt %151 : vector<8x1xf32>
    %153 = vector.broadcast %152 : vector<8x1xf32> to vector<8x64xf32>
    %154 = arith.mulf %144, %153 : vector<8x64xf32>
    %155 = vector.broadcast %24 : vector<1x64xf32> to vector<8x64xf32>
    %156 = arith.mulf %154, %155 : vector<8x64xf32>
    %157 = vector.broadcast %26 : vector<1x64xf32> to vector<8x64xf32>
    %158 = arith.addf %156, %157 : vector<8x64xf32>
    %cst_74 = arith.constant dense<0.000000e+00> : vector<8x256xf32>
    %159 = tpu.matmul %158, %28, %cst_74 {dimension_numbers = #tpu.dot_dimension_numbers<[1], [0], [0], [1], [0, 0, 1, 1], [], []>} : vector<8x64xf32>, vector<64x256xf32>, vector<8x256xf32> -> vector<8x256xf32>
    %160 = vector.broadcast %30 : vector<1x256xf32> to vector<8x256xf32>
    %161 = arith.addf %159, %160 : vector<8x256xf32>
    %cst_75 = arith.constant 5.000000e-01 : f32
    %162 = vector.broadcast %cst_75 : f32 to vector<8x256xf32>
    %163 = arith.mulf %162, %161 : vector<8x256xf32>
    %cst_76 = arith.constant 0.707106769 : f32
    %164 = vector.broadcast %cst_76 : f32 to vector<8x256xf32>
    %165 = arith.mulf %161, %164 : vector<8x256xf32>
    %cst_77 = arith.constant 0.000000e+00 : f32
    %166 = vector.broadcast %cst_77 : f32 to vector<8x256xf32>
    %167 = arith.cmpf oge, %165, %166 : vector<8x256xf32>
    %cst_78 = arith.constant 1.000000e+00 : f32
    %cst_79 = arith.constant -1.000000e+00 : f32
    %168 = vector.broadcast %cst_78 : f32 to vector<8x256xf32>
    %169 = vector.broadcast %cst_79 : f32 to vector<8x256xf32>
    %170 = arith.select %167, %168, %169 : vector<8x256xi1>, vector<8x256xf32>
    %171 = math.absf %165 : vector<8x256xf32>
    %cst_80 = arith.constant 0.327591091 : f32
    %172 = vector.broadcast %cst_80 : f32 to vector<8x256xf32>
    %173 = arith.mulf %172, %171 : vector<8x256xf32>
    %cst_81 = arith.constant 1.000000e+00 : f32
    %174 = vector.broadcast %cst_81 : f32 to vector<8x256xf32>
    %175 = arith.addf %174, %173 : vector<8x256xf32>
    %cst_82 = arith.constant 1.000000e+00 : f32
    %176 = vector.broadcast %cst_82 : f32 to vector<8x256xf32>
    %177 = arith.divf %176, %175 : vector<8x256xf32>
    %cst_83 = arith.constant 1.06140542 : f32
    %178 = vector.broadcast %cst_83 : f32 to vector<8x256xf32>
    %179 = arith.mulf %178, %177 : vector<8x256xf32>
    %cst_84 = arith.constant -1.45315206 : f32
    %180 = vector.broadcast %cst_84 : f32 to vector<8x256xf32>
    %181 = arith.addf %179, %180 : vector<8x256xf32>
    %182 = arith.mulf %181, %177 : vector<8x256xf32>
    %cst_85 = arith.constant 1.42141378 : f32
    %183 = vector.broadcast %cst_85 : f32 to vector<8x256xf32>
    %184 = arith.addf %182, %183 : vector<8x256xf32>
    %185 = arith.mulf %184, %177 : vector<8x256xf32>
    %cst_86 = arith.constant -0.284496725 : f32
    %186 = vector.broadcast %cst_86 : f32 to vector<8x256xf32>
    %187 = arith.addf %185, %186 : vector<8x256xf32>
    %188 = arith.mulf %187, %177 : vector<8x256xf32>
    %cst_87 = arith.constant 0.254829586 : f32
    %189 = vector.broadcast %cst_87 : f32 to vector<8x256xf32>
    %190 = arith.addf %188, %189 : vector<8x256xf32>
    %191 = arith.mulf %190, %177 : vector<8x256xf32>
    %cst_88 = arith.constant 0.000000e+00 : f32
    %192 = vector.broadcast %cst_88 : f32 to vector<8x256xf32>
    %193 = arith.subf %192, %171 : vector<8x256xf32>
    %194 = arith.mulf %193, %171 : vector<8x256xf32>
    %195 = math.exp %194 : vector<8x256xf32>
    %196 = arith.mulf %191, %195 : vector<8x256xf32>
    %cst_89 = arith.constant 1.000000e+00 : f32
    %197 = vector.broadcast %cst_89 : f32 to vector<8x256xf32>
    %198 = arith.subf %197, %196 : vector<8x256xf32>
    %199 = arith.mulf %170, %198 : vector<8x256xf32>
    %cst_90 = arith.constant 1.000000e+00 : f32
    %200 = vector.broadcast %cst_90 : f32 to vector<8x256xf32>
    %201 = arith.addf %200, %199 : vector<8x256xf32>
    %202 = arith.mulf %163, %201 : vector<8x256xf32>
    %cst_91 = arith.constant dense<0.000000e+00> : vector<8x64xf32>
    %203 = tpu.matmul %202, %32, %cst_91 {dimension_numbers = #tpu.dot_dimension_numbers<[1], [0], [0], [1], [0, 0, 1, 1], [], []>} : vector<8x256xf32>, vector<256x64xf32>, vector<8x64xf32> -> vector<8x64xf32>
    %204 = vector.broadcast %34 : vector<1x64xf32> to vector<8x64xf32>
    %205 = arith.addf %203, %204 : vector<8x64xf32>
    %206 = arith.addf %138, %205 : vector<8x64xf32>
    %c1 = arith.constant 1 : index
    %c0_92 = arith.constant 0 : index
    %c0_93 = arith.constant 0 : index
    %207 = vector.load %arg4[%c1, %c0_92, %c0_93] : memref<2x1x64xf32, #tpu.memory_space<vmem>>, vector<1x1x64xf32>
    %208 = vector.shape_cast %207 : vector<1x1x64xf32> to vector<1x64xf32>
    %c1_94 = arith.constant 1 : index
    %c0_95 = arith.constant 0 : index
    %c0_96 = arith.constant 0 : index
    %209 = vector.load %arg5[%c1_94, %c0_95, %c0_96] : memref<2x1x64xf32, #tpu.memory_space<vmem>>, vector<1x1x64xf32>
    %210 = vector.shape_cast %209 : vector<1x1x64xf32> to vector<1x64xf32>
    %c1_97 = arith.constant 1 : index
    %c0_98 = arith.constant 0 : index
    %c0_99 = arith.constant 0 : index
    %211 = vector.load %arg6[%c1_97, %c0_98, %c0_99] : memref<2x64x192xf32, #tpu.memory_space<vmem>>, vector<1x64x192xf32>
    %212 = vector.shape_cast %211 : vector<1x64x192xf32> to vector<64x192xf32>
    %c1_100 = arith.constant 1 : index
    %c0_101 = arith.constant 0 : index
    %c0_102 = arith.constant 0 : index
    %213 = vector.load %arg7[%c1_100, %c0_101, %c0_102] : memref<2x1x192xf32, #tpu.memory_space<vmem>>, vector<1x1x192xf32>
    %214 = vector.shape_cast %213 : vector<1x1x192xf32> to vector<1x192xf32>
    %c1_103 = arith.constant 1 : index
    %c0_104 = arith.constant 0 : index
    %c0_105 = arith.constant 0 : index
    %215 = vector.load %arg8[%c1_103, %c0_104, %c0_105] : memref<2x64x64xf32, #tpu.memory_space<vmem>>, vector<1x64x64xf32>
    %216 = vector.shape_cast %215 : vector<1x64x64xf32> to vector<64x64xf32>
    %c1_106 = arith.constant 1 : index
    %c0_107 = arith.constant 0 : index
    %c0_108 = arith.constant 0 : index
    %217 = vector.load %arg9[%c1_106, %c0_107, %c0_108] : memref<2x1x64xf32, #tpu.memory_space<vmem>>, vector<1x1x64xf32>
    %218 = vector.shape_cast %217 : vector<1x1x64xf32> to vector<1x64xf32>
    %c1_109 = arith.constant 1 : index
    %c0_110 = arith.constant 0 : index
    %c0_111 = arith.constant 0 : index
    %219 = vector.load %arg10[%c1_109, %c0_110, %c0_111] : memref<2x1x64xf32, #tpu.memory_space<vmem>>, vector<1x1x64xf32>
    %220 = vector.shape_cast %219 : vector<1x1x64xf32> to vector<1x64xf32>
    %c1_112 = arith.constant 1 : index
    %c0_113 = arith.constant 0 : index
    %c0_114 = arith.constant 0 : index
    %221 = vector.load %arg11[%c1_112, %c0_113, %c0_114] : memref<2x1x64xf32, #tpu.memory_space<vmem>>, vector<1x1x64xf32>
    %222 = vector.shape_cast %221 : vector<1x1x64xf32> to vector<1x64xf32>
    %c1_115 = arith.constant 1 : index
    %c0_116 = arith.constant 0 : index
    %c0_117 = arith.constant 0 : index
    %223 = vector.load %arg12[%c1_115, %c0_116, %c0_117] : memref<2x64x256xf32, #tpu.memory_space<vmem>>, vector<1x64x256xf32>
    %224 = vector.shape_cast %223 : vector<1x64x256xf32> to vector<64x256xf32>
    %c1_118 = arith.constant 1 : index
    %c0_119 = arith.constant 0 : index
    %c0_120 = arith.constant 0 : index
    %225 = vector.load %arg13[%c1_118, %c0_119, %c0_120] : memref<2x1x256xf32, #tpu.memory_space<vmem>>, vector<1x1x256xf32>
    %226 = vector.shape_cast %225 : vector<1x1x256xf32> to vector<1x256xf32>
    %c1_121 = arith.constant 1 : index
    %c0_122 = arith.constant 0 : index
    %c0_123 = arith.constant 0 : index
    %227 = vector.load %arg14[%c1_121, %c0_122, %c0_123] : memref<2x256x64xf32, #tpu.memory_space<vmem>>, vector<1x256x64xf32>
    %228 = vector.shape_cast %227 : vector<1x256x64xf32> to vector<256x64xf32>
    %c1_124 = arith.constant 1 : index
    %c0_125 = arith.constant 0 : index
    %c0_126 = arith.constant 0 : index
    %229 = vector.load %arg15[%c1_124, %c0_125, %c0_126] : memref<2x1x64xf32, #tpu.memory_space<vmem>>, vector<1x1x64xf32>
    %230 = vector.shape_cast %229 : vector<1x1x64xf32> to vector<1x64xf32>
    %cst_127 = arith.constant dense<0.000000e+00> : vector<8xf32>
    %231 = vector.multi_reduction <add>, %206, %cst_127 [1] : vector<8x64xf32> to vector<8xf32>
    %232 = vector.shape_cast %231 : vector<8xf32> to vector<8x1xf32>
    %cst_128 = arith.constant 6.400000e+01 : f32
    %233 = vector.broadcast %cst_128 : f32 to vector<8x1xf32>
    %234 = arith.divf %232, %233 : vector<8x1xf32>
    %235 = vector.broadcast %234 : vector<8x1xf32> to vector<8x64xf32>
    %236 = arith.subf %206, %235 : vector<8x64xf32>
    %237 = arith.mulf %236, %236 : vector<8x64xf32>
    %cst_129 = arith.constant dense<0.000000e+00> : vector<8xf32>
    %238 = vector.multi_reduction <add>, %237, %cst_129 [1] : vector<8x64xf32> to vector<8xf32>
    %239 = vector.shape_cast %238 : vector<8xf32> to vector<8x1xf32>
    %cst_130 = arith.constant 6.400000e+01 : f32
    %240 = vector.broadcast %cst_130 : f32 to vector<8x1xf32>
    %241 = arith.divf %239, %240 : vector<8x1xf32>
    %cst_131 = arith.constant 9.99999974E-6 : f32
    %242 = vector.broadcast %cst_131 : f32 to vector<8x1xf32>
    %243 = arith.addf %241, %242 : vector<8x1xf32>
    %244 = math.rsqrt %243 : vector<8x1xf32>
    %245 = vector.broadcast %244 : vector<8x1xf32> to vector<8x64xf32>
    %246 = arith.mulf %236, %245 : vector<8x64xf32>
    %247 = vector.broadcast %208 : vector<1x64xf32> to vector<8x64xf32>
    %248 = arith.mulf %246, %247 : vector<8x64xf32>
    %249 = vector.broadcast %210 : vector<1x64xf32> to vector<8x64xf32>
    %250 = arith.addf %248, %249 : vector<8x64xf32>
    %cst_132 = arith.constant dense<0.000000e+00> : vector<8x192xf32>
    %251 = tpu.matmul %250, %212, %cst_132 {dimension_numbers = #tpu.dot_dimension_numbers<[1], [0], [0], [1], [0, 0, 1, 1], [], []>} : vector<8x64xf32>, vector<64x192xf32>, vector<8x192xf32> -> vector<8x192xf32>
    %252 = vector.broadcast %214 : vector<1x192xf32> to vector<8x192xf32>
    %253 = arith.addf %251, %252 : vector<8x192xf32>
    %254 = vector.extract_strided_slice %253 {offsets = [0, 0], sizes = [8, 64], strides = [1, 1]} : vector<8x192xf32> to vector<8x64xf32>
    %255 = vector.extract_strided_slice %253 {offsets = [0, 64], sizes = [8, 64], strides = [1, 1]} : vector<8x192xf32> to vector<8x64xf32>
    %256 = vector.extract_strided_slice %253 {offsets = [0, 128], sizes = [8, 64], strides = [1, 1]} : vector<8x192xf32> to vector<8x64xf32>
    %257 = vector.extract_strided_slice %254 {offsets = [0, 0], sizes = [8, 16], strides = [1, 1]} : vector<8x64xf32> to vector<8x16xf32>
    %258 = vector.extract_strided_slice %255 {offsets = [0, 0], sizes = [8, 16], strides = [1, 1]} : vector<8x64xf32> to vector<8x16xf32>
    %259 = vector.extract_strided_slice %256 {offsets = [0, 0], sizes = [8, 16], strides = [1, 1]} : vector<8x64xf32> to vector<8x16xf32>
    %cst_133 = arith.constant dense<0.000000e+00> : vector<8x8xf32>
    %260 = tpu.matmul %257, %258, %cst_133 {dimension_numbers = #tpu.dot_dimension_numbers<[1], [1], [0], [0], [0, 0, 1, 0], [], []>} : vector<8x16xf32>, vector<8x16xf32>, vector<8x8xf32> -> vector<8x8xf32>
    %261 = arith.addf %260, %5 : vector<8x8xf32>
    %cst_134 = arith.constant dense<0xFF800000> : vector<8xf32>
    %262 = vector.multi_reduction <maximumf>, %261, %cst_134 [1] : vector<8x8xf32> to vector<8xf32>
    %263 = vector.shape_cast %262 : vector<8xf32> to vector<8x1xf32>
    %264 = vector.broadcast %263 : vector<8x1xf32> to vector<8x8xf32>
    %265 = arith.subf %261, %264 : vector<8x8xf32>
    %266 = math.exp %265 : vector<8x8xf32>
    %cst_135 = arith.constant dense<0.000000e+00> : vector<8xf32>
    %267 = vector.multi_reduction <add>, %266, %cst_135 [1] : vector<8x8xf32> to vector<8xf32>
    %268 = vector.shape_cast %267 : vector<8xf32> to vector<8x1xf32>
    %269 = tpu.reciprocal %268 {approx = true} : vector<8x1xf32> -> vector<8x1xf32>
    %270 = vector.broadcast %269 : vector<8x1xf32> to vector<8x8xf32>
    %271 = arith.mulf %266, %270 : vector<8x8xf32>
    %cst_136 = arith.constant dense<0.000000e+00> : vector<8x16xf32>
    %272 = tpu.matmul %271, %259, %cst_136 {dimension_numbers = #tpu.dot_dimension_numbers<[1], [0], [0], [1], [0, 0, 1, 1], [], []>} : vector<8x8xf32>, vector<8x16xf32>, vector<8x16xf32> -> vector<8x16xf32>
    %273 = vector.extract_strided_slice %216 {offsets = [0, 0], sizes = [16, 64], strides = [1, 1]} : vector<64x64xf32> to vector<16x64xf32>
    %cst_137 = arith.constant dense<0.000000e+00> : vector<8x64xf32>
    %274 = tpu.matmul %272, %273, %cst_137 {dimension_numbers = #tpu.dot_dimension_numbers<[1], [0], [0], [1], [0, 0, 1, 1], [], []>} : vector<8x16xf32>, vector<16x64xf32>, vector<8x64xf32> -> vector<8x64xf32>
    %275 = vector.extract_strided_slice %254 {offsets = [0, 16], sizes = [8, 16], strides = [1, 1]} : vector<8x64xf32> to vector<8x16xf32>
    %276 = vector.extract_strided_slice %255 {offsets = [0, 16], sizes = [8, 16], strides = [1, 1]} : vector<8x64xf32> to vector<8x16xf32>
    %277 = vector.extract_strided_slice %256 {offsets = [0, 16], sizes = [8, 16], strides = [1, 1]} : vector<8x64xf32> to vector<8x16xf32>
    %cst_138 = arith.constant dense<0.000000e+00> : vector<8x8xf32>
    %278 = tpu.matmul %275, %276, %cst_138 {dimension_numbers = #tpu.dot_dimension_numbers<[1], [1], [0], [0], [0, 0, 1, 0], [], []>} : vector<8x16xf32>, vector<8x16xf32>, vector<8x8xf32> -> vector<8x8xf32>
    %279 = arith.addf %278, %5 : vector<8x8xf32>
    %cst_139 = arith.constant dense<0xFF800000> : vector<8xf32>
    %280 = vector.multi_reduction <maximumf>, %279, %cst_139 [1] : vector<8x8xf32> to vector<8xf32>
    %281 = vector.shape_cast %280 : vector<8xf32> to vector<8x1xf32>
    %282 = vector.broadcast %281 : vector<8x1xf32> to vector<8x8xf32>
    %283 = arith.subf %279, %282 : vector<8x8xf32>
    %284 = math.exp %283 : vector<8x8xf32>
    %cst_140 = arith.constant dense<0.000000e+00> : vector<8xf32>
    %285 = vector.multi_reduction <add>, %284, %cst_140 [1] : vector<8x8xf32> to vector<8xf32>
    %286 = vector.shape_cast %285 : vector<8xf32> to vector<8x1xf32>
    %287 = tpu.reciprocal %286 {approx = true} : vector<8x1xf32> -> vector<8x1xf32>
    %288 = vector.broadcast %287 : vector<8x1xf32> to vector<8x8xf32>
    %289 = arith.mulf %284, %288 : vector<8x8xf32>
    %cst_141 = arith.constant dense<0.000000e+00> : vector<8x16xf32>
    %290 = tpu.matmul %289, %277, %cst_141 {dimension_numbers = #tpu.dot_dimension_numbers<[1], [0], [0], [1], [0, 0, 1, 1], [], []>} : vector<8x8xf32>, vector<8x16xf32>, vector<8x16xf32> -> vector<8x16xf32>
    %291 = vector.extract_strided_slice %216 {offsets = [16, 0], sizes = [16, 64], strides = [1, 1]} : vector<64x64xf32> to vector<16x64xf32>
    %cst_142 = arith.constant dense<0.000000e+00> : vector<8x64xf32>
    %292 = tpu.matmul %290, %291, %cst_142 {dimension_numbers = #tpu.dot_dimension_numbers<[1], [0], [0], [1], [0, 0, 1, 1], [], []>} : vector<8x16xf32>, vector<16x64xf32>, vector<8x64xf32> -> vector<8x64xf32>
    %293 = arith.addf %274, %292 : vector<8x64xf32>
    %294 = vector.extract_strided_slice %254 {offsets = [0, 32], sizes = [8, 16], strides = [1, 1]} : vector<8x64xf32> to vector<8x16xf32>
    %295 = vector.extract_strided_slice %255 {offsets = [0, 32], sizes = [8, 16], strides = [1, 1]} : vector<8x64xf32> to vector<8x16xf32>
    %296 = vector.extract_strided_slice %256 {offsets = [0, 32], sizes = [8, 16], strides = [1, 1]} : vector<8x64xf32> to vector<8x16xf32>
    %cst_143 = arith.constant dense<0.000000e+00> : vector<8x8xf32>
    %297 = tpu.matmul %294, %295, %cst_143 {dimension_numbers = #tpu.dot_dimension_numbers<[1], [1], [0], [0], [0, 0, 1, 0], [], []>} : vector<8x16xf32>, vector<8x16xf32>, vector<8x8xf32> -> vector<8x8xf32>
    %298 = arith.addf %297, %5 : vector<8x8xf32>
    %cst_144 = arith.constant dense<0xFF800000> : vector<8xf32>
    %299 = vector.multi_reduction <maximumf>, %298, %cst_144 [1] : vector<8x8xf32> to vector<8xf32>
    %300 = vector.shape_cast %299 : vector<8xf32> to vector<8x1xf32>
    %301 = vector.broadcast %300 : vector<8x1xf32> to vector<8x8xf32>
    %302 = arith.subf %298, %301 : vector<8x8xf32>
    %303 = math.exp %302 : vector<8x8xf32>
    %cst_145 = arith.constant dense<0.000000e+00> : vector<8xf32>
    %304 = vector.multi_reduction <add>, %303, %cst_145 [1] : vector<8x8xf32> to vector<8xf32>
    %305 = vector.shape_cast %304 : vector<8xf32> to vector<8x1xf32>
    %306 = tpu.reciprocal %305 {approx = true} : vector<8x1xf32> -> vector<8x1xf32>
    %307 = vector.broadcast %306 : vector<8x1xf32> to vector<8x8xf32>
    %308 = arith.mulf %303, %307 : vector<8x8xf32>
    %cst_146 = arith.constant dense<0.000000e+00> : vector<8x16xf32>
    %309 = tpu.matmul %308, %296, %cst_146 {dimension_numbers = #tpu.dot_dimension_numbers<[1], [0], [0], [1], [0, 0, 1, 1], [], []>} : vector<8x8xf32>, vector<8x16xf32>, vector<8x16xf32> -> vector<8x16xf32>
    %310 = vector.extract_strided_slice %216 {offsets = [32, 0], sizes = [16, 64], strides = [1, 1]} : vector<64x64xf32> to vector<16x64xf32>
    %cst_147 = arith.constant dense<0.000000e+00> : vector<8x64xf32>
    %311 = tpu.matmul %309, %310, %cst_147 {dimension_numbers = #tpu.dot_dimension_numbers<[1], [0], [0], [1], [0, 0, 1, 1], [], []>} : vector<8x16xf32>, vector<16x64xf32>, vector<8x64xf32> -> vector<8x64xf32>
    %312 = arith.addf %293, %311 : vector<8x64xf32>
    %313 = vector.extract_strided_slice %254 {offsets = [0, 48], sizes = [8, 16], strides = [1, 1]} : vector<8x64xf32> to vector<8x16xf32>
    %314 = vector.extract_strided_slice %255 {offsets = [0, 48], sizes = [8, 16], strides = [1, 1]} : vector<8x64xf32> to vector<8x16xf32>
    %315 = vector.extract_strided_slice %256 {offsets = [0, 48], sizes = [8, 16], strides = [1, 1]} : vector<8x64xf32> to vector<8x16xf32>
    %cst_148 = arith.constant dense<0.000000e+00> : vector<8x8xf32>
    %316 = tpu.matmul %313, %314, %cst_148 {dimension_numbers = #tpu.dot_dimension_numbers<[1], [1], [0], [0], [0, 0, 1, 0], [], []>} : vector<8x16xf32>, vector<8x16xf32>, vector<8x8xf32> -> vector<8x8xf32>
    %317 = arith.addf %316, %5 : vector<8x8xf32>
    %cst_149 = arith.constant dense<0xFF800000> : vector<8xf32>
    %318 = vector.multi_reduction <maximumf>, %317, %cst_149 [1] : vector<8x8xf32> to vector<8xf32>
    %319 = vector.shape_cast %318 : vector<8xf32> to vector<8x1xf32>
    %320 = vector.broadcast %319 : vector<8x1xf32> to vector<8x8xf32>
    %321 = arith.subf %317, %320 : vector<8x8xf32>
    %322 = math.exp %321 : vector<8x8xf32>
    %cst_150 = arith.constant dense<0.000000e+00> : vector<8xf32>
    %323 = vector.multi_reduction <add>, %322, %cst_150 [1] : vector<8x8xf32> to vector<8xf32>
    %324 = vector.shape_cast %323 : vector<8xf32> to vector<8x1xf32>
    %325 = tpu.reciprocal %324 {approx = true} : vector<8x1xf32> -> vector<8x1xf32>
    %326 = vector.broadcast %325 : vector<8x1xf32> to vector<8x8xf32>
    %327 = arith.mulf %322, %326 : vector<8x8xf32>
    %cst_151 = arith.constant dense<0.000000e+00> : vector<8x16xf32>
    %328 = tpu.matmul %327, %315, %cst_151 {dimension_numbers = #tpu.dot_dimension_numbers<[1], [0], [0], [1], [0, 0, 1, 1], [], []>} : vector<8x8xf32>, vector<8x16xf32>, vector<8x16xf32> -> vector<8x16xf32>
    %329 = vector.extract_strided_slice %216 {offsets = [48, 0], sizes = [16, 64], strides = [1, 1]} : vector<64x64xf32> to vector<16x64xf32>
    %cst_152 = arith.constant dense<0.000000e+00> : vector<8x64xf32>
    %330 = tpu.matmul %328, %329, %cst_152 {dimension_numbers = #tpu.dot_dimension_numbers<[1], [0], [0], [1], [0, 0, 1, 1], [], []>} : vector<8x16xf32>, vector<16x64xf32>, vector<8x64xf32> -> vector<8x64xf32>
    %331 = arith.addf %312, %330 : vector<8x64xf32>
    %332 = arith.addf %206, %331 : vector<8x64xf32>
    %333 = vector.broadcast %218 : vector<1x64xf32> to vector<8x64xf32>
    %334 = arith.addf %332, %333 : vector<8x64xf32>
    %cst_153 = arith.constant dense<0.000000e+00> : vector<8xf32>
    %335 = vector.multi_reduction <add>, %334, %cst_153 [1] : vector<8x64xf32> to vector<8xf32>
    %336 = vector.shape_cast %335 : vector<8xf32> to vector<8x1xf32>
    %cst_154 = arith.constant 6.400000e+01 : f32
    %337 = vector.broadcast %cst_154 : f32 to vector<8x1xf32>
    %338 = arith.divf %336, %337 : vector<8x1xf32>
    %339 = vector.broadcast %338 : vector<8x1xf32> to vector<8x64xf32>
    %340 = arith.subf %334, %339 : vector<8x64xf32>
    %341 = arith.mulf %340, %340 : vector<8x64xf32>
    %cst_155 = arith.constant dense<0.000000e+00> : vector<8xf32>
    %342 = vector.multi_reduction <add>, %341, %cst_155 [1] : vector<8x64xf32> to vector<8xf32>
    %343 = vector.shape_cast %342 : vector<8xf32> to vector<8x1xf32>
    %cst_156 = arith.constant 6.400000e+01 : f32
    %344 = vector.broadcast %cst_156 : f32 to vector<8x1xf32>
    %345 = arith.divf %343, %344 : vector<8x1xf32>
    %cst_157 = arith.constant 9.99999974E-6 : f32
    %346 = vector.broadcast %cst_157 : f32 to vector<8x1xf32>
    %347 = arith.addf %345, %346 : vector<8x1xf32>
    %348 = math.rsqrt %347 : vector<8x1xf32>
    %349 = vector.broadcast %348 : vector<8x1xf32> to vector<8x64xf32>
    %350 = arith.mulf %340, %349 : vector<8x64xf32>
    %351 = vector.broadcast %220 : vector<1x64xf32> to vector<8x64xf32>
    %352 = arith.mulf %350, %351 : vector<8x64xf32>
    %353 = vector.broadcast %222 : vector<1x64xf32> to vector<8x64xf32>
    %354 = arith.addf %352, %353 : vector<8x64xf32>
    %cst_158 = arith.constant dense<0.000000e+00> : vector<8x256xf32>
    %355 = tpu.matmul %354, %224, %cst_158 {dimension_numbers = #tpu.dot_dimension_numbers<[1], [0], [0], [1], [0, 0, 1, 1], [], []>} : vector<8x64xf32>, vector<64x256xf32>, vector<8x256xf32> -> vector<8x256xf32>
    %356 = vector.broadcast %226 : vector<1x256xf32> to vector<8x256xf32>
    %357 = arith.addf %355, %356 : vector<8x256xf32>
    %cst_159 = arith.constant 5.000000e-01 : f32
    %358 = vector.broadcast %cst_159 : f32 to vector<8x256xf32>
    %359 = arith.mulf %358, %357 : vector<8x256xf32>
    %cst_160 = arith.constant 0.707106769 : f32
    %360 = vector.broadcast %cst_160 : f32 to vector<8x256xf32>
    %361 = arith.mulf %357, %360 : vector<8x256xf32>
    %cst_161 = arith.constant 0.000000e+00 : f32
    %362 = vector.broadcast %cst_161 : f32 to vector<8x256xf32>
    %363 = arith.cmpf oge, %361, %362 : vector<8x256xf32>
    %cst_162 = arith.constant 1.000000e+00 : f32
    %cst_163 = arith.constant -1.000000e+00 : f32
    %364 = vector.broadcast %cst_162 : f32 to vector<8x256xf32>
    %365 = vector.broadcast %cst_163 : f32 to vector<8x256xf32>
    %366 = arith.select %363, %364, %365 : vector<8x256xi1>, vector<8x256xf32>
    %367 = math.absf %361 : vector<8x256xf32>
    %cst_164 = arith.constant 0.327591091 : f32
    %368 = vector.broadcast %cst_164 : f32 to vector<8x256xf32>
    %369 = arith.mulf %368, %367 : vector<8x256xf32>
    %cst_165 = arith.constant 1.000000e+00 : f32
    %370 = vector.broadcast %cst_165 : f32 to vector<8x256xf32>
    %371 = arith.addf %370, %369 : vector<8x256xf32>
    %cst_166 = arith.constant 1.000000e+00 : f32
    %372 = vector.broadcast %cst_166 : f32 to vector<8x256xf32>
    %373 = arith.divf %372, %371 : vector<8x256xf32>
    %cst_167 = arith.constant 1.06140542 : f32
    %374 = vector.broadcast %cst_167 : f32 to vector<8x256xf32>
    %375 = arith.mulf %374, %373 : vector<8x256xf32>
    %cst_168 = arith.constant -1.45315206 : f32
    %376 = vector.broadcast %cst_168 : f32 to vector<8x256xf32>
    %377 = arith.addf %375, %376 : vector<8x256xf32>
    %378 = arith.mulf %377, %373 : vector<8x256xf32>
    %cst_169 = arith.constant 1.42141378 : f32
    %379 = vector.broadcast %cst_169 : f32 to vector<8x256xf32>
    %380 = arith.addf %378, %379 : vector<8x256xf32>
    %381 = arith.mulf %380, %373 : vector<8x256xf32>
    %cst_170 = arith.constant -0.284496725 : f32
    %382 = vector.broadcast %cst_170 : f32 to vector<8x256xf32>
    %383 = arith.addf %381, %382 : vector<8x256xf32>
    %384 = arith.mulf %383, %373 : vector<8x256xf32>
    %cst_171 = arith.constant 0.254829586 : f32
    %385 = vector.broadcast %cst_171 : f32 to vector<8x256xf32>
    %386 = arith.addf %384, %385 : vector<8x256xf32>
    %387 = arith.mulf %386, %373 : vector<8x256xf32>
    %cst_172 = arith.constant 0.000000e+00 : f32
    %388 = vector.broadcast %cst_172 : f32 to vector<8x256xf32>
    %389 = arith.subf %388, %367 : vector<8x256xf32>
    %390 = arith.mulf %389, %367 : vector<8x256xf32>
    %391 = math.exp %390 : vector<8x256xf32>
    %392 = arith.mulf %387, %391 : vector<8x256xf32>
    %cst_173 = arith.constant 1.000000e+00 : f32
    %393 = vector.broadcast %cst_173 : f32 to vector<8x256xf32>
    %394 = arith.subf %393, %392 : vector<8x256xf32>
    %395 = arith.mulf %366, %394 : vector<8x256xf32>
    %cst_174 = arith.constant 1.000000e+00 : f32
    %396 = vector.broadcast %cst_174 : f32 to vector<8x256xf32>
    %397 = arith.addf %396, %395 : vector<8x256xf32>
    %398 = arith.mulf %359, %397 : vector<8x256xf32>
    %cst_175 = arith.constant dense<0.000000e+00> : vector<8x64xf32>
    %399 = tpu.matmul %398, %228, %cst_175 {dimension_numbers = #tpu.dot_dimension_numbers<[1], [0], [0], [1], [0, 0, 1, 1], [], []>} : vector<8x256xf32>, vector<256x64xf32>, vector<8x64xf32> -> vector<8x64xf32>
    %400 = vector.broadcast %230 : vector<1x64xf32> to vector<8x64xf32>
    %401 = arith.addf %399, %400 : vector<8x64xf32>
    %402 = arith.addf %334, %401 : vector<8x64xf32>
    %c0_176 = arith.constant 0 : index
    %c0_177 = arith.constant 0 : index
    %403 = vector.load %arg16[%c0_176, %c0_177] : memref<1x64xf32, #tpu.memory_space<vmem>>, vector<1x64xf32>
    %c0_178 = arith.constant 0 : index
    %c0_179 = arith.constant 0 : index
    %404 = vector.load %arg17[%c0_178, %c0_179] : memref<1x64xf32, #tpu.memory_space<vmem>>, vector<1x64xf32>
    %cst_180 = arith.constant dense<0.000000e+00> : vector<8xf32>
    %405 = vector.multi_reduction <add>, %402, %cst_180 [1] : vector<8x64xf32> to vector<8xf32>
    %406 = vector.shape_cast %405 : vector<8xf32> to vector<8x1xf32>
    %cst_181 = arith.constant 6.400000e+01 : f32
    %407 = vector.broadcast %cst_181 : f32 to vector<8x1xf32>
    %408 = arith.divf %406, %407 : vector<8x1xf32>
    %409 = vector.broadcast %408 : vector<8x1xf32> to vector<8x64xf32>
    %410 = arith.subf %402, %409 : vector<8x64xf32>
    %411 = arith.mulf %410, %410 : vector<8x64xf32>
    %cst_182 = arith.constant dense<0.000000e+00> : vector<8xf32>
    %412 = vector.multi_reduction <add>, %411, %cst_182 [1] : vector<8x64xf32> to vector<8xf32>
    %413 = vector.shape_cast %412 : vector<8xf32> to vector<8x1xf32>
    %cst_183 = arith.constant 6.400000e+01 : f32
    %414 = vector.broadcast %cst_183 : f32 to vector<8x1xf32>
    %415 = arith.divf %413, %414 : vector<8x1xf32>
    %cst_184 = arith.constant 9.99999974E-6 : f32
    %416 = vector.broadcast %cst_184 : f32 to vector<8x1xf32>
    %417 = arith.addf %415, %416 : vector<8x1xf32>
    %418 = math.rsqrt %417 : vector<8x1xf32>
    %419 = vector.broadcast %418 : vector<8x1xf32> to vector<8x64xf32>
    %420 = arith.mulf %410, %419 : vector<8x64xf32>
    %421 = vector.broadcast %403 : vector<1x64xf32> to vector<8x64xf32>
    %422 = arith.mulf %420, %421 : vector<8x64xf32>
    %423 = vector.broadcast %404 : vector<1x64xf32> to vector<8x64xf32>
    %424 = arith.addf %422, %423 : vector<8x64xf32>
    %c0_185 = arith.constant 0 : index
    %c0_186 = arith.constant 0 : index
    %425 = vector.load %arg18[%c0_185, %c0_186] : memref<64x64xf32, #tpu.memory_space<vmem>>, vector<64x64xf32>
    %cst_187 = arith.constant dense<0.000000e+00> : vector<8x64xf32>
    %426 = tpu.matmul %424, %425, %cst_187 {dimension_numbers = #tpu.dot_dimension_numbers<[1], [0], [0], [1], [0, 0, 1, 1], [], []>} : vector<8x64xf32>, vector<64x64xf32>, vector<8x64xf32> -> vector<8x64xf32>
    %c0_188 = arith.constant 0 : index
    %c0_189 = arith.constant 0 : index
    %427 = vector.load %arg19[%c0_188, %c0_189] : memref<1x64xf32, #tpu.memory_space<vmem>>, vector<1x64xf32>
    %428 = vector.broadcast %427 : vector<1x64xf32> to vector<8x64xf32>
    %429 = arith.addf %426, %428 : vector<8x64xf32>
    %c0_190 = arith.constant 0 : index
    %c0_191 = arith.constant 0 : index
    %430 = vector.load %arg20[%c0_190, %c0_191] : memref<8x64xf32, #tpu.memory_space<vmem>>, vector<8x64xf32>
    %431 = arith.addf %429, %430 : vector<8x64xf32>
    %c0_192 = arith.constant 0 : index
    %c0_193 = arith.constant 0 : index
    %c0_194 = arith.constant 0 : index
    %432 = vector.load %arg21[%c0_192, %c0_193, %c0_194] : memref<2x1x64xf32, #tpu.memory_space<vmem>>, vector<1x1x64xf32>
    %433 = vector.shape_cast %432 : vector<1x1x64xf32> to vector<1x64xf32>
    %c0_195 = arith.constant 0 : index
    %c0_196 = arith.constant 0 : index
    %c0_197 = arith.constant 0 : index
    %434 = vector.load %arg22[%c0_195, %c0_196, %c0_197] : memref<2x1x64xf32, #tpu.memory_space<vmem>>, vector<1x1x64xf32>
    %435 = vector.shape_cast %434 : vector<1x1x64xf32> to vector<1x64xf32>
    %c0_198 = arith.constant 0 : index
    %c0_199 = arith.constant 0 : index
    %c0_200 = arith.constant 0 : index
    %436 = vector.load %arg23[%c0_198, %c0_199, %c0_200] : memref<2x64x192xf32, #tpu.memory_space<vmem>>, vector<1x64x192xf32>
    %437 = vector.shape_cast %436 : vector<1x64x192xf32> to vector<64x192xf32>
    %c0_201 = arith.constant 0 : index
    %c0_202 = arith.constant 0 : index
    %c0_203 = arith.constant 0 : index
    %438 = vector.load %arg24[%c0_201, %c0_202, %c0_203] : memref<2x1x192xf32, #tpu.memory_space<vmem>>, vector<1x1x192xf32>
    %439 = vector.shape_cast %438 : vector<1x1x192xf32> to vector<1x192xf32>
    %c0_204 = arith.constant 0 : index
    %c0_205 = arith.constant 0 : index
    %c0_206 = arith.constant 0 : index
    %440 = vector.load %arg25[%c0_204, %c0_205, %c0_206] : memref<2x64x64xf32, #tpu.memory_space<vmem>>, vector<1x64x64xf32>
    %441 = vector.shape_cast %440 : vector<1x64x64xf32> to vector<64x64xf32>
    %c0_207 = arith.constant 0 : index
    %c0_208 = arith.constant 0 : index
    %c0_209 = arith.constant 0 : index
    %442 = vector.load %arg26[%c0_207, %c0_208, %c0_209] : memref<2x1x64xf32, #tpu.memory_space<vmem>>, vector<1x1x64xf32>
    %443 = vector.shape_cast %442 : vector<1x1x64xf32> to vector<1x64xf32>
    %c0_210 = arith.constant 0 : index
    %c0_211 = arith.constant 0 : index
    %c0_212 = arith.constant 0 : index
    %444 = vector.load %arg27[%c0_210, %c0_211, %c0_212] : memref<2x1x64xf32, #tpu.memory_space<vmem>>, vector<1x1x64xf32>
    %445 = vector.shape_cast %444 : vector<1x1x64xf32> to vector<1x64xf32>
    %c0_213 = arith.constant 0 : index
    %c0_214 = arith.constant 0 : index
    %c0_215 = arith.constant 0 : index
    %446 = vector.load %arg28[%c0_213, %c0_214, %c0_215] : memref<2x1x64xf32, #tpu.memory_space<vmem>>, vector<1x1x64xf32>
    %447 = vector.shape_cast %446 : vector<1x1x64xf32> to vector<1x64xf32>
    %c0_216 = arith.constant 0 : index
    %c0_217 = arith.constant 0 : index
    %c0_218 = arith.constant 0 : index
    %448 = vector.load %arg29[%c0_216, %c0_217, %c0_218] : memref<2x64x256xf32, #tpu.memory_space<vmem>>, vector<1x64x256xf32>
    %449 = vector.shape_cast %448 : vector<1x64x256xf32> to vector<64x256xf32>
    %c0_219 = arith.constant 0 : index
    %c0_220 = arith.constant 0 : index
    %c0_221 = arith.constant 0 : index
    %450 = vector.load %arg30[%c0_219, %c0_220, %c0_221] : memref<2x1x256xf32, #tpu.memory_space<vmem>>, vector<1x1x256xf32>
    %451 = vector.shape_cast %450 : vector<1x1x256xf32> to vector<1x256xf32>
    %c0_222 = arith.constant 0 : index
    %c0_223 = arith.constant 0 : index
    %c0_224 = arith.constant 0 : index
    %452 = vector.load %arg31[%c0_222, %c0_223, %c0_224] : memref<2x256x64xf32, #tpu.memory_space<vmem>>, vector<1x256x64xf32>
    %453 = vector.shape_cast %452 : vector<1x256x64xf32> to vector<256x64xf32>
    %c0_225 = arith.constant 0 : index
    %c0_226 = arith.constant 0 : index
    %c0_227 = arith.constant 0 : index
    %454 = vector.load %arg32[%c0_225, %c0_226, %c0_227] : memref<2x1x64xf32, #tpu.memory_space<vmem>>, vector<1x1x64xf32>
    %455 = vector.shape_cast %454 : vector<1x1x64xf32> to vector<1x64xf32>
    %cst_228 = arith.constant dense<0.000000e+00> : vector<8xf32>
    %456 = vector.multi_reduction <add>, %431, %cst_228 [1] : vector<8x64xf32> to vector<8xf32>
    %457 = vector.shape_cast %456 : vector<8xf32> to vector<8x1xf32>
    %cst_229 = arith.constant 6.400000e+01 : f32
    %458 = vector.broadcast %cst_229 : f32 to vector<8x1xf32>
    %459 = arith.divf %457, %458 : vector<8x1xf32>
    %460 = vector.broadcast %459 : vector<8x1xf32> to vector<8x64xf32>
    %461 = arith.subf %431, %460 : vector<8x64xf32>
    %462 = arith.mulf %461, %461 : vector<8x64xf32>
    %cst_230 = arith.constant dense<0.000000e+00> : vector<8xf32>
    %463 = vector.multi_reduction <add>, %462, %cst_230 [1] : vector<8x64xf32> to vector<8xf32>
    %464 = vector.shape_cast %463 : vector<8xf32> to vector<8x1xf32>
    %cst_231 = arith.constant 6.400000e+01 : f32
    %465 = vector.broadcast %cst_231 : f32 to vector<8x1xf32>
    %466 = arith.divf %464, %465 : vector<8x1xf32>
    %cst_232 = arith.constant 9.99999974E-6 : f32
    %467 = vector.broadcast %cst_232 : f32 to vector<8x1xf32>
    %468 = arith.addf %466, %467 : vector<8x1xf32>
    %469 = math.rsqrt %468 : vector<8x1xf32>
    %470 = vector.broadcast %469 : vector<8x1xf32> to vector<8x64xf32>
    %471 = arith.mulf %461, %470 : vector<8x64xf32>
    %472 = vector.broadcast %433 : vector<1x64xf32> to vector<8x64xf32>
    %473 = arith.mulf %471, %472 : vector<8x64xf32>
    %474 = vector.broadcast %435 : vector<1x64xf32> to vector<8x64xf32>
    %475 = arith.addf %473, %474 : vector<8x64xf32>
    %cst_233 = arith.constant dense<0.000000e+00> : vector<8x192xf32>
    %476 = tpu.matmul %475, %437, %cst_233 {dimension_numbers = #tpu.dot_dimension_numbers<[1], [0], [0], [1], [0, 0, 1, 1], [], []>} : vector<8x64xf32>, vector<64x192xf32>, vector<8x192xf32> -> vector<8x192xf32>
    %477 = vector.broadcast %439 : vector<1x192xf32> to vector<8x192xf32>
    %478 = arith.addf %476, %477 : vector<8x192xf32>
    %479 = vector.extract_strided_slice %478 {offsets = [0, 0], sizes = [8, 64], strides = [1, 1]} : vector<8x192xf32> to vector<8x64xf32>
    %480 = vector.extract_strided_slice %478 {offsets = [0, 64], sizes = [8, 64], strides = [1, 1]} : vector<8x192xf32> to vector<8x64xf32>
    %481 = vector.extract_strided_slice %478 {offsets = [0, 128], sizes = [8, 64], strides = [1, 1]} : vector<8x192xf32> to vector<8x64xf32>
    %482 = vector.extract_strided_slice %479 {offsets = [0, 0], sizes = [8, 16], strides = [1, 1]} : vector<8x64xf32> to vector<8x16xf32>
    %483 = vector.extract_strided_slice %480 {offsets = [0, 0], sizes = [8, 16], strides = [1, 1]} : vector<8x64xf32> to vector<8x16xf32>
    %484 = vector.extract_strided_slice %481 {offsets = [0, 0], sizes = [8, 16], strides = [1, 1]} : vector<8x64xf32> to vector<8x16xf32>
    %cst_234 = arith.constant dense<0.000000e+00> : vector<8x8xf32>
    %485 = tpu.matmul %482, %483, %cst_234 {dimension_numbers = #tpu.dot_dimension_numbers<[1], [1], [0], [0], [0, 0, 1, 0], [], []>} : vector<8x16xf32>, vector<8x16xf32>, vector<8x8xf32> -> vector<8x8xf32>
    %486 = arith.addf %485, %5 : vector<8x8xf32>
    %cst_235 = arith.constant dense<0xFF800000> : vector<8xf32>
    %487 = vector.multi_reduction <maximumf>, %486, %cst_235 [1] : vector<8x8xf32> to vector<8xf32>
    %488 = vector.shape_cast %487 : vector<8xf32> to vector<8x1xf32>
    %489 = vector.broadcast %488 : vector<8x1xf32> to vector<8x8xf32>
    %490 = arith.subf %486, %489 : vector<8x8xf32>
    %491 = math.exp %490 : vector<8x8xf32>
    %cst_236 = arith.constant dense<0.000000e+00> : vector<8xf32>
    %492 = vector.multi_reduction <add>, %491, %cst_236 [1] : vector<8x8xf32> to vector<8xf32>
    %493 = vector.shape_cast %492 : vector<8xf32> to vector<8x1xf32>
    %494 = tpu.reciprocal %493 {approx = true} : vector<8x1xf32> -> vector<8x1xf32>
    %495 = vector.broadcast %494 : vector<8x1xf32> to vector<8x8xf32>
    %496 = arith.mulf %491, %495 : vector<8x8xf32>
    %cst_237 = arith.constant dense<0.000000e+00> : vector<8x16xf32>
    %497 = tpu.matmul %496, %484, %cst_237 {dimension_numbers = #tpu.dot_dimension_numbers<[1], [0], [0], [1], [0, 0, 1, 1], [], []>} : vector<8x8xf32>, vector<8x16xf32>, vector<8x16xf32> -> vector<8x16xf32>
    %498 = vector.extract_strided_slice %441 {offsets = [0, 0], sizes = [16, 64], strides = [1, 1]} : vector<64x64xf32> to vector<16x64xf32>
    %cst_238 = arith.constant dense<0.000000e+00> : vector<8x64xf32>
    %499 = tpu.matmul %497, %498, %cst_238 {dimension_numbers = #tpu.dot_dimension_numbers<[1], [0], [0], [1], [0, 0, 1, 1], [], []>} : vector<8x16xf32>, vector<16x64xf32>, vector<8x64xf32> -> vector<8x64xf32>
    %500 = vector.extract_strided_slice %479 {offsets = [0, 16], sizes = [8, 16], strides = [1, 1]} : vector<8x64xf32> to vector<8x16xf32>
    %501 = vector.extract_strided_slice %480 {offsets = [0, 16], sizes = [8, 16], strides = [1, 1]} : vector<8x64xf32> to vector<8x16xf32>
    %502 = vector.extract_strided_slice %481 {offsets = [0, 16], sizes = [8, 16], strides = [1, 1]} : vector<8x64xf32> to vector<8x16xf32>
    %cst_239 = arith.constant dense<0.000000e+00> : vector<8x8xf32>
    %503 = tpu.matmul %500, %501, %cst_239 {dimension_numbers = #tpu.dot_dimension_numbers<[1], [1], [0], [0], [0, 0, 1, 0], [], []>} : vector<8x16xf32>, vector<8x16xf32>, vector<8x8xf32> -> vector<8x8xf32>
    %504 = arith.addf %503, %5 : vector<8x8xf32>
    %cst_240 = arith.constant dense<0xFF800000> : vector<8xf32>
    %505 = vector.multi_reduction <maximumf>, %504, %cst_240 [1] : vector<8x8xf32> to vector<8xf32>
    %506 = vector.shape_cast %505 : vector<8xf32> to vector<8x1xf32>
    %507 = vector.broadcast %506 : vector<8x1xf32> to vector<8x8xf32>
    %508 = arith.subf %504, %507 : vector<8x8xf32>
    %509 = math.exp %508 : vector<8x8xf32>
    %cst_241 = arith.constant dense<0.000000e+00> : vector<8xf32>
    %510 = vector.multi_reduction <add>, %509, %cst_241 [1] : vector<8x8xf32> to vector<8xf32>
    %511 = vector.shape_cast %510 : vector<8xf32> to vector<8x1xf32>
    %512 = tpu.reciprocal %511 {approx = true} : vector<8x1xf32> -> vector<8x1xf32>
    %513 = vector.broadcast %512 : vector<8x1xf32> to vector<8x8xf32>
    %514 = arith.mulf %509, %513 : vector<8x8xf32>
    %cst_242 = arith.constant dense<0.000000e+00> : vector<8x16xf32>
    %515 = tpu.matmul %514, %502, %cst_242 {dimension_numbers = #tpu.dot_dimension_numbers<[1], [0], [0], [1], [0, 0, 1, 1], [], []>} : vector<8x8xf32>, vector<8x16xf32>, vector<8x16xf32> -> vector<8x16xf32>
    %516 = vector.extract_strided_slice %441 {offsets = [16, 0], sizes = [16, 64], strides = [1, 1]} : vector<64x64xf32> to vector<16x64xf32>
    %cst_243 = arith.constant dense<0.000000e+00> : vector<8x64xf32>
    %517 = tpu.matmul %515, %516, %cst_243 {dimension_numbers = #tpu.dot_dimension_numbers<[1], [0], [0], [1], [0, 0, 1, 1], [], []>} : vector<8x16xf32>, vector<16x64xf32>, vector<8x64xf32> -> vector<8x64xf32>
    %518 = arith.addf %499, %517 : vector<8x64xf32>
    %519 = vector.extract_strided_slice %479 {offsets = [0, 32], sizes = [8, 16], strides = [1, 1]} : vector<8x64xf32> to vector<8x16xf32>
    %520 = vector.extract_strided_slice %480 {offsets = [0, 32], sizes = [8, 16], strides = [1, 1]} : vector<8x64xf32> to vector<8x16xf32>
    %521 = vector.extract_strided_slice %481 {offsets = [0, 32], sizes = [8, 16], strides = [1, 1]} : vector<8x64xf32> to vector<8x16xf32>
    %cst_244 = arith.constant dense<0.000000e+00> : vector<8x8xf32>
    %522 = tpu.matmul %519, %520, %cst_244 {dimension_numbers = #tpu.dot_dimension_numbers<[1], [1], [0], [0], [0, 0, 1, 0], [], []>} : vector<8x16xf32>, vector<8x16xf32>, vector<8x8xf32> -> vector<8x8xf32>
    %523 = arith.addf %522, %5 : vector<8x8xf32>
    %cst_245 = arith.constant dense<0xFF800000> : vector<8xf32>
    %524 = vector.multi_reduction <maximumf>, %523, %cst_245 [1] : vector<8x8xf32> to vector<8xf32>
    %525 = vector.shape_cast %524 : vector<8xf32> to vector<8x1xf32>
    %526 = vector.broadcast %525 : vector<8x1xf32> to vector<8x8xf32>
    %527 = arith.subf %523, %526 : vector<8x8xf32>
    %528 = math.exp %527 : vector<8x8xf32>
    %cst_246 = arith.constant dense<0.000000e+00> : vector<8xf32>
    %529 = vector.multi_reduction <add>, %528, %cst_246 [1] : vector<8x8xf32> to vector<8xf32>
    %530 = vector.shape_cast %529 : vector<8xf32> to vector<8x1xf32>
    %531 = tpu.reciprocal %530 {approx = true} : vector<8x1xf32> -> vector<8x1xf32>
    %532 = vector.broadcast %531 : vector<8x1xf32> to vector<8x8xf32>
    %533 = arith.mulf %528, %532 : vector<8x8xf32>
    %cst_247 = arith.constant dense<0.000000e+00> : vector<8x16xf32>
    %534 = tpu.matmul %533, %521, %cst_247 {dimension_numbers = #tpu.dot_dimension_numbers<[1], [0], [0], [1], [0, 0, 1, 1], [], []>} : vector<8x8xf32>, vector<8x16xf32>, vector<8x16xf32> -> vector<8x16xf32>
    %535 = vector.extract_strided_slice %441 {offsets = [32, 0], sizes = [16, 64], strides = [1, 1]} : vector<64x64xf32> to vector<16x64xf32>
    %cst_248 = arith.constant dense<0.000000e+00> : vector<8x64xf32>
    %536 = tpu.matmul %534, %535, %cst_248 {dimension_numbers = #tpu.dot_dimension_numbers<[1], [0], [0], [1], [0, 0, 1, 1], [], []>} : vector<8x16xf32>, vector<16x64xf32>, vector<8x64xf32> -> vector<8x64xf32>
    %537 = arith.addf %518, %536 : vector<8x64xf32>
    %538 = vector.extract_strided_slice %479 {offsets = [0, 48], sizes = [8, 16], strides = [1, 1]} : vector<8x64xf32> to vector<8x16xf32>
    %539 = vector.extract_strided_slice %480 {offsets = [0, 48], sizes = [8, 16], strides = [1, 1]} : vector<8x64xf32> to vector<8x16xf32>
    %540 = vector.extract_strided_slice %481 {offsets = [0, 48], sizes = [8, 16], strides = [1, 1]} : vector<8x64xf32> to vector<8x16xf32>
    %cst_249 = arith.constant dense<0.000000e+00> : vector<8x8xf32>
    %541 = tpu.matmul %538, %539, %cst_249 {dimension_numbers = #tpu.dot_dimension_numbers<[1], [1], [0], [0], [0, 0, 1, 0], [], []>} : vector<8x16xf32>, vector<8x16xf32>, vector<8x8xf32> -> vector<8x8xf32>
    %542 = arith.addf %541, %5 : vector<8x8xf32>
    %cst_250 = arith.constant dense<0xFF800000> : vector<8xf32>
    %543 = vector.multi_reduction <maximumf>, %542, %cst_250 [1] : vector<8x8xf32> to vector<8xf32>
    %544 = vector.shape_cast %543 : vector<8xf32> to vector<8x1xf32>
    %545 = vector.broadcast %544 : vector<8x1xf32> to vector<8x8xf32>
    %546 = arith.subf %542, %545 : vector<8x8xf32>
    %547 = math.exp %546 : vector<8x8xf32>
    %cst_251 = arith.constant dense<0.000000e+00> : vector<8xf32>
    %548 = vector.multi_reduction <add>, %547, %cst_251 [1] : vector<8x8xf32> to vector<8xf32>
    %549 = vector.shape_cast %548 : vector<8xf32> to vector<8x1xf32>
    %550 = tpu.reciprocal %549 {approx = true} : vector<8x1xf32> -> vector<8x1xf32>
    %551 = vector.broadcast %550 : vector<8x1xf32> to vector<8x8xf32>
    %552 = arith.mulf %547, %551 : vector<8x8xf32>
    %cst_252 = arith.constant dense<0.000000e+00> : vector<8x16xf32>
    %553 = tpu.matmul %552, %540, %cst_252 {dimension_numbers = #tpu.dot_dimension_numbers<[1], [0], [0], [1], [0, 0, 1, 1], [], []>} : vector<8x8xf32>, vector<8x16xf32>, vector<8x16xf32> -> vector<8x16xf32>
    %554 = vector.extract_strided_slice %441 {offsets = [48, 0], sizes = [16, 64], strides = [1, 1]} : vector<64x64xf32> to vector<16x64xf32>
    %cst_253 = arith.constant dense<0.000000e+00> : vector<8x64xf32>
    %555 = tpu.matmul %553, %554, %cst_253 {dimension_numbers = #tpu.dot_dimension_numbers<[1], [0], [0], [1], [0, 0, 1, 1], [], []>} : vector<8x16xf32>, vector<16x64xf32>, vector<8x64xf32> -> vector<8x64xf32>
    %556 = arith.addf %537, %555 : vector<8x64xf32>
    %557 = arith.addf %431, %556 : vector<8x64xf32>
    %558 = vector.broadcast %443 : vector<1x64xf32> to vector<8x64xf32>
    %559 = arith.addf %557, %558 : vector<8x64xf32>
    %cst_254 = arith.constant dense<0.000000e+00> : vector<8xf32>
    %560 = vector.multi_reduction <add>, %559, %cst_254 [1] : vector<8x64xf32> to vector<8xf32>
    %561 = vector.shape_cast %560 : vector<8xf32> to vector<8x1xf32>
    %cst_255 = arith.constant 6.400000e+01 : f32
    %562 = vector.broadcast %cst_255 : f32 to vector<8x1xf32>
    %563 = arith.divf %561, %562 : vector<8x1xf32>
    %564 = vector.broadcast %563 : vector<8x1xf32> to vector<8x64xf32>
    %565 = arith.subf %559, %564 : vector<8x64xf32>
    %566 = arith.mulf %565, %565 : vector<8x64xf32>
    %cst_256 = arith.constant dense<0.000000e+00> : vector<8xf32>
    %567 = vector.multi_reduction <add>, %566, %cst_256 [1] : vector<8x64xf32> to vector<8xf32>
    %568 = vector.shape_cast %567 : vector<8xf32> to vector<8x1xf32>
    %cst_257 = arith.constant 6.400000e+01 : f32
    %569 = vector.broadcast %cst_257 : f32 to vector<8x1xf32>
    %570 = arith.divf %568, %569 : vector<8x1xf32>
    %cst_258 = arith.constant 9.99999974E-6 : f32
    %571 = vector.broadcast %cst_258 : f32 to vector<8x1xf32>
    %572 = arith.addf %570, %571 : vector<8x1xf32>
    %573 = math.rsqrt %572 : vector<8x1xf32>
    %574 = vector.broadcast %573 : vector<8x1xf32> to vector<8x64xf32>
    %575 = arith.mulf %565, %574 : vector<8x64xf32>
    %576 = vector.broadcast %445 : vector<1x64xf32> to vector<8x64xf32>
    %577 = arith.mulf %575, %576 : vector<8x64xf32>
    %578 = vector.broadcast %447 : vector<1x64xf32> to vector<8x64xf32>
    %579 = arith.addf %577, %578 : vector<8x64xf32>
    %cst_259 = arith.constant dense<0.000000e+00> : vector<8x256xf32>
    %580 = tpu.matmul %579, %449, %cst_259 {dimension_numbers = #tpu.dot_dimension_numbers<[1], [0], [0], [1], [0, 0, 1, 1], [], []>} : vector<8x64xf32>, vector<64x256xf32>, vector<8x256xf32> -> vector<8x256xf32>
    %581 = vector.broadcast %451 : vector<1x256xf32> to vector<8x256xf32>
    %582 = arith.addf %580, %581 : vector<8x256xf32>
    %cst_260 = arith.constant 5.000000e-01 : f32
    %583 = vector.broadcast %cst_260 : f32 to vector<8x256xf32>
    %584 = arith.mulf %583, %582 : vector<8x256xf32>
    %cst_261 = arith.constant 0.707106769 : f32
    %585 = vector.broadcast %cst_261 : f32 to vector<8x256xf32>
    %586 = arith.mulf %582, %585 : vector<8x256xf32>
    %cst_262 = arith.constant 0.000000e+00 : f32
    %587 = vector.broadcast %cst_262 : f32 to vector<8x256xf32>
    %588 = arith.cmpf oge, %586, %587 : vector<8x256xf32>
    %cst_263 = arith.constant 1.000000e+00 : f32
    %cst_264 = arith.constant -1.000000e+00 : f32
    %589 = vector.broadcast %cst_263 : f32 to vector<8x256xf32>
    %590 = vector.broadcast %cst_264 : f32 to vector<8x256xf32>
    %591 = arith.select %588, %589, %590 : vector<8x256xi1>, vector<8x256xf32>
    %592 = math.absf %586 : vector<8x256xf32>
    %cst_265 = arith.constant 0.327591091 : f32
    %593 = vector.broadcast %cst_265 : f32 to vector<8x256xf32>
    %594 = arith.mulf %593, %592 : vector<8x256xf32>
    %cst_266 = arith.constant 1.000000e+00 : f32
    %595 = vector.broadcast %cst_266 : f32 to vector<8x256xf32>
    %596 = arith.addf %595, %594 : vector<8x256xf32>
    %cst_267 = arith.constant 1.000000e+00 : f32
    %597 = vector.broadcast %cst_267 : f32 to vector<8x256xf32>
    %598 = arith.divf %597, %596 : vector<8x256xf32>
    %cst_268 = arith.constant 1.06140542 : f32
    %599 = vector.broadcast %cst_268 : f32 to vector<8x256xf32>
    %600 = arith.mulf %599, %598 : vector<8x256xf32>
    %cst_269 = arith.constant -1.45315206 : f32
    %601 = vector.broadcast %cst_269 : f32 to vector<8x256xf32>
    %602 = arith.addf %600, %601 : vector<8x256xf32>
    %603 = arith.mulf %602, %598 : vector<8x256xf32>
    %cst_270 = arith.constant 1.42141378 : f32
    %604 = vector.broadcast %cst_270 : f32 to vector<8x256xf32>
    %605 = arith.addf %603, %604 : vector<8x256xf32>
    %606 = arith.mulf %605, %598 : vector<8x256xf32>
    %cst_271 = arith.constant -0.284496725 : f32
    %607 = vector.broadcast %cst_271 : f32 to vector<8x256xf32>
    %608 = arith.addf %606, %607 : vector<8x256xf32>
    %609 = arith.mulf %608, %598 : vector<8x256xf32>
    %cst_272 = arith.constant 0.254829586 : f32
    %610 = vector.broadcast %cst_272 : f32 to vector<8x256xf32>
    %611 = arith.addf %609, %610 : vector<8x256xf32>
    %612 = arith.mulf %611, %598 : vector<8x256xf32>
    %cst_273 = arith.constant 0.000000e+00 : f32
    %613 = vector.broadcast %cst_273 : f32 to vector<8x256xf32>
    %614 = arith.subf %613, %592 : vector<8x256xf32>
    %615 = arith.mulf %614, %592 : vector<8x256xf32>
    %616 = math.exp %615 : vector<8x256xf32>
    %617 = arith.mulf %612, %616 : vector<8x256xf32>
    %cst_274 = arith.constant 1.000000e+00 : f32
    %618 = vector.broadcast %cst_274 : f32 to vector<8x256xf32>
    %619 = arith.subf %618, %617 : vector<8x256xf32>
    %620 = arith.mulf %591, %619 : vector<8x256xf32>
    %cst_275 = arith.constant 1.000000e+00 : f32
    %621 = vector.broadcast %cst_275 : f32 to vector<8x256xf32>
    %622 = arith.addf %621, %620 : vector<8x256xf32>
    %623 = arith.mulf %584, %622 : vector<8x256xf32>
    %cst_276 = arith.constant dense<0.000000e+00> : vector<8x64xf32>
    %624 = tpu.matmul %623, %453, %cst_276 {dimension_numbers = #tpu.dot_dimension_numbers<[1], [0], [0], [1], [0, 0, 1, 1], [], []>} : vector<8x256xf32>, vector<256x64xf32>, vector<8x64xf32> -> vector<8x64xf32>
    %625 = vector.broadcast %455 : vector<1x64xf32> to vector<8x64xf32>
    %626 = arith.addf %624, %625 : vector<8x64xf32>
    %627 = arith.addf %559, %626 : vector<8x64xf32>
    %c1_277 = arith.constant 1 : index
    %c0_278 = arith.constant 0 : index
    %c0_279 = arith.constant 0 : index
    %628 = vector.load %arg21[%c1_277, %c0_278, %c0_279] : memref<2x1x64xf32, #tpu.memory_space<vmem>>, vector<1x1x64xf32>
    %629 = vector.shape_cast %628 : vector<1x1x64xf32> to vector<1x64xf32>
    %c1_280 = arith.constant 1 : index
    %c0_281 = arith.constant 0 : index
    %c0_282 = arith.constant 0 : index
    %630 = vector.load %arg22[%c1_280, %c0_281, %c0_282] : memref<2x1x64xf32, #tpu.memory_space<vmem>>, vector<1x1x64xf32>
    %631 = vector.shape_cast %630 : vector<1x1x64xf32> to vector<1x64xf32>
    %c1_283 = arith.constant 1 : index
    %c0_284 = arith.constant 0 : index
    %c0_285 = arith.constant 0 : index
    %632 = vector.load %arg23[%c1_283, %c0_284, %c0_285] : memref<2x64x192xf32, #tpu.memory_space<vmem>>, vector<1x64x192xf32>
    %633 = vector.shape_cast %632 : vector<1x64x192xf32> to vector<64x192xf32>
    %c1_286 = arith.constant 1 : index
    %c0_287 = arith.constant 0 : index
    %c0_288 = arith.constant 0 : index
    %634 = vector.load %arg24[%c1_286, %c0_287, %c0_288] : memref<2x1x192xf32, #tpu.memory_space<vmem>>, vector<1x1x192xf32>
    %635 = vector.shape_cast %634 : vector<1x1x192xf32> to vector<1x192xf32>
    %c1_289 = arith.constant 1 : index
    %c0_290 = arith.constant 0 : index
    %c0_291 = arith.constant 0 : index
    %636 = vector.load %arg25[%c1_289, %c0_290, %c0_291] : memref<2x64x64xf32, #tpu.memory_space<vmem>>, vector<1x64x64xf32>
    %637 = vector.shape_cast %636 : vector<1x64x64xf32> to vector<64x64xf32>
    %c1_292 = arith.constant 1 : index
    %c0_293 = arith.constant 0 : index
    %c0_294 = arith.constant 0 : index
    %638 = vector.load %arg26[%c1_292, %c0_293, %c0_294] : memref<2x1x64xf32, #tpu.memory_space<vmem>>, vector<1x1x64xf32>
    %639 = vector.shape_cast %638 : vector<1x1x64xf32> to vector<1x64xf32>
    %c1_295 = arith.constant 1 : index
    %c0_296 = arith.constant 0 : index
    %c0_297 = arith.constant 0 : index
    %640 = vector.load %arg27[%c1_295, %c0_296, %c0_297] : memref<2x1x64xf32, #tpu.memory_space<vmem>>, vector<1x1x64xf32>
    %641 = vector.shape_cast %640 : vector<1x1x64xf32> to vector<1x64xf32>
    %c1_298 = arith.constant 1 : index
    %c0_299 = arith.constant 0 : index
    %c0_300 = arith.constant 0 : index
    %642 = vector.load %arg28[%c1_298, %c0_299, %c0_300] : memref<2x1x64xf32, #tpu.memory_space<vmem>>, vector<1x1x64xf32>
    %643 = vector.shape_cast %642 : vector<1x1x64xf32> to vector<1x64xf32>
    %c1_301 = arith.constant 1 : index
    %c0_302 = arith.constant 0 : index
    %c0_303 = arith.constant 0 : index
    %644 = vector.load %arg29[%c1_301, %c0_302, %c0_303] : memref<2x64x256xf32, #tpu.memory_space<vmem>>, vector<1x64x256xf32>
    %645 = vector.shape_cast %644 : vector<1x64x256xf32> to vector<64x256xf32>
    %c1_304 = arith.constant 1 : index
    %c0_305 = arith.constant 0 : index
    %c0_306 = arith.constant 0 : index
    %646 = vector.load %arg30[%c1_304, %c0_305, %c0_306] : memref<2x1x256xf32, #tpu.memory_space<vmem>>, vector<1x1x256xf32>
    %647 = vector.shape_cast %646 : vector<1x1x256xf32> to vector<1x256xf32>
    %c1_307 = arith.constant 1 : index
    %c0_308 = arith.constant 0 : index
    %c0_309 = arith.constant 0 : index
    %648 = vector.load %arg31[%c1_307, %c0_308, %c0_309] : memref<2x256x64xf32, #tpu.memory_space<vmem>>, vector<1x256x64xf32>
    %649 = vector.shape_cast %648 : vector<1x256x64xf32> to vector<256x64xf32>
    %c1_310 = arith.constant 1 : index
    %c0_311 = arith.constant 0 : index
    %c0_312 = arith.constant 0 : index
    %650 = vector.load %arg32[%c1_310, %c0_311, %c0_312] : memref<2x1x64xf32, #tpu.memory_space<vmem>>, vector<1x1x64xf32>
    %651 = vector.shape_cast %650 : vector<1x1x64xf32> to vector<1x64xf32>
    %cst_313 = arith.constant dense<0.000000e+00> : vector<8xf32>
    %652 = vector.multi_reduction <add>, %627, %cst_313 [1] : vector<8x64xf32> to vector<8xf32>
    %653 = vector.shape_cast %652 : vector<8xf32> to vector<8x1xf32>
    %cst_314 = arith.constant 6.400000e+01 : f32
    %654 = vector.broadcast %cst_314 : f32 to vector<8x1xf32>
    %655 = arith.divf %653, %654 : vector<8x1xf32>
    %656 = vector.broadcast %655 : vector<8x1xf32> to vector<8x64xf32>
    %657 = arith.subf %627, %656 : vector<8x64xf32>
    %658 = arith.mulf %657, %657 : vector<8x64xf32>
    %cst_315 = arith.constant dense<0.000000e+00> : vector<8xf32>
    %659 = vector.multi_reduction <add>, %658, %cst_315 [1] : vector<8x64xf32> to vector<8xf32>
    %660 = vector.shape_cast %659 : vector<8xf32> to vector<8x1xf32>
    %cst_316 = arith.constant 6.400000e+01 : f32
    %661 = vector.broadcast %cst_316 : f32 to vector<8x1xf32>
    %662 = arith.divf %660, %661 : vector<8x1xf32>
    %cst_317 = arith.constant 9.99999974E-6 : f32
    %663 = vector.broadcast %cst_317 : f32 to vector<8x1xf32>
    %664 = arith.addf %662, %663 : vector<8x1xf32>
    %665 = math.rsqrt %664 : vector<8x1xf32>
    %666 = vector.broadcast %665 : vector<8x1xf32> to vector<8x64xf32>
    %667 = arith.mulf %657, %666 : vector<8x64xf32>
    %668 = vector.broadcast %629 : vector<1x64xf32> to vector<8x64xf32>
    %669 = arith.mulf %667, %668 : vector<8x64xf32>
    %670 = vector.broadcast %631 : vector<1x64xf32> to vector<8x64xf32>
    %671 = arith.addf %669, %670 : vector<8x64xf32>
    %cst_318 = arith.constant dense<0.000000e+00> : vector<8x192xf32>
    %672 = tpu.matmul %671, %633, %cst_318 {dimension_numbers = #tpu.dot_dimension_numbers<[1], [0], [0], [1], [0, 0, 1, 1], [], []>} : vector<8x64xf32>, vector<64x192xf32>, vector<8x192xf32> -> vector<8x192xf32>
    %673 = vector.broadcast %635 : vector<1x192xf32> to vector<8x192xf32>
    %674 = arith.addf %672, %673 : vector<8x192xf32>
    %675 = vector.extract_strided_slice %674 {offsets = [0, 0], sizes = [8, 64], strides = [1, 1]} : vector<8x192xf32> to vector<8x64xf32>
    %676 = vector.extract_strided_slice %674 {offsets = [0, 64], sizes = [8, 64], strides = [1, 1]} : vector<8x192xf32> to vector<8x64xf32>
    %677 = vector.extract_strided_slice %674 {offsets = [0, 128], sizes = [8, 64], strides = [1, 1]} : vector<8x192xf32> to vector<8x64xf32>
    %678 = vector.extract_strided_slice %675 {offsets = [0, 0], sizes = [8, 16], strides = [1, 1]} : vector<8x64xf32> to vector<8x16xf32>
    %679 = vector.extract_strided_slice %676 {offsets = [0, 0], sizes = [8, 16], strides = [1, 1]} : vector<8x64xf32> to vector<8x16xf32>
    %680 = vector.extract_strided_slice %677 {offsets = [0, 0], sizes = [8, 16], strides = [1, 1]} : vector<8x64xf32> to vector<8x16xf32>
    %cst_319 = arith.constant dense<0.000000e+00> : vector<8x8xf32>
    %681 = tpu.matmul %678, %679, %cst_319 {dimension_numbers = #tpu.dot_dimension_numbers<[1], [1], [0], [0], [0, 0, 1, 0], [], []>} : vector<8x16xf32>, vector<8x16xf32>, vector<8x8xf32> -> vector<8x8xf32>
    %682 = arith.addf %681, %5 : vector<8x8xf32>
    %cst_320 = arith.constant dense<0xFF800000> : vector<8xf32>
    %683 = vector.multi_reduction <maximumf>, %682, %cst_320 [1] : vector<8x8xf32> to vector<8xf32>
    %684 = vector.shape_cast %683 : vector<8xf32> to vector<8x1xf32>
    %685 = vector.broadcast %684 : vector<8x1xf32> to vector<8x8xf32>
    %686 = arith.subf %682, %685 : vector<8x8xf32>
    %687 = math.exp %686 : vector<8x8xf32>
    %cst_321 = arith.constant dense<0.000000e+00> : vector<8xf32>
    %688 = vector.multi_reduction <add>, %687, %cst_321 [1] : vector<8x8xf32> to vector<8xf32>
    %689 = vector.shape_cast %688 : vector<8xf32> to vector<8x1xf32>
    %690 = tpu.reciprocal %689 {approx = true} : vector<8x1xf32> -> vector<8x1xf32>
    %691 = vector.broadcast %690 : vector<8x1xf32> to vector<8x8xf32>
    %692 = arith.mulf %687, %691 : vector<8x8xf32>
    %cst_322 = arith.constant dense<0.000000e+00> : vector<8x16xf32>
    %693 = tpu.matmul %692, %680, %cst_322 {dimension_numbers = #tpu.dot_dimension_numbers<[1], [0], [0], [1], [0, 0, 1, 1], [], []>} : vector<8x8xf32>, vector<8x16xf32>, vector<8x16xf32> -> vector<8x16xf32>
    %694 = vector.extract_strided_slice %637 {offsets = [0, 0], sizes = [16, 64], strides = [1, 1]} : vector<64x64xf32> to vector<16x64xf32>
    %cst_323 = arith.constant dense<0.000000e+00> : vector<8x64xf32>
    %695 = tpu.matmul %693, %694, %cst_323 {dimension_numbers = #tpu.dot_dimension_numbers<[1], [0], [0], [1], [0, 0, 1, 1], [], []>} : vector<8x16xf32>, vector<16x64xf32>, vector<8x64xf32> -> vector<8x64xf32>
    %696 = vector.extract_strided_slice %675 {offsets = [0, 16], sizes = [8, 16], strides = [1, 1]} : vector<8x64xf32> to vector<8x16xf32>
    %697 = vector.extract_strided_slice %676 {offsets = [0, 16], sizes = [8, 16], strides = [1, 1]} : vector<8x64xf32> to vector<8x16xf32>
    %698 = vector.extract_strided_slice %677 {offsets = [0, 16], sizes = [8, 16], strides = [1, 1]} : vector<8x64xf32> to vector<8x16xf32>
    %cst_324 = arith.constant dense<0.000000e+00> : vector<8x8xf32>
    %699 = tpu.matmul %696, %697, %cst_324 {dimension_numbers = #tpu.dot_dimension_numbers<[1], [1], [0], [0], [0, 0, 1, 0], [], []>} : vector<8x16xf32>, vector<8x16xf32>, vector<8x8xf32> -> vector<8x8xf32>
    %700 = arith.addf %699, %5 : vector<8x8xf32>
    %cst_325 = arith.constant dense<0xFF800000> : vector<8xf32>
    %701 = vector.multi_reduction <maximumf>, %700, %cst_325 [1] : vector<8x8xf32> to vector<8xf32>
    %702 = vector.shape_cast %701 : vector<8xf32> to vector<8x1xf32>
    %703 = vector.broadcast %702 : vector<8x1xf32> to vector<8x8xf32>
    %704 = arith.subf %700, %703 : vector<8x8xf32>
    %705 = math.exp %704 : vector<8x8xf32>
    %cst_326 = arith.constant dense<0.000000e+00> : vector<8xf32>
    %706 = vector.multi_reduction <add>, %705, %cst_326 [1] : vector<8x8xf32> to vector<8xf32>
    %707 = vector.shape_cast %706 : vector<8xf32> to vector<8x1xf32>
    %708 = tpu.reciprocal %707 {approx = true} : vector<8x1xf32> -> vector<8x1xf32>
    %709 = vector.broadcast %708 : vector<8x1xf32> to vector<8x8xf32>
    %710 = arith.mulf %705, %709 : vector<8x8xf32>
    %cst_327 = arith.constant dense<0.000000e+00> : vector<8x16xf32>
    %711 = tpu.matmul %710, %698, %cst_327 {dimension_numbers = #tpu.dot_dimension_numbers<[1], [0], [0], [1], [0, 0, 1, 1], [], []>} : vector<8x8xf32>, vector<8x16xf32>, vector<8x16xf32> -> vector<8x16xf32>
    %712 = vector.extract_strided_slice %637 {offsets = [16, 0], sizes = [16, 64], strides = [1, 1]} : vector<64x64xf32> to vector<16x64xf32>
    %cst_328 = arith.constant dense<0.000000e+00> : vector<8x64xf32>
    %713 = tpu.matmul %711, %712, %cst_328 {dimension_numbers = #tpu.dot_dimension_numbers<[1], [0], [0], [1], [0, 0, 1, 1], [], []>} : vector<8x16xf32>, vector<16x64xf32>, vector<8x64xf32> -> vector<8x64xf32>
    %714 = arith.addf %695, %713 : vector<8x64xf32>
    %715 = vector.extract_strided_slice %675 {offsets = [0, 32], sizes = [8, 16], strides = [1, 1]} : vector<8x64xf32> to vector<8x16xf32>
    %716 = vector.extract_strided_slice %676 {offsets = [0, 32], sizes = [8, 16], strides = [1, 1]} : vector<8x64xf32> to vector<8x16xf32>
    %717 = vector.extract_strided_slice %677 {offsets = [0, 32], sizes = [8, 16], strides = [1, 1]} : vector<8x64xf32> to vector<8x16xf32>
    %cst_329 = arith.constant dense<0.000000e+00> : vector<8x8xf32>
    %718 = tpu.matmul %715, %716, %cst_329 {dimension_numbers = #tpu.dot_dimension_numbers<[1], [1], [0], [0], [0, 0, 1, 0], [], []>} : vector<8x16xf32>, vector<8x16xf32>, vector<8x8xf32> -> vector<8x8xf32>
    %719 = arith.addf %718, %5 : vector<8x8xf32>
    %cst_330 = arith.constant dense<0xFF800000> : vector<8xf32>
    %720 = vector.multi_reduction <maximumf>, %719, %cst_330 [1] : vector<8x8xf32> to vector<8xf32>
    %721 = vector.shape_cast %720 : vector<8xf32> to vector<8x1xf32>
    %722 = vector.broadcast %721 : vector<8x1xf32> to vector<8x8xf32>
    %723 = arith.subf %719, %722 : vector<8x8xf32>
    %724 = math.exp %723 : vector<8x8xf32>
    %cst_331 = arith.constant dense<0.000000e+00> : vector<8xf32>
    %725 = vector.multi_reduction <add>, %724, %cst_331 [1] : vector<8x8xf32> to vector<8xf32>
    %726 = vector.shape_cast %725 : vector<8xf32> to vector<8x1xf32>
    %727 = tpu.reciprocal %726 {approx = true} : vector<8x1xf32> -> vector<8x1xf32>
    %728 = vector.broadcast %727 : vector<8x1xf32> to vector<8x8xf32>
    %729 = arith.mulf %724, %728 : vector<8x8xf32>
    %cst_332 = arith.constant dense<0.000000e+00> : vector<8x16xf32>
    %730 = tpu.matmul %729, %717, %cst_332 {dimension_numbers = #tpu.dot_dimension_numbers<[1], [0], [0], [1], [0, 0, 1, 1], [], []>} : vector<8x8xf32>, vector<8x16xf32>, vector<8x16xf32> -> vector<8x16xf32>
    %731 = vector.extract_strided_slice %637 {offsets = [32, 0], sizes = [16, 64], strides = [1, 1]} : vector<64x64xf32> to vector<16x64xf32>
    %cst_333 = arith.constant dense<0.000000e+00> : vector<8x64xf32>
    %732 = tpu.matmul %730, %731, %cst_333 {dimension_numbers = #tpu.dot_dimension_numbers<[1], [0], [0], [1], [0, 0, 1, 1], [], []>} : vector<8x16xf32>, vector<16x64xf32>, vector<8x64xf32> -> vector<8x64xf32>
    %733 = arith.addf %714, %732 : vector<8x64xf32>
    %734 = vector.extract_strided_slice %675 {offsets = [0, 48], sizes = [8, 16], strides = [1, 1]} : vector<8x64xf32> to vector<8x16xf32>
    %735 = vector.extract_strided_slice %676 {offsets = [0, 48], sizes = [8, 16], strides = [1, 1]} : vector<8x64xf32> to vector<8x16xf32>
    %736 = vector.extract_strided_slice %677 {offsets = [0, 48], sizes = [8, 16], strides = [1, 1]} : vector<8x64xf32> to vector<8x16xf32>
    %cst_334 = arith.constant dense<0.000000e+00> : vector<8x8xf32>
    %737 = tpu.matmul %734, %735, %cst_334 {dimension_numbers = #tpu.dot_dimension_numbers<[1], [1], [0], [0], [0, 0, 1, 0], [], []>} : vector<8x16xf32>, vector<8x16xf32>, vector<8x8xf32> -> vector<8x8xf32>
    %738 = arith.addf %737, %5 : vector<8x8xf32>
    %cst_335 = arith.constant dense<0xFF800000> : vector<8xf32>
    %739 = vector.multi_reduction <maximumf>, %738, %cst_335 [1] : vector<8x8xf32> to vector<8xf32>
    %740 = vector.shape_cast %739 : vector<8xf32> to vector<8x1xf32>
    %741 = vector.broadcast %740 : vector<8x1xf32> to vector<8x8xf32>
    %742 = arith.subf %738, %741 : vector<8x8xf32>
    %743 = math.exp %742 : vector<8x8xf32>
    %cst_336 = arith.constant dense<0.000000e+00> : vector<8xf32>
    %744 = vector.multi_reduction <add>, %743, %cst_336 [1] : vector<8x8xf32> to vector<8xf32>
    %745 = vector.shape_cast %744 : vector<8xf32> to vector<8x1xf32>
    %746 = tpu.reciprocal %745 {approx = true} : vector<8x1xf32> -> vector<8x1xf32>
    %747 = vector.broadcast %746 : vector<8x1xf32> to vector<8x8xf32>
    %748 = arith.mulf %743, %747 : vector<8x8xf32>
    %cst_337 = arith.constant dense<0.000000e+00> : vector<8x16xf32>
    %749 = tpu.matmul %748, %736, %cst_337 {dimension_numbers = #tpu.dot_dimension_numbers<[1], [0], [0], [1], [0, 0, 1, 1], [], []>} : vector<8x8xf32>, vector<8x16xf32>, vector<8x16xf32> -> vector<8x16xf32>
    %750 = vector.extract_strided_slice %637 {offsets = [48, 0], sizes = [16, 64], strides = [1, 1]} : vector<64x64xf32> to vector<16x64xf32>
    %cst_338 = arith.constant dense<0.000000e+00> : vector<8x64xf32>
    %751 = tpu.matmul %749, %750, %cst_338 {dimension_numbers = #tpu.dot_dimension_numbers<[1], [0], [0], [1], [0, 0, 1, 1], [], []>} : vector<8x16xf32>, vector<16x64xf32>, vector<8x64xf32> -> vector<8x64xf32>
    %752 = arith.addf %733, %751 : vector<8x64xf32>
    %753 = arith.addf %627, %752 : vector<8x64xf32>
    %754 = vector.broadcast %639 : vector<1x64xf32> to vector<8x64xf32>
    %755 = arith.addf %753, %754 : vector<8x64xf32>
    %cst_339 = arith.constant dense<0.000000e+00> : vector<8xf32>
    %756 = vector.multi_reduction <add>, %755, %cst_339 [1] : vector<8x64xf32> to vector<8xf32>
    %757 = vector.shape_cast %756 : vector<8xf32> to vector<8x1xf32>
    %cst_340 = arith.constant 6.400000e+01 : f32
    %758 = vector.broadcast %cst_340 : f32 to vector<8x1xf32>
    %759 = arith.divf %757, %758 : vector<8x1xf32>
    %760 = vector.broadcast %759 : vector<8x1xf32> to vector<8x64xf32>
    %761 = arith.subf %755, %760 : vector<8x64xf32>
    %762 = arith.mulf %761, %761 : vector<8x64xf32>
    %cst_341 = arith.constant dense<0.000000e+00> : vector<8xf32>
    %763 = vector.multi_reduction <add>, %762, %cst_341 [1] : vector<8x64xf32> to vector<8xf32>
    %764 = vector.shape_cast %763 : vector<8xf32> to vector<8x1xf32>
    %cst_342 = arith.constant 6.400000e+01 : f32
    %765 = vector.broadcast %cst_342 : f32 to vector<8x1xf32>
    %766 = arith.divf %764, %765 : vector<8x1xf32>
    %cst_343 = arith.constant 9.99999974E-6 : f32
    %767 = vector.broadcast %cst_343 : f32 to vector<8x1xf32>
    %768 = arith.addf %766, %767 : vector<8x1xf32>
    %769 = math.rsqrt %768 : vector<8x1xf32>
    %770 = vector.broadcast %769 : vector<8x1xf32> to vector<8x64xf32>
    %771 = arith.mulf %761, %770 : vector<8x64xf32>
    %772 = vector.broadcast %641 : vector<1x64xf32> to vector<8x64xf32>
    %773 = arith.mulf %771, %772 : vector<8x64xf32>
    %774 = vector.broadcast %643 : vector<1x64xf32> to vector<8x64xf32>
    %775 = arith.addf %773, %774 : vector<8x64xf32>
    %cst_344 = arith.constant dense<0.000000e+00> : vector<8x256xf32>
    %776 = tpu.matmul %775, %645, %cst_344 {dimension_numbers = #tpu.dot_dimension_numbers<[1], [0], [0], [1], [0, 0, 1, 1], [], []>} : vector<8x64xf32>, vector<64x256xf32>, vector<8x256xf32> -> vector<8x256xf32>
    %777 = vector.broadcast %647 : vector<1x256xf32> to vector<8x256xf32>
    %778 = arith.addf %776, %777 : vector<8x256xf32>
    %cst_345 = arith.constant 5.000000e-01 : f32
    %779 = vector.broadcast %cst_345 : f32 to vector<8x256xf32>
    %780 = arith.mulf %779, %778 : vector<8x256xf32>
    %cst_346 = arith.constant 0.707106769 : f32
    %781 = vector.broadcast %cst_346 : f32 to vector<8x256xf32>
    %782 = arith.mulf %778, %781 : vector<8x256xf32>
    %cst_347 = arith.constant 0.000000e+00 : f32
    %783 = vector.broadcast %cst_347 : f32 to vector<8x256xf32>
    %784 = arith.cmpf oge, %782, %783 : vector<8x256xf32>
    %cst_348 = arith.constant 1.000000e+00 : f32
    %cst_349 = arith.constant -1.000000e+00 : f32
    %785 = vector.broadcast %cst_348 : f32 to vector<8x256xf32>
    %786 = vector.broadcast %cst_349 : f32 to vector<8x256xf32>
    %787 = arith.select %784, %785, %786 : vector<8x256xi1>, vector<8x256xf32>
    %788 = math.absf %782 : vector<8x256xf32>
    %cst_350 = arith.constant 0.327591091 : f32
    %789 = vector.broadcast %cst_350 : f32 to vector<8x256xf32>
    %790 = arith.mulf %789, %788 : vector<8x256xf32>
    %cst_351 = arith.constant 1.000000e+00 : f32
    %791 = vector.broadcast %cst_351 : f32 to vector<8x256xf32>
    %792 = arith.addf %791, %790 : vector<8x256xf32>
    %cst_352 = arith.constant 1.000000e+00 : f32
    %793 = vector.broadcast %cst_352 : f32 to vector<8x256xf32>
    %794 = arith.divf %793, %792 : vector<8x256xf32>
    %cst_353 = arith.constant 1.06140542 : f32
    %795 = vector.broadcast %cst_353 : f32 to vector<8x256xf32>
    %796 = arith.mulf %795, %794 : vector<8x256xf32>
    %cst_354 = arith.constant -1.45315206 : f32
    %797 = vector.broadcast %cst_354 : f32 to vector<8x256xf32>
    %798 = arith.addf %796, %797 : vector<8x256xf32>
    %799 = arith.mulf %798, %794 : vector<8x256xf32>
    %cst_355 = arith.constant 1.42141378 : f32
    %800 = vector.broadcast %cst_355 : f32 to vector<8x256xf32>
    %801 = arith.addf %799, %800 : vector<8x256xf32>
    %802 = arith.mulf %801, %794 : vector<8x256xf32>
    %cst_356 = arith.constant -0.284496725 : f32
    %803 = vector.broadcast %cst_356 : f32 to vector<8x256xf32>
    %804 = arith.addf %802, %803 : vector<8x256xf32>
    %805 = arith.mulf %804, %794 : vector<8x256xf32>
    %cst_357 = arith.constant 0.254829586 : f32
    %806 = vector.broadcast %cst_357 : f32 to vector<8x256xf32>
    %807 = arith.addf %805, %806 : vector<8x256xf32>
    %808 = arith.mulf %807, %794 : vector<8x256xf32>
    %cst_358 = arith.constant 0.000000e+00 : f32
    %809 = vector.broadcast %cst_358 : f32 to vector<8x256xf32>
    %810 = arith.subf %809, %788 : vector<8x256xf32>
    %811 = arith.mulf %810, %788 : vector<8x256xf32>
    %812 = math.exp %811 : vector<8x256xf32>
    %813 = arith.mulf %808, %812 : vector<8x256xf32>
    %cst_359 = arith.constant 1.000000e+00 : f32
    %814 = vector.broadcast %cst_359 : f32 to vector<8x256xf32>
    %815 = arith.subf %814, %813 : vector<8x256xf32>
    %816 = arith.mulf %787, %815 : vector<8x256xf32>
    %cst_360 = arith.constant 1.000000e+00 : f32
    %817 = vector.broadcast %cst_360 : f32 to vector<8x256xf32>
    %818 = arith.addf %817, %816 : vector<8x256xf32>
    %819 = arith.mulf %780, %818 : vector<8x256xf32>
    %cst_361 = arith.constant dense<0.000000e+00> : vector<8x64xf32>
    %820 = tpu.matmul %819, %649, %cst_361 {dimension_numbers = #tpu.dot_dimension_numbers<[1], [0], [0], [1], [0, 0, 1, 1], [], []>} : vector<8x256xf32>, vector<256x64xf32>, vector<8x64xf32> -> vector<8x64xf32>
    %821 = vector.broadcast %651 : vector<1x64xf32> to vector<8x64xf32>
    %822 = arith.addf %820, %821 : vector<8x64xf32>
    %823 = arith.addf %755, %822 : vector<8x64xf32>
    %c0_362 = arith.constant 0 : index
    %c0_363 = arith.constant 0 : index
    %824 = vector.load %arg33[%c0_362, %c0_363] : memref<1x64xf32, #tpu.memory_space<vmem>>, vector<1x64xf32>
    %c0_364 = arith.constant 0 : index
    %c0_365 = arith.constant 0 : index
    %825 = vector.load %arg34[%c0_364, %c0_365] : memref<1x64xf32, #tpu.memory_space<vmem>>, vector<1x64xf32>
    %cst_366 = arith.constant dense<0.000000e+00> : vector<8xf32>
    %826 = vector.multi_reduction <add>, %823, %cst_366 [1] : vector<8x64xf32> to vector<8xf32>
    %827 = vector.shape_cast %826 : vector<8xf32> to vector<8x1xf32>
    %cst_367 = arith.constant 6.400000e+01 : f32
    %828 = vector.broadcast %cst_367 : f32 to vector<8x1xf32>
    %829 = arith.divf %827, %828 : vector<8x1xf32>
    %830 = vector.broadcast %829 : vector<8x1xf32> to vector<8x64xf32>
    %831 = arith.subf %823, %830 : vector<8x64xf32>
    %832 = arith.mulf %831, %831 : vector<8x64xf32>
    %cst_368 = arith.constant dense<0.000000e+00> : vector<8xf32>
    %833 = vector.multi_reduction <add>, %832, %cst_368 [1] : vector<8x64xf32> to vector<8xf32>
    %834 = vector.shape_cast %833 : vector<8xf32> to vector<8x1xf32>
    %cst_369 = arith.constant 6.400000e+01 : f32
    %835 = vector.broadcast %cst_369 : f32 to vector<8x1xf32>
    %836 = arith.divf %834, %835 : vector<8x1xf32>
    %cst_370 = arith.constant 9.99999974E-6 : f32
    %837 = vector.broadcast %cst_370 : f32 to vector<8x1xf32>
    %838 = arith.addf %836, %837 : vector<8x1xf32>
    %839 = math.rsqrt %838 : vector<8x1xf32>
    %840 = vector.broadcast %839 : vector<8x1xf32> to vector<8x64xf32>
    %841 = arith.mulf %831, %840 : vector<8x64xf32>
    %842 = vector.broadcast %824 : vector<1x64xf32> to vector<8x64xf32>
    %843 = arith.mulf %841, %842 : vector<8x64xf32>
    %844 = vector.broadcast %825 : vector<1x64xf32> to vector<8x64xf32>
    %845 = arith.addf %843, %844 : vector<8x64xf32>
    %c0_371 = arith.constant 0 : index
    %c0_372 = arith.constant 0 : index
    %846 = vector.load %arg35[%c0_371, %c0_372] : memref<8x64xf32, #tpu.memory_space<vmem>>, vector<8x64xf32>
    tpu.vector_store %arg35[%c0_371, %c0_372], %845 {strides = array<i32>} : memref<8x64xf32, #tpu.memory_space<vmem>>, vector<8x64xf32>,
    return
  }
  func.func @transform_0(%arg0: i32) -> (i32, i32) {
    %c0_i32 = arith.constant 0 : i32
    %c0_i32_0 = arith.constant 0 : i32
    return %arg0, %c0_i32 : i32, i32
  }
  func.func @transform_1(%arg0: i32) -> (i32, i32) {
    %c0_i32 = arith.constant 0 : i32
    %c0_i32_0 = arith.constant 0 : i32
    %c0_i32_1 = arith.constant 0 : i32
    return %c0_i32, %c0_i32_0 : i32, i32
  }
  func.func @transform_2(%arg0: i32) -> (i32, i32) {
    %c0_i32 = arith.constant 0 : i32
    %c0_i32_0 = arith.constant 0 : i32
    %c0_i32_1 = arith.constant 0 : i32
    return %c0_i32, %c0_i32_0 : i32, i32
  }
  func.func @transform_3(%arg0: i32) -> (i32, i32, i32) {
    %c0_i32 = arith.constant 0 : i32
    %c0_i32_0 = arith.constant 0 : i32
    %c0_i32_1 = arith.constant 0 : i32
    %c0_i32_2 = arith.constant 0 : i32
    return %c0_i32, %c0_i32_0, %c0_i32_1 : i32, i32, i32
  }
  func.func @transform_4(%arg0: i32) -> (i32, i32, i32) {
    %c0_i32 = arith.constant 0 : i32
    %c0_i32_0 = arith.constant 0 : i32
    %c0_i32_1 = arith.constant 0 : i32
    %c0_i32_2 = arith.constant 0 : i32
    return %c0_i32, %c0_i32_0, %c0_i32_1 : i32, i32, i32
  }
  func.func @transform_5(%arg0: i32) -> (i32, i32, i32) {
    %c0_i32 = arith.constant 0 : i32
    %c0_i32_0 = arith.constant 0 : i32
    %c0_i32_1 = arith.constant 0 : i32
    %c0_i32_2 = arith.constant 0 : i32
    return %c0_i32, %c0_i32_0, %c0_i32_1 : i32, i32, i32
  }
  func.func @transform_6(%arg0: i32) -> (i32, i32, i32) {
    %c0_i32 = arith.constant 0 : i32
    %c0_i32_0 = arith.constant 0 : i32
    %c0_i32_1 = arith.constant 0 : i32
    %c0_i32_2 = arith.constant 0 : i32
    return %c0_i32, %c0_i32_0, %c0_i32_1 : i32, i32, i32
  }
  func.func @transform_7(%arg0: i32) -> (i32, i32, i32) {
    %c0_i32 = arith.constant 0 : i32
    %c0_i32_0 = arith.constant 0 : i32
    %c0_i32_1 = arith.constant 0 : i32
    %c0_i32_2 = arith.constant 0 : i32
    return %c0_i32, %c0_i32_0, %c0_i32_1 : i32, i32, i32
  }
  func.func @transform_8(%arg0: i32) -> (i32, i32, i32) {
    %c0_i32 = arith.constant 0 : i32
    %c0_i32_0 = arith.constant 0 : i32
    %c0_i32_1 = arith.constant 0 : i32
    %c0_i32_2 = arith.constant 0 : i32
    return %c0_i32, %c0_i32_0, %c0_i32_1 : i32, i32, i32
  }
  func.func @transform_9(%arg0: i32) -> (i32, i32, i32) {
    %c0_i32 = arith.constant 0 : i32
    %c0_i32_0 = arith.constant 0 : i32
    %c0_i32_1 = arith.constant 0 : i32
    %c0_i32_2 = arith.constant 0 : i32
    return %c0_i32, %c0_i32_0, %c0_i32_1 : i32, i32, i32
  }
  func.func @transform_10(%arg0: i32) -> (i32, i32, i32) {
    %c0_i32 = arith.constant 0 : i32
    %c0_i32_0 = arith.constant 0 : i32
    %c0_i32_1 = arith.constant 0 : i32
    %c0_i32_2 = arith.constant 0 : i32
    return %c0_i32, %c0_i32_0, %c0_i32_1 : i32, i32, i32
  }
  func.func @transform_11(%arg0: i32) -> (i32, i32, i32) {
    %c0_i32 = arith.constant 0 : i32
    %c0_i32_0 = arith.constant 0 : i32
    %c0_i32_1 = arith.constant 0 : i32
    %c0_i32_2 = arith.constant 0 : i32
    return %c0_i32, %c0_i32_0, %c0_i32_1 : i32, i32, i32
  }
  func.func @transform_12(%arg0: i32) -> (i32, i32, i32) {
    %c0_i32 = arith.constant 0 : i32
    %c0_i32_0 = arith.constant 0 : i32
    %c0_i32_1 = arith.constant 0 : i32
    %c0_i32_2 = arith.constant 0 : i32
    return %c0_i32, %c0_i32_0, %c0_i32_1 : i32, i32, i32
  }
  func.func @transform_13(%arg0: i32) -> (i32, i32, i32) {
    %c0_i32 = arith.constant 0 : i32
    %c0_i32_0 = arith.constant 0 : i32
    %c0_i32_1 = arith.constant 0 : i32
    %c0_i32_2 = arith.constant 0 : i32
    return %c0_i32, %c0_i32_0, %c0_i32_1 : i32, i32, i32
  }
  func.func @transform_14(%arg0: i32) -> (i32, i32, i32) {
    %c0_i32 = arith.constant 0 : i32
    %c0_i32_0 = arith.constant 0 : i32
    %c0_i32_1 = arith.constant 0 : i32
    %c0_i32_2 = arith.constant 0 : i32
    return %c0_i32, %c0_i32_0, %c0_i32_1 : i32, i32, i32
  }
  func.func @transform_15(%arg0: i32) -> (i32, i32) {
    %c0_i32 = arith.constant 0 : i32
    %c0_i32_0 = arith.constant 0 : i32
    %c0_i32_1 = arith.constant 0 : i32
    return %c0_i32, %c0_i32_0 : i32, i32
  }
  func.func @transform_16(%arg0: i32) -> (i32, i32) {
    %c0_i32 = arith.constant 0 : i32
    %c0_i32_0 = arith.constant 0 : i32
    %c0_i32_1 = arith.constant 0 : i32
    return %c0_i32, %c0_i32_0 : i32, i32
  }
  func.func @transform_17(%arg0: i32) -> (i32, i32) {
    %c0_i32 = arith.constant 0 : i32
    %c0_i32_0 = arith.constant 0 : i32
    %c0_i32_1 = arith.constant 0 : i32
    return %c0_i32, %c0_i32_0 : i32, i32
  }
  func.func @transform_18(%arg0: i32) -> (i32, i32) {
    %c0_i32 = arith.constant 0 : i32
    %c0_i32_0 = arith.constant 0 : i32
    %c0_i32_1 = arith.constant 0 : i32
    return %c0_i32, %c0_i32_0 : i32, i32
  }
  func.func @transform_19(%arg0: i32) -> (i32, i32) {
    %c0_i32 = arith.constant 0 : i32
    %c0_i32_0 = arith.constant 0 : i32
    %c0_i32_1 = arith.constant 0 : i32
    return %c0_i32, %c0_i32_0 : i32, i32
  }
  func.func @transform_20(%arg0: i32) -> (i32, i32, i32) {
    %c0_i32 = arith.constant 0 : i32
    %c0_i32_0 = arith.constant 0 : i32
    %c0_i32_1 = arith.constant 0 : i32
    %c0_i32_2 = arith.constant 0 : i32
    return %c0_i32, %c0_i32_0, %c0_i32_1 : i32, i32, i32
  }
  func.func @transform_21(%arg0: i32) -> (i32, i32, i32) {
    %c0_i32 = arith.constant 0 : i32
    %c0_i32_0 = arith.constant 0 : i32
    %c0_i32_1 = arith.constant 0 : i32
    %c0_i32_2 = arith.constant 0 : i32
    return %c0_i32, %c0_i32_0, %c0_i32_1 : i32, i32, i32
  }
  func.func @transform_22(%arg0: i32) -> (i32, i32, i32) {
    %c0_i32 = arith.constant 0 : i32
    %c0_i32_0 = arith.constant 0 : i32
    %c0_i32_1 = arith.constant 0 : i32
    %c0_i32_2 = arith.constant 0 : i32
    return %c0_i32, %c0_i32_0, %c0_i32_1 : i32, i32, i32
  }
  func.func @transform_23(%arg0: i32) -> (i32, i32, i32) {
    %c0_i32 = arith.constant 0 : i32
    %c0_i32_0 = arith.constant 0 : i32
    %c0_i32_1 = arith.constant 0 : i32
    %c0_i32_2 = arith.constant 0 : i32
    return %c0_i32, %c0_i32_0, %c0_i32_1 : i32, i32, i32
  }
  func.func @transform_24(%arg0: i32) -> (i32, i32, i32) {
    %c0_i32 = arith.constant 0 : i32
    %c0_i32_0 = arith.constant 0 : i32
    %c0_i32_1 = arith.constant 0 : i32
    %c0_i32_2 = arith.constant 0 : i32
    return %c0_i32, %c0_i32_0, %c0_i32_1 : i32, i32, i32
  }
  func.func @transform_25(%arg0: i32) -> (i32, i32, i32) {
    %c0_i32 = arith.constant 0 : i32
    %c0_i32_0 = arith.constant 0 : i32
    %c0_i32_1 = arith.constant 0 : i32
    %c0_i32_2 = arith.constant 0 : i32
    return %c0_i32, %c0_i32_0, %c0_i32_1 : i32, i32, i32
  }
  func.func @transform_26(%arg0: i32) -> (i32, i32, i32) {
    %c0_i32 = arith.constant 0 : i32
    %c0_i32_0 = arith.constant 0 : i32
    %c0_i32_1 = arith.constant 0 : i32
    %c0_i32_2 = arith.constant 0 : i32
    return %c0_i32, %c0_i32_0, %c0_i32_1 : i32, i32, i32
  }
  func.func @transform_27(%arg0: i32) -> (i32, i32, i32) {
    %c0_i32 = arith.constant 0 : i32
    %c0_i32_0 = arith.constant 0 : i32
    %c0_i32_1 = arith.constant 0 : i32
    %c0_i32_2 = arith.constant 0 : i32
    return %c0_i32, %c0_i32_0, %c0_i32_1 : i32, i32, i32
  }
  func.func @transform_28(%arg0: i32) -> (i32, i32, i32) {
    %c0_i32 = arith.constant 0 : i32
    %c0_i32_0 = arith.constant 0 : i32
    %c0_i32_1 = arith.constant 0 : i32
    %c0_i32_2 = arith.constant 0 : i32
    return %c0_i32, %c0_i32_0, %c0_i32_1 : i32, i32, i32
  }
  func.func @transform_29(%arg0: i32) -> (i32, i32, i32) {
    %c0_i32 = arith.constant 0 : i32
    %c0_i32_0 = arith.constant 0 : i32
    %c0_i32_1 = arith.constant 0 : i32
    %c0_i32_2 = arith.constant 0 : i32
    return %c0_i32, %c0_i32_0, %c0_i32_1 : i32, i32, i32
  }
  func.func @transform_30(%arg0: i32) -> (i32, i32, i32) {
    %c0_i32 = arith.constant 0 : i32
    %c0_i32_0 = arith.constant 0 : i32
    %c0_i32_1 = arith.constant 0 : i32
    %c0_i32_2 = arith.constant 0 : i32
    return %c0_i32, %c0_i32_0, %c0_i32_1 : i32, i32, i32
  }
  func.func @transform_31(%arg0: i32) -> (i32, i32, i32) {
    %c0_i32 = arith.constant 0 : i32
    %c0_i32_0 = arith.constant 0 : i32
    %c0_i32_1 = arith.constant 0 : i32
    %c0_i32_2 = arith.constant 0 : i32
    return %c0_i32, %c0_i32_0, %c0_i32_1 : i32, i32, i32
  }
  func.func @transform_32(%arg0: i32) -> (i32, i32) {
    %c0_i32 = arith.constant 0 : i32
    %c0_i32_0 = arith.constant 0 : i32
    %c0_i32_1 = arith.constant 0 : i32
    return %c0_i32, %c0_i32_0 : i32, i32
  }
  func.func @transform_33(%arg0: i32) -> (i32, i32) {
    %c0_i32 = arith.constant 0 : i32
    %c0_i32_0 = arith.constant 0 : i32
    %c0_i32_1 = arith.constant 0 : i32
    return %c0_i32, %c0_i32_0 : i32, i32
  }
  func.func @transform_34(%arg0: i32) -> (i32, i32) {
    %c0_i32 = arith.constant 0 : i32
    %c0_i32_0 = arith.constant 0 : i32
    return %arg0, %c0_i32 : i32, i32
  }
}

</mosaic_0001>

<llo_original>
// kernel: _lambda_.1
$region0: #{_lambda_.1}
  #allocation0 [shape = 'u32[]', space=smem, size = 0x4, offset = 0x4, fixed_abs, tag = 'smem constant byte address 0x4 - core index']
  #allocation1 [shape = 'u32[72,128]{1,0:T(1,128)}', space=vmem, size = 0x9000, scoped, tag = 'internal scratch']
  %s0 = inlined_call_operand.smem [shape: u32[35], index: -1, kind: input, shape index: {}]
  %s1 = sld [smem:[%s0]]
  %s2 = scalar_lea.smem %s0, 1
  %s3 = sld [smem:[%s2]]
  %s4 = scalar_lea.smem %s0, 2
  %s5 = sld [smem:[%s4]]
  %s6 = scalar_lea.smem %s0, 3
  %s7 = sld [smem:[%s6]]
  %s8 = scalar_lea.smem %s0, 4
  %s9 = sld [smem:[%s8]]
  %s10 = scalar_lea.smem %s0, 5
  %s11 = sld [smem:[%s10]]
  %s12 = scalar_lea.smem %s0, 6
  %s13 = sld [smem:[%s12]]
  %s14 = scalar_lea.smem %s0, 7
  %s15 = sld [smem:[%s14]]
  %s16 = scalar_lea.smem %s0, 8
  %s17 = sld [smem:[%s16]]
  %s18 = scalar_lea.smem %s0, 9
  %s19 = sld [smem:[%s18]]
  %s20 = scalar_lea.smem %s0, 10
  %s21 = sld [smem:[%s20]]
  %s22 = scalar_lea.smem %s0, 11
  %s23 = sld [smem:[%s22]]
  %s24 = scalar_lea.smem %s0, 12
  %s25 = sld [smem:[%s24]]
  %s26 = scalar_lea.smem %s0, 13
  %s27 = sld [smem:[%s26]]
  %s28 = scalar_lea.smem %s0, 14
  %s29 = sld [smem:[%s28]]
  %s30 = scalar_lea.smem %s0, 15
  %s31 = sld [smem:[%s30]]
  %s32 = scalar_lea.smem %s0, 16
  %s33 = sld [smem:[%s32]]
  %s34 = scalar_lea.smem %s0, 17
  %s35 = sld [smem:[%s34]]
  %s36 = scalar_lea.smem %s0, 18
  %s37 = sld [smem:[%s36]]
  %s38 = scalar_lea.smem %s0, 19
  %s39 = sld [smem:[%s38]]
  %s40 = scalar_lea.smem %s0, 20
  %s41 = sld [smem:[%s40]]
  %s42 = scalar_lea.smem %s0, 21
  %s43 = sld [smem:[%s42]]
  %s44 = scalar_lea.smem %s0, 22
  %s45 = sld [smem:[%s44]]
  %s46 = scalar_lea.smem %s0, 23
  %s47 = sld [smem:[%s46]]
  %s48 = scalar_lea.smem %s0, 24
  %s49 = sld [smem:[%s48]]
  %s50 = scalar_lea.smem %s0, 25
  %s51 = sld [smem:[%s50]]
  %s52 = scalar_lea.smem %s0, 26
  %s53 = sld [smem:[%s52]]
  %s54 = scalar_lea.smem %s0, 27
  %s55 = sld [smem:[%s54]]
  %s56 = scalar_lea.smem %s0, 28
  %s57 = sld [smem:[%s56]]
  %s58 = scalar_lea.smem %s0, 29
  %s59 = sld [smem:[%s58]]
  %s60 = scalar_lea.smem %s0, 30
  %s61 = sld [smem:[%s60]]
  %s62 = scalar_lea.smem %s0, 31
  %s63 = sld [smem:[%s62]]
  %s64 = scalar_lea.smem %s0, 32
  %s65 = sld [smem:[%s64]]
  %s66 = scalar_lea.smem %s0, 33
  %s67 = sld [smem:[%s66]]
  %s68 = scalar_lea.smem %s0, 34
  %s69 = sld [smem:[%s68]]
  %s70 = sld [smem:[#allocation0]]
  $region169: #{_lambda_.1} parent=0
    _
  %s72 = ssub.s32 1, %s70
  %s73 = scalar_select 0, %s72, %s70
  loop: start=0, step=1, limit=4
  $region2: #{_lambda_.1} parent=0 // loop_pre_header
    _
  $region3: #{_lambda_.1} parent=0 // loop_header
    %s75 = sphi 0, %s79
    %p76 = scmp.ge.s32.totalorder %s75, 4
    %s85 = sphi 0, %s87
    %s88 = sphi 0, %s85
    %s89 = sphi 0, %s88
    %s105 = sphi 0, %s89
    %s109 = sphi 0, %s109
    %s111 = sphi 0, %s109
    %s112 = sphi 0, %s111
    %s126 = sphi 0, %s112
    %s130 = sphi 0, %s130
    %s132 = sphi 0, %s130
    %s133 = sphi 0, %s132
    %s147 = sphi 0, %s133
    %s151 = sphi 0, %s151
    %s153 = sphi 0, %s151
    %s154 = sphi 0, %s153
    %s168 = sphi 0, %s154
    %s172 = sphi 0, %s172
    %s174 = sphi 0, %s172
    %s175 = sphi 0, %s174
    %s189 = sphi 0, %s175
    %s193 = sphi 0, %s193
    %s195 = sphi 0, %s193
    %s196 = sphi 0, %s195
    %s210 = sphi 0, %s196
    %s214 = sphi 0, %s214
    %s216 = sphi 0, %s214
    %s217 = sphi 0, %s216
    %s231 = sphi 0, %s217
    %s235 = sphi 0, %s235
    %s237 = sphi 0, %s235
    %s238 = sphi 0, %s237
    %s252 = sphi 0, %s238
    %s256 = sphi 0, %s256
    %s258 = sphi 0, %s256
    %s259 = sphi 0, %s258
    %s273 = sphi 0, %s259
    %s277 = sphi 0, %s277
    %s279 = sphi 0, %s277
    %s280 = sphi 0, %s279
    %s294 = sphi 0, %s280
    %s298 = sphi 0, %s298
    %s300 = sphi 0, %s298
    %s301 = sphi 0, %s300
    %s315 = sphi 0, %s301
    %s319 = sphi 0, %s319
    %s321 = sphi 0, %s319
    %s322 = sphi 0, %s321
    %s336 = sphi 0, %s322
    %s340 = sphi 0, %s340
    %s342 = sphi 0, %s340
    %s343 = sphi 0, %s342
    %s357 = sphi 0, %s343
    %s361 = sphi 0, %s361
    %s363 = sphi 0, %s361
    %s364 = sphi 0, %s363
    %s378 = sphi 0, %s364
    %s382 = sphi 0, %s382
    %s384 = sphi 0, %s382
    %s385 = sphi 0, %s384
    %s399 = sphi 0, %s385
    %s403 = sphi 0, %s403
    %s405 = sphi 0, %s403
    %s406 = sphi 0, %s405
    %s420 = sphi 0, %s406
    %s424 = sphi 0, %s424
    %s426 = sphi 0, %s424
    %s427 = sphi 0, %s426
    %s441 = sphi 0, %s427
    %s445 = sphi 0, %s445
    %s447 = sphi 0, %s445
    %s448 = sphi 0, %s447
    %s462 = sphi 0, %s448
    %s466 = sphi 0, %s466
    %s468 = sphi 0, %s466
    %s469 = sphi 0, %s468
    %s483 = sphi 0, %s469
    %s487 = sphi 0, %s487
    %s489 = sphi 0, %s487
    %s490 = sphi 0, %s489
    %s504 = sphi 0, %s490
    %s508 = sphi 0, %s508
    %s510 = sphi 0, %s508
    %s511 = sphi 0, %s510
    %s525 = sphi 0, %s511
    %s529 = sphi 0, %s529
    %s531 = sphi 0, %s529
    %s532 = sphi 0, %s531
    %s546 = sphi 0, %s532
    %s550 = sphi 0, %s550
    %s552 = sphi 0, %s550
    %s553 = sphi 0, %s552
    %s567 = sphi 0, %s553
    %s571 = sphi 0, %s571
    %s573 = sphi 0, %s571
    %s574 = sphi 0, %s573
    %s588 = sphi 0, %s574
    %s592 = sphi 0, %s592
    %s594 = sphi 0, %s592
    %s595 = sphi 0, %s594
    %s609 = sphi 0, %s595
    %s613 = sphi 0, %s613
    %s615 = sphi 0, %s613
    %s616 = sphi 0, %s615
    %s630 = sphi 0, %s616
    %s634 = sphi 0, %s634
    %s636 = sphi 0, %s634
    %s637 = sphi 0, %s636
    %s651 = sphi 0, %s637
    %s655 = sphi 0, %s655
    %s657 = sphi 0, %s655
    %s658 = sphi 0, %s657
    %s672 = sphi 0, %s658
    %s676 = sphi 0, %s676
    %s678 = sphi 0, %s676
    %s679 = sphi 0, %s678
    %s693 = sphi 0, %s679
    %s697 = sphi 0, %s697
    %s699 = sphi 0, %s697
    %s700 = sphi 0, %s699
    %s714 = sphi 0, %s700
    %s718 = sphi 0, %s718
    %s720 = sphi 0, %s718
    %s721 = sphi 0, %s720
    %s735 = sphi 0, %s721
    %s739 = sphi 0, %s739
    %s741 = sphi 0, %s739
    %s742 = sphi 0, %s741
    %s756 = sphi 0, %s742
    %s760 = sphi 0, %s760
    %s762 = sphi 0, %s760
    %s763 = sphi 0, %s762
    %s777 = sphi 0, %s763
    %s781 = sphi 0, %s781
    %s783 = sphi 0, %s781
    %s784 = sphi 0, %s783
    %s798 = sphi 0, %s784
    %s804 = sphi 0, %s806
    %s807 = sphi 0, %s804
    %s808 = sphi 0, %s807
    %s824 = sphi 0, %s808
  $region4: #{_lambda_.1} parent=0 // loop_header_branch
    %78 = sbr.rel (%p76) target = $region8
  $region5: #{_lambda_.1} parent=0 // loop_body
    %s80 = ssub.s32 %s75, 1
    %s81 = ssub.s32 %s75, 2
    %s82 = sadd.s32 %s75, 1
    %s83 = ssub.s32 %s75, %s82
    %p84 = scmp.eq.s32.totalorder %s83, 0
    %s86 = sadd.s32 %s85, 1
    %s87 = scalar_select %p84, %s85, %s86
    %p90 = pneg %p84
    %p91 = scmp.eq.s32.totalorder %s75, 1
    %p92 = por %p90, %p91
    %p93 = scmp.ne.s32.totalorder %s85, %s88
    %p94 = scmp.eq.s32.totalorder %s75, 0
    %p95 = por %p93, %p94
    %p96 = scmp.ne.s32.totalorder %s85, %s88
    %p97 = scmp.eq.s32.totalorder %s80, 1
    %p98 = por %p96, %p97
    %p99 = scmp.ne.s32.totalorder %s88, %s89
    %p100 = scmp.eq.s32.totalorder %s80, 0
    %p101 = por %p99, %p100
    %p102 = scmp.ne.s32.totalorder %s88, %s89
    %p103 = scmp.eq.s32.totalorder %s81, 1
    %p104 = por %p102, %p103
    %p106 = scmp.ne.s32.totalorder %s89, %s105
    %p107 = scmp.eq.s32.totalorder %s81, 0
    %p108 = por %p106, %p107
    %s110 = sadd.s32 %s109, 1
    %p113 = scmp.eq.s32.totalorder %s75, 1
    %p114 = scmp.ne.s32.totalorder %s109, %s111
    %p115 = scmp.eq.s32.totalorder %s75, 0
    %p116 = por %p114, %p115
    %p117 = scmp.ne.s32.totalorder %s109, %s111
    %p118 = scmp.eq.s32.totalorder %s80, 1
    %p119 = por %p117, %p118
    %p120 = scmp.ne.s32.totalorder %s111, %s112
    %p121 = scmp.eq.s32.totalorder %s80, 0
    %p122 = por %p120, %p121
    %p123 = scmp.ne.s32.totalorder %s111, %s112
    %p124 = scmp.eq.s32.totalorder %s81, 1
    %p125 = por %p123, %p124
    %p127 = scmp.ne.s32.totalorder %s112, %s126
    %p128 = scmp.eq.s32.totalorder %s81, 0
    %p129 = por %p127, %p128
    %s131 = sadd.s32 %s130, 1
    %p134 = scmp.eq.s32.totalorder %s75, 1
    %p135 = scmp.ne.s32.totalorder %s130, %s132
    %p136 = scmp.eq.s32.totalorder %s75, 0
    %p137 = por %p135, %p136
    %p138 = scmp.ne.s32.totalorder %s130, %s132
    %p139 = scmp.eq.s32.totalorder %s80, 1
    %p140 = por %p138, %p139
    %p141 = scmp.ne.s32.totalorder %s132, %s133
    %p142 = scmp.eq.s32.totalorder %s80, 0
    %p143 = por %p141, %p142
    %p144 = scmp.ne.s32.totalorder %s132, %s133
    %p145 = scmp.eq.s32.totalorder %s81, 1
    %p146 = por %p144, %p145
    %p148 = scmp.ne.s32.totalorder %s133, %s147
    %p149 = scmp.eq.s32.totalorder %s81, 0
    %p150 = por %p148, %p149
    %s152 = sadd.s32 %s151, 1
    %p155 = scmp.eq.s32.totalorder %s75, 1
    %p156 = scmp.ne.s32.totalorder %s151, %s153
    %p157 = scmp.eq.s32.totalorder %s75, 0
    %p158 = por %p156, %p157
    %p159 = scmp.ne.s32.totalorder %s151, %s153
    %p160 = scmp.eq.s32.totalorder %s80, 1
    %p161 = por %p159, %p160
    %p162 = scmp.ne.s32.totalorder %s153, %s154
    %p163 = scmp.eq.s32.totalorder %s80, 0
    %p164 = por %p162, %p163
    %p165 = scmp.ne.s32.totalorder %s153, %s154
    %p166 = scmp.eq.s32.totalorder %s81, 1
    %p167 = por %p165, %p166
    %p169 = scmp.ne.s32.totalorder %s154, %s168
    %p170 = scmp.eq.s32.totalorder %s81, 0
    %p171 = por %p169, %p170
    %s173 = sadd.s32 %s172, 1
    %p176 = scmp.eq.s32.totalorder %s75, 1
    %p177 = scmp.ne.s32.totalorder %s172, %s174
    %p178 = scmp.eq.s32.totalorder %s75, 0
    %p179 = por %p177, %p178
    %p180 = scmp.ne.s32.totalorder %s172, %s174
    %p181 = scmp.eq.s32.totalorder %s80, 1
    %p182 = por %p180, %p181
    %p183 = scmp.ne.s32.totalorder %s174, %s175
    %p184 = scmp.eq.s32.totalorder %s80, 0
    %p185 = por %p183, %p184
    %p186 = scmp.ne.s32.totalorder %s174, %s175
    %p187 = scmp.eq.s32.totalorder %s81, 1
    %p188 = por %p186, %p187
    %p190 = scmp.ne.s32.totalorder %s175, %s189
    %p191 = scmp.eq.s32.totalorder %s81, 0
    %p192 = por %p190, %p191
    %s194 = sadd.s32 %s193, 1
    %p197 = scmp.eq.s32.totalorder %s75, 1
    %p198 = scmp.ne.s32.totalorder %s193, %s195
    %p199 = scmp.eq.s32.totalorder %s75, 0
    %p200 = por %p198, %p199
    %p201 = scmp.ne.s32.totalorder %s193, %s195
    %p202 = scmp.eq.s32.totalorder %s80, 1
    %p203 = por %p201, %p202
    %p204 = scmp.ne.s32.totalorder %s195, %s196
    %p205 = scmp.eq.s32.totalorder %s80, 0
    %p206 = por %p204, %p205
    %p207 = scmp.ne.s32.totalorder %s195, %s196
    %p208 = scmp.eq.s32.totalorder %s81, 1
    %p209 = por %p207, %p208
    %p211 = scmp.ne.s32.totalorder %s196, %s210
    %p212 = scmp.eq.s32.totalorder %s81, 0
    %p213 = por %p211, %p212
    %s215 = sadd.s32 %s214, 1
    %p218 = scmp.eq.s32.totalorder %s75, 1
    %p219 = scmp.ne.s32.totalorder %s214, %s216
    %p220 = scmp.eq.s32.totalorder %s75, 0
    %p221 = por %p219, %p220
    %p222 = scmp.ne.s32.totalorder %s214, %s216
    %p223 = scmp.eq.s32.totalorder %s80, 1
    %p224 = por %p222, %p223
    %p225 = scmp.ne.s32.totalorder %s216, %s217
    %p226 = scmp.eq.s32.totalorder %s80, 0
    %p227 = por %p225, %p226
    %p228 = scmp.ne.s32.totalorder %s216, %s217
    %p229 = scmp.eq.s32.totalorder %s81, 1
    %p230 = por %p228, %p229
    %p232 = scmp.ne.s32.totalorder %s217, %s231
    %p233 = scmp.eq.s32.totalorder %s81, 0
    %p234 = por %p232, %p233
    %s236 = sadd.s32 %s235, 1
    %p239 = scmp.eq.s32.totalorder %s75, 1
    %p240 = scmp.ne.s32.totalorder %s235, %s237
    %p241 = scmp.eq.s32.totalorder %s75, 0
    %p242 = por %p240, %p241
    %p243 = scmp.ne.s32.totalorder %s235, %s237
    %p244 = scmp.eq.s32.totalorder %s80, 1
    %p245 = por %p243, %p244
    %p246 = scmp.ne.s32.totalorder %s237, %s238
    %p247 = scmp.eq.s32.totalorder %s80, 0
    %p248 = por %p246, %p247
    %p249 = scmp.ne.s32.totalorder %s237, %s238
    %p250 = scmp.eq.s32.totalorder %s81, 1
    %p251 = por %p249, %p250
    %p253 = scmp.ne.s32.totalorder %s238, %s252
    %p254 = scmp.eq.s32.totalorder %s81, 0
    %p255 = por %p253, %p254
    %s257 = sadd.s32 %s256, 1
    %p260 = scmp.eq.s32.totalorder %s75, 1
    %p261 = scmp.ne.s32.totalorder %s256, %s258
    %p262 = scmp.eq.s32.totalorder %s75, 0
    %p263 = por %p261, %p262
    %p264 = scmp.ne.s32.totalorder %s256, %s258
    %p265 = scmp.eq.s32.totalorder %s80, 1
    %p266 = por %p264, %p265
    %p267 = scmp.ne.s32.totalorder %s258, %s259
    %p268 = scmp.eq.s32.totalorder %s80, 0
    %p269 = por %p267, %p268
    %p270 = scmp.ne.s32.totalorder %s258, %s259
    %p271 = scmp.eq.s32.totalorder %s81, 1
    %p272 = por %p270, %p271
    %p274 = scmp.ne.s32.totalorder %s259, %s273
    %p275 = scmp.eq.s32.totalorder %s81, 0
    %p276 = por %p274, %p275
    %s278 = sadd.s32 %s277, 1
    %p281 = scmp.eq.s32.totalorder %s75, 1
    %p282 = scmp.ne.s32.totalorder %s277, %s279
    %p283 = scmp.eq.s32.totalorder %s75, 0
    %p284 = por %p282, %p283
    %p285 = scmp.ne.s32.totalorder %s277, %s279
    %p286 = scmp.eq.s32.totalorder %s80, 1
    %p287 = por %p285, %p286
    %p288 = scmp.ne.s32.totalorder %s279, %s280
    %p289 = scmp.eq.s32.totalorder %s80, 0
    %p290 = por %p288, %p289
    %p291 = scmp.ne.s32.totalorder %s279, %s280
    %p292 = scmp.eq.s32.totalorder %s81, 1
    %p293 = por %p291, %p292
    %p295 = scmp.ne.s32.totalorder %s280, %s294
    %p296 = scmp.eq.s32.totalorder %s81, 0
    %p297 = por %p295, %p296
    %s299 = sadd.s32 %s298, 1
    %p302 = scmp.eq.s32.totalorder %s75, 1
    %p303 = scmp.ne.s32.totalorder %s298, %s300
    %p304 = scmp.eq.s32.totalorder %s75, 0
    %p305 = por %p303, %p304
    %p306 = scmp.ne.s32.totalorder %s298, %s300
    %p307 = scmp.eq.s32.totalorder %s80, 1
    %p308 = por %p306, %p307
    %p309 = scmp.ne.s32.totalorder %s300, %s301
    %p310 = scmp.eq.s32.totalorder %s80, 0
    %p311 = por %p309, %p310
    %p312 = scmp.ne.s32.totalorder %s300, %s301
    %p313 = scmp.eq.s32.totalorder %s81, 1
    %p314 = por %p312, %p313
    %p316 = scmp.ne.s32.totalorder %s301, %s315
    %p317 = scmp.eq.s32.totalorder %s81, 0
    %p318 = por %p316, %p317
    %s320 = sadd.s32 %s319, 1
    %p323 = scmp.eq.s32.totalorder %s75, 1
    %p324 = scmp.ne.s32.totalorder %s319, %s321
    %p325 = scmp.eq.s32.totalorder %s75, 0
    %p326 = por %p324, %p325
    %p327 = scmp.ne.s32.totalorder %s319, %s321
    %p328 = scmp.eq.s32.totalorder %s80, 1
    %p329 = por %p327, %p328
    %p330 = scmp.ne.s32.totalorder %s321, %s322
    %p331 = scmp.eq.s32.totalorder %s80, 0
    %p332 = por %p330, %p331
    %p333 = scmp.ne.s32.totalorder %s321, %s322
    %p334 = scmp.eq.s32.totalorder %s81, 1
    %p335 = por %p333, %p334
    %p337 = scmp.ne.s32.totalorder %s322, %s336
    %p338 = scmp.eq.s32.totalorder %s81, 0
    %p339 = por %p337, %p338
    %s341 = sadd.s32 %s340, 1
    %p344 = scmp.eq.s32.totalorder %s75, 1
    %p345 = scmp.ne.s32.totalorder %s340, %s342
    %p346 = scmp.eq.s32.totalorder %s75, 0
    %p347 = por %p345, %p346
    %p348 = scmp.ne.s32.totalorder %s340, %s342
    %p349 = scmp.eq.s32.totalorder %s80, 1
    %p350 = por %p348, %p349
    %p351 = scmp.ne.s32.totalorder %s342, %s343
    %p352 = scmp.eq.s32.totalorder %s80, 0
    %p353 = por %p351, %p352
    %p354 = scmp.ne.s32.totalorder %s342, %s343
    %p355 = scmp.eq.s32.totalorder %s81, 1
    %p356 = por %p354, %p355
    %p358 = scmp.ne.s32.totalorder %s343, %s357
    %p359 = scmp.eq.s32.totalorder %s81, 0
    %p360 = por %p358, %p359
    %s362 = sadd.s32 %s361, 1
    %p365 = scmp.eq.s32.totalorder %s75, 1
    %p366 = scmp.ne.s32.totalorder %s361, %s363
    %p367 = scmp.eq.s32.totalorder %s75, 0
    %p368 = por %p366, %p367
    %p369 = scmp.ne.s32.totalorder %s361, %s363
    %p370 = scmp.eq.s32.totalorder %s80, 1
    %p371 = por %p369, %p370
    %p372 = scmp.ne.s32.totalorder %s363, %s364
    %p373 = scmp.eq.s32.totalorder %s80, 0
    %p374 = por %p372, %p373
    %p375 = scmp.ne.s32.totalorder %s363, %s364
    %p376 = scmp.eq.s32.totalorder %s81, 1
    %p377 = por %p375, %p376
    %p379 = scmp.ne.s32.totalorder %s364, %s378
    %p380 = scmp.eq.s32.totalorder %s81, 0
    %p381 = por %p379, %p380
    %s383 = sadd.s32 %s382, 1
    %p386 = scmp.eq.s32.totalorder %s75, 1
    %p387 = scmp.ne.s32.totalorder %s382, %s384
    %p388 = scmp.eq.s32.totalorder %s75, 0
    %p389 = por %p387, %p388
    %p390 = scmp.ne.s32.totalorder %s382, %s384
    %p391 = scmp.eq.s32.totalorder %s80, 1
    %p392 = por %p390, %p391
    %p393 = scmp.ne.s32.totalorder %s384, %s385
    %p394 = scmp.eq.s32.totalorder %s80, 0
    %p395 = por %p393, %p394
    %p396 = scmp.ne.s32.totalorder %s384, %s385
    %p397 = scmp.eq.s32.totalorder %s81, 1
    %p398 = por %p396, %p397
    %p400 = scmp.ne.s32.totalorder %s385, %s399
    %p401 = scmp.eq.s32.totalorder %s81, 0
    %p402 = por %p400, %p401
    %s404 = sadd.s32 %s403, 1
    %p407 = scmp.eq.s32.totalorder %s75, 1
    %p408 = scmp.ne.s32.totalorder %s403, %s405
    %p409 = scmp.eq.s32.totalorder %s75, 0
    %p410 = por %p408, %p409
    %p411 = scmp.ne.s32.totalorder %s403, %s405
    %p412 = scmp.eq.s32.totalorder %s80, 1
    %p413 = por %p411, %p412
    %p414 = scmp.ne.s32.totalorder %s405, %s406
    %p415 = scmp.eq.s32.totalorder %s80, 0
    %p416 = por %p414, %p415
    %p417 = scmp.ne.s32.totalorder %s405, %s406
    %p418 = scmp.eq.s32.totalorder %s81, 1
    %p419 = por %p417, %p418
    %p421 = scmp.ne.s32.totalorder %s406, %s420
    %p422 = scmp.eq.s32.totalorder %s81, 0
    %p423 = por %p421, %p422
    %s425 = sadd.s32 %s424, 1
    %p428 = scmp.eq.s32.totalorder %s75, 1
    %p429 = scmp.ne.s32.totalorder %s424, %s426
    %p430 = scmp.eq.s32.totalorder %s75, 0
    %p431 = por %p429, %p430
    %p432 = scmp.ne.s32.totalorder %s424, %s426
    %p433 = scmp.eq.s32.totalorder %s80, 1
    %p434 = por %p432, %p433
    %p435 = scmp.ne.s32.totalorder %s426, %s427
    %p436 = scmp.eq.s32.totalorder %s80, 0
    %p437 = por %p435, %p436
    %p438 = scmp.ne.s32.totalorder %s426, %s427
    %p439 = scmp.eq.s32.totalorder %s81, 1
    %p440 = por %p438, %p439
    %p442 = scmp.ne.s32.totalorder %s427, %s441
    %p443 = scmp.eq.s32.totalorder %s81, 0
    %p444 = por %p442, %p443
    %s446 = sadd.s32 %s445, 1
    %p449 = scmp.eq.s32.totalorder %s75, 1
    %p450 = scmp.ne.s32.totalorder %s445, %s447
    %p451 = scmp.eq.s32.totalorder %s75, 0
    %p452 = por %p450, %p451
    %p453 = scmp.ne.s32.totalorder %s445, %s447
    %p454 = scmp.eq.s32.totalorder %s80, 1
    %p455 = por %p453, %p454
    %p456 = scmp.ne.s32.totalorder %s447, %s448
    %p457 = scmp.eq.s32.totalorder %s80, 0
    %p458 = por %p456, %p457
    %p459 = scmp.ne.s32.totalorder %s447, %s448
    %p460 = scmp.eq.s32.totalorder %s81, 1
    %p461 = por %p459, %p460
    %p463 = scmp.ne.s32.totalorder %s448, %s462
    %p464 = scmp.eq.s32.totalorder %s81, 0
    %p465 = por %p463, %p464
    %s467 = sadd.s32 %s466, 1
    %p470 = scmp.eq.s32.totalorder %s75, 1
    %p471 = scmp.ne.s32.totalorder %s466, %s468
    %p472 = scmp.eq.s32.totalorder %s75, 0
    %p473 = por %p471, %p472
    %p474 = scmp.ne.s32.totalorder %s466, %s468
    %p475 = scmp.eq.s32.totalorder %s80, 1
    %p476 = por %p474, %p475
    %p477 = scmp.ne.s32.totalorder %s468, %s469
    %p478 = scmp.eq.s32.totalorder %s80, 0
    %p479 = por %p477, %p478
    %p480 = scmp.ne.s32.totalorder %s468, %s469
    %p481 = scmp.eq.s32.totalorder %s81, 1
    %p482 = por %p480, %p481
    %p484 = scmp.ne.s32.totalorder %s469, %s483
    %p485 = scmp.eq.s32.totalorder %s81, 0
    %p486 = por %p484, %p485
    %s488 = sadd.s32 %s487, 1
    %p491 = scmp.eq.s32.totalorder %s75, 1
    %p492 = scmp.ne.s32.totalorder %s487, %s489
    %p493 = scmp.eq.s32.totalorder %s75, 0
    %p494 = por %p492, %p493
    %p495 = scmp.ne.s32.totalorder %s487, %s489
    %p496 = scmp.eq.s32.totalorder %s80, 1
    %p497 = por %p495, %p496
    %p498 = scmp.ne.s32.totalorder %s489, %s490
    %p499 = scmp.eq.s32.totalorder %s80, 0
    %p500 = por %p498, %p499
    %p501 = scmp.ne.s32.totalorder %s489, %s490
    %p502 = scmp.eq.s32.totalorder %s81, 1
    %p503 = por %p501, %p502
    %p505 = scmp.ne.s32.totalorder %s490, %s504
    %p506 = scmp.eq.s32.totalorder %s81, 0
    %p507 = por %p505, %p506
    %s509 = sadd.s32 %s508, 1
    %p512 = scmp.eq.s32.totalorder %s75, 1
    %p513 = scmp.ne.s32.totalorder %s508, %s510
    %p514 = scmp.eq.s32.totalorder %s75, 0
    %p515 = por %p513, %p514
    %p516 = scmp.ne.s32.totalorder %s508, %s510
    %p517 = scmp.eq.s32.totalorder %s80, 1
    %p518 = por %p516, %p517
    %p519 = scmp.ne.s32.totalorder %s510, %s511
    %p520 = scmp.eq.s32.totalorder %s80, 0
    %p521 = por %p519, %p520
    %p522 = scmp.ne.s32.totalorder %s510, %s511
    %p523 = scmp.eq.s32.totalorder %s81, 1
    %p524 = por %p522, %p523
    %p526 = scmp.ne.s32.totalorder %s511, %s525
    %p527 = scmp.eq.s32.totalorder %s81, 0
    %p528 = por %p526, %p527
    %s530 = sadd.s32 %s529, 1
    %p533 = scmp.eq.s32.totalorder %s75, 1
    %p534 = scmp.ne.s32.totalorder %s529, %s531
    %p535 = scmp.eq.s32.totalorder %s75, 0
    %p536 = por %p534, %p535
    %p537 = scmp.ne.s32.totalorder %s529, %s531
    %p538 = scmp.eq.s32.totalorder %s80, 1
    %p539 = por %p537, %p538
    %p540 = scmp.ne.s32.totalorder %s531, %s532
    %p541 = scmp.eq.s32.totalorder %s80, 0
    %p542 = por %p540, %p541
    %p543 = scmp.ne.s32.totalorder %s531, %s532
    %p544 = scmp.eq.s32.totalorder %s81, 1
    %p545 = por %p543, %p544
    %p547 = scmp.ne.s32.totalorder %s532, %s546
    %p548 = scmp.eq.s32.totalorder %s81, 0
    %p549 = por %p547, %p548
    %s551 = sadd.s32 %s550, 1
    %p554 = scmp.eq.s32.totalorder %s75, 1
    %p555 = scmp.ne.s32.totalorder %s550, %s552
    %p556 = scmp.eq.s32.totalorder %s75, 0
    %p557 = por %p555, %p556
    %p558 = scmp.ne.s32.totalorder %s550, %s552
    %p559 = scmp.eq.s32.totalorder %s80, 1
    %p560 = por %p558, %p559
    %p561 = scmp.ne.s32.totalorder %s552, %s553
    %p562 = scmp.eq.s32.totalorder %s80, 0
    %p563 = por %p561, %p562
    %p564 = scmp.ne.s32.totalorder %s552, %s553
    %p565 = scmp.eq.s32.totalorder %s81, 1
    %p566 = por %p564, %p565
    %p568 = scmp.ne.s32.totalorder %s553, %s567
    %p569 = scmp.eq.s32.totalorder %s81, 0
    %p570 = por %p568, %p569
    %s572 = sadd.s32 %s571, 1
    %p575 = scmp.eq.s32.totalorder %s75, 1
    %p576 = scmp.ne.s32.totalorder %s571, %s573
    %p577 = scmp.eq.s32.totalorder %s75, 0
    %p578 = por %p576, %p577
    %p579 = scmp.ne.s32.totalorder %s571, %s573
    %p580 = scmp.eq.s32.totalorder %s80, 1
    %p581 = por %p579, %p580
    %p582 = scmp.ne.s32.totalorder %s573, %s574
    %p583 = scmp.eq.s32.totalorder %s80, 0
    %p584 = por %p582, %p583
    %p585 = scmp.ne.s32.totalorder %s573, %s574
    %p586 = scmp.eq.s32.totalorder %s81, 1
    %p587 = por %p585, %p586
    %p589 = scmp.ne.s32.totalorder %s574, %s588
    %p590 = scmp.eq.s32.totalorder %s81, 0
    %p591 = por %p589, %p590
    %s593 = sadd.s32 %s592, 1
    %p596 = scmp.eq.s32.totalorder %s75, 1
    %p597 = scmp.ne.s32.totalorder %s592, %s594
    %p598 = scmp.eq.s32.totalorder %s75, 0
    %p599 = por %p597, %p598
    %p600 = scmp.ne.s32.totalorder %s592, %s594
    %p601 = scmp.eq.s32.totalorder %s80, 1
    %p602 = por %p600, %p601
    %p603 = scmp.ne.s32.totalorder %s594, %s595
    %p604 = scmp.eq.s32.totalorder %s80, 0
    %p605 = por %p603, %p604
    %p606 = scmp.ne.s32.totalorder %s594, %s595
    %p607 = scmp.eq.s32.totalorder %s81, 1
    %p608 = por %p606, %p607
    %p610 = scmp.ne.s32.totalorder %s595, %s609
    %p611 = scmp.eq.s32.totalorder %s81, 0
    %p612 = por %p610, %p611
    %s614 = sadd.s32 %s613, 1
    %p617 = scmp.eq.s32.totalorder %s75, 1
    %p618 = scmp.ne.s32.totalorder %s613, %s615
    %p619 = scmp.eq.s32.totalorder %s75, 0
    %p620 = por %p618, %p619
    %p621 = scmp.ne.s32.totalorder %s613, %s615
    %p622 = scmp.eq.s32.totalorder %s80, 1
    %p623 = por %p621, %p622
    %p624 = scmp.ne.s32.totalorder %s615, %s616
    %p625 = scmp.eq.s32.totalorder %s80, 0
    %p626 = por %p624, %p625
    %p627 = scmp.ne.s32.totalorder %s615, %s616
    %p628 = scmp.eq.s32.totalorder %s81, 1
    %p629 = por %p627, %p628
    %p631 = scmp.ne.s32.totalorder %s616, %s630
    %p632 = scmp.eq.s32.totalorder %s81, 0
    %p633 = por %p631, %p632
    %s635 = sadd.s32 %s634, 1
    %p638 = scmp.eq.s32.totalorder %s75, 1
    %p639 = scmp.ne.s32.totalorder %s634, %s636
    %p640 = scmp.eq.s32.totalorder %s75, 0
    %p641 = por %p639, %p640
    %p642 = scmp.ne.s32.totalorder %s634, %s636
    %p643 = scmp.eq.s32.totalorder %s80, 1
    %p644 = por %p642, %p643
    %p645 = scmp.ne.s32.totalorder %s636, %s637
    %p646 = scmp.eq.s32.totalorder %s80, 0
    %p647 = por %p645, %p646
    %p648 = scmp.ne.s32.totalorder %s636, %s637
    %p649 = scmp.eq.s32.totalorder %s81, 1
    %p650 = por %p648, %p649
    %p652 = scmp.ne.s32.totalorder %s637, %s651
    %p653 = scmp.eq.s32.totalorder %s81, 0
    %p654 = por %p652, %p653
    %s656 = sadd.s32 %s655, 1
    %p659 = scmp.eq.s32.totalorder %s75, 1
    %p660 = scmp.ne.s32.totalorder %s655, %s657
    %p661 = scmp.eq.s32.totalorder %s75, 0
    %p662 = por %p660, %p661
    %p663 = scmp.ne.s32.totalorder %s655, %s657
    %p664 = scmp.eq.s32.totalorder %s80, 1
    %p665 = por %p663, %p664
    %p666 = scmp.ne.s32.totalorder %s657, %s658
    %p667 = scmp.eq.s32.totalorder %s80, 0
    %p668 = por %p666, %p667
    %p669 = scmp.ne.s32.totalorder %s657, %s658
    %p670 = scmp.eq.s32.totalorder %s81, 1
    %p671 = por %p669, %p670
    %p673 = scmp.ne.s32.totalorder %s658, %s672
    %p674 = scmp.eq.s32.totalorder %s81, 0
    %p675 = por %p673, %p674
    %s677 = sadd.s32 %s676, 1
    %p680 = scmp.eq.s32.totalorder %s75, 1
    %p681 = scmp.ne.s32.totalorder %s676, %s678
    %p682 = scmp.eq.s32.totalorder %s75, 0
    %p683 = por %p681, %p682
    %p684 = scmp.ne.s32.totalorder %s676, %s678
    %p685 = scmp.eq.s32.totalorder %s80, 1
    %p686 = por %p684, %p685
    %p687 = scmp.ne.s32.totalorder %s678, %s679
    %p688 = scmp.eq.s32.totalorder %s80, 0
    %p689 = por %p687, %p688
    %p690 = scmp.ne.s32.totalorder %s678, %s679
    %p691 = scmp.eq.s32.totalorder %s81, 1
    %p692 = por %p690, %p691
    %p694 = scmp.ne.s32.totalorder %s679, %s693
    %p695 = scmp.eq.s32.totalorder %s81, 0
    %p696 = por %p694, %p695
    %s698 = sadd.s32 %s697, 1
    %p701 = scmp.eq.s32.totalorder %s75, 1
    %p702 = scmp.ne.s32.totalorder %s697, %s699
    %p703 = scmp.eq.s32.totalorder %s75, 0
    %p704 = por %p702, %p703
    %p705 = scmp.ne.s32.totalorder %s697, %s699
    %p706 = scmp.eq.s32.totalorder %s80, 1
    %p707 = por %p705, %p706
    %p708 = scmp.ne.s32.totalorder %s699, %s700
    %p709 = scmp.eq.s32.totalorder %s80, 0
    %p710 = por %p708, %p709
    %p711 = scmp.ne.s32.totalorder %s699, %s700
    %p712 = scmp.eq.s32.totalorder %s81, 1
    %p713 = por %p711, %p712
    %p715 = scmp.ne.s32.totalorder %s700, %s714
    %p716 = scmp.eq.s32.totalorder %s81, 0
    %p717 = por %p715, %p716
    %s719 = sadd.s32 %s718, 1
    %p722 = scmp.eq.s32.totalorder %s75, 1
    %p723 = scmp.ne.s32.totalorder %s718, %s720
    %p724 = scmp.eq.s32.totalorder %s75, 0
    %p725 = por %p723, %p724
    %p726 = scmp.ne.s32.totalorder %s718, %s720
    %p727 = scmp.eq.s32.totalorder %s80, 1
    %p728 = por %p726, %p727
    %p729 = scmp.ne.s32.totalorder %s720, %s721
    %p730 = scmp.eq.s32.totalorder %s80, 0
    %p731 = por %p729, %p730
    %p732 = scmp.ne.s32.totalorder %s720, %s721
    %p733 = scmp.eq.s32.totalorder %s81, 1
    %p734 = por %p732, %p733
    %p736 = scmp.ne.s32.totalorder %s721, %s735
    %p737 = scmp.eq.s32.totalorder %s81, 0
    %p738 = por %p736, %p737
    %s740 = sadd.s32 %s739, 1
    %p743 = scmp.eq.s32.totalorder %s75, 1
    %p744 = scmp.ne.s32.totalorder %s739, %s741
    %p745 = scmp.eq.s32.totalorder %s75, 0
    %p746 = por %p744, %p745
    %p747 = scmp.ne.s32.totalorder %s739, %s741
    %p748 = scmp.eq.s32.totalorder %s80, 1
    %p749 = por %p747, %p748
    %p750 = scmp.ne.s32.totalorder %s741, %s742
    %p751 = scmp.eq.s32.totalorder %s80, 0
    %p752 = por %p750, %p751
    %p753 = scmp.ne.s32.totalorder %s741, %s742
    %p754 = scmp.eq.s32.totalorder %s81, 1
    %p755 = por %p753, %p754
    %p757 = scmp.ne.s32.totalorder %s742, %s756
    %p758 = scmp.eq.s32.totalorder %s81, 0
    %p759 = por %p757, %p758
    %s761 = sadd.s32 %s760, 1
    %p764 = scmp.eq.s32.totalorder %s75, 1
    %p765 = scmp.ne.s32.totalorder %s760, %s762
    %p766 = scmp.eq.s32.totalorder %s75, 0
    %p767 = por %p765, %p766
    %p768 = scmp.ne.s32.totalorder %s760, %s762
    %p769 = scmp.eq.s32.totalorder %s80, 1
    %p770 = por %p768, %p769
    %p771 = scmp.ne.s32.totalorder %s762, %s763
    %p772 = scmp.eq.s32.totalorder %s80, 0
    %p773 = por %p771, %p772
    %p774 = scmp.ne.s32.totalorder %s762, %s763
    %p775 = scmp.eq.s32.totalorder %s81, 1
    %p776 = por %p774, %p775
    %p778 = scmp.ne.s32.totalorder %s763, %s777
    %p779 = scmp.eq.s32.totalorder %s81, 0
    %p780 = por %p778, %p779
    %s782 = sadd.s32 %s781, 1
    %p785 = scmp.eq.s32.totalorder %s75, 1
    %p786 = scmp.ne.s32.totalorder %s781, %s783
    %p787 = scmp.eq.s32.totalorder %s75, 0
    %p788 = por %p786, %p787
    %p789 = scmp.ne.s32.totalorder %s781, %s783
    %p790 = scmp.eq.s32.totalorder %s80, 1
    %p791 = por %p789, %p790
    %p792 = scmp.ne.s32.totalorder %s783, %s784
    %p793 = scmp.eq.s32.totalorder %s80, 0
    %p794 = por %p792, %p793
    %p795 = scmp.ne.s32.totalorder %s783, %s784
    %p796 = scmp.eq.s32.totalorder %s81, 1
    %p797 = por %p795, %p796
    %p799 = scmp.ne.s32.totalorder %s784, %s798
    %p800 = scmp.eq.s32.totalorder %s81, 0
    %p801 = por %p799, %p800
    %s802 = ssub.s32 %s75, %s82
    %p803 = scmp.eq.s32.totalorder %s802, 0
    %s805 = sadd.s32 %s804, 1
    %s806 = scalar_select %p803, %s804, %s805
    %p809 = pneg %p803
    %p810 = scmp.eq.s32.totalorder %s75, 1
    %p811 = por %p809, %p810
    %p812 = scmp.ne.s32.totalorder %s804, %s807
    %p813 = scmp.eq.s32.totalorder %s75, 0
    %p814 = por %p812, %p813
    %p815 = scmp.ne.s32.totalorder %s804, %s807
    %p816 = scmp.eq.s32.totalorder %s80, 1
    %p817 = por %p815, %p816
    %p818 = scmp.ne.s32.totalorder %s807, %s808
    %p819 = scmp.eq.s32.totalorder %s80, 0
    %p820 = por %p818, %p819
    %p821 = scmp.ne.s32.totalorder %s807, %s808
    %p822 = scmp.eq.s32.totalorder %s81, 1
    %p823 = por %p821, %p822
    %p825 = scmp.ne.s32.totalorder %s808, %s824
    %p826 = scmp.eq.s32.totalorder %s81, 0
    %p827 = por %p825, %p826
    %p828 = scmp.le.s32.totalorder 1, %s75
    %p829 = scmp.lt.s32.totalorder %s75, 3
    %p830 = pnand %p828, %p829
    %p831 = pneg %p830
    // Predicated region
    $region9: #{_lambda_.1} parent=5 // pred_check
      _
    $region10: #{_lambda_.1} parent=5 // pred_check_branch
      %833 = sbr.rel (%p830) target = $region12
    $region11: #{_lambda_.1} parent=5 // pred_region
      %s834 = ssub.s32 %s75, 1
      // Predicated region
      $region13: #{_lambda_.1} parent=11 // pred_check
        %p835 = pneg %p122
      $region14: #{_lambda_.1} parent=11 // pred_check_branch
        %837 = sbr.rel (%p835) target = $region16
      $region15: #{_lambda_.1} parent=11 // pred_region
        _
      $region16: #{_lambda_.1} parent=11 // pred_fallthru
        _
      // Predicated region
      $region17: #{_lambda_.1} parent=11 // pred_check
        %p838 = pneg %p143
      $region18: #{_lambda_.1} parent=11 // pred_check_branch
        %840 = sbr.rel (%p838) target = $region20
      $region19: #{_lambda_.1} parent=11 // pred_region
        _
      $region20: #{_lambda_.1} parent=11 // pred_fallthru
        _
      // Predicated region
      $region21: #{_lambda_.1} parent=11 // pred_check
        %p841 = pneg %p164
      $region22: #{_lambda_.1} parent=11 // pred_check_branch
        %843 = sbr.rel (%p841) target = $region24
      $region23: #{_lambda_.1} parent=11 // pred_region
        _
      $region24: #{_lambda_.1} parent=11 // pred_fallthru
        _
      // Predicated region
      $region25: #{_lambda_.1} parent=11 // pred_check
        %p844 = pneg %p185
      $region26: #{_lambda_.1} parent=11 // pred_check_branch
        %846 = sbr.rel (%p844) target = $region28
      $region27: #{_lambda_.1} parent=11 // pred_region
        _
      $region28: #{_lambda_.1} parent=11 // pred_fallthru
        _
      // Predicated region
      $region29: #{_lambda_.1} parent=11 // pred_check
        %p847 = pneg %p206
      $region30: #{_lambda_.1} parent=11 // pred_check_branch
        %849 = sbr.rel (%p847) target = $region32
      $region31: #{_lambda_.1} parent=11 // pred_region
        _
      $region32: #{_lambda_.1} parent=11 // pred_fallthru
        _
      // Predicated region
      $region33: #{_lambda_.1} parent=11 // pred_check
        %p850 = pneg %p227
      $region34: #{_lambda_.1} parent=11 // pred_check_branch
        %852 = sbr.rel (%p850) target = $region36
      $region35: #{_lambda_.1} parent=11 // pred_region
        _
      $region36: #{_lambda_.1} parent=11 // pred_fallthru
        _
      // Predicated region
      $region37: #{_lambda_.1} parent=11 // pred_check
        %p853 = pneg %p248
      $region38: #{_lambda_.1} parent=11 // pred_check_branch
        %855 = sbr.rel (%p853) target = $region40
      $region39: #{_lambda_.1} parent=11 // pred_region
        _
      $region40: #{_lambda_.1} parent=11 // pred_fallthru
        _
      // Predicated region
      $region41: #{_lambda_.1} parent=11 // pred_check
        %p856 = pneg %p269
      $region42: #{_lambda_.1} parent=11 // pred_check_branch
        %858 = sbr.rel (%p856) target = $region44
      $region43: #{_lambda_.1} parent=11 // pred_region
        _
      $region44: #{_lambda_.1} parent=11 // pred_fallthru
        _
      // Predicated region
      $region45: #{_lambda_.1} parent=11 // pred_check
        %p859 = pneg %p290
      $region46: #{_lambda_.1} parent=11 // pred_check_branch
        %861 = sbr.rel (%p859) target = $region48
      $region47: #{_lambda_.1} parent=11 // pred_region
        _
      $region48: #{_lambda_.1} parent=11 // pred_fallthru
        _
      // Predicated region
      $region49: #{_lambda_.1} parent=11 // pred_check
        %p862 = pneg %p311
      $region50: #{_lambda_.1} parent=11 // pred_check_branch
        %864 = sbr.rel (%p862) target = $region52
      $region51: #{_lambda_.1} parent=11 // pred_region
        _
      $region52: #{_lambda_.1} parent=11 // pred_fallthru
        _
      // Predicated region
      $region53: #{_lambda_.1} parent=11 // pred_check
        %p865 = pneg %p332
      $region54: #{_lambda_.1} parent=11 // pred_check_branch
        %867 = sbr.rel (%p865) target = $region56
      $region55: #{_lambda_.1} parent=11 // pred_region
        _
      $region56: #{_lambda_.1} parent=11 // pred_fallthru
        _
      // Predicated region
      $region57: #{_lambda_.1} parent=11 // pred_check
        %p868 = pneg %p353
      $region58: #{_lambda_.1} parent=11 // pred_check_branch
        %870 = sbr.rel (%p868) target = $region60
      $region59: #{_lambda_.1} parent=11 // pred_region
        _
      $region60: #{_lambda_.1} parent=11 // pred_fallthru
        _
      // Predicated region
      $region61: #{_lambda_.1} parent=11 // pred_check
        %p871 = pneg %p374
      $region62: #{_lambda_.1} parent=11 // pred_check_branch
        %873 = sbr.rel (%p871) target = $region64
      $region63: #{_lambda_.1} parent=11 // pred_region
        _
      $region64: #{_lambda_.1} parent=11 // pred_fallthru
        _
      // Predicated region
      $region65: #{_lambda_.1} parent=11 // pred_check
        %p874 = pneg %p395
      $region66: #{_lambda_.1} parent=11 // pred_check_branch
        %876 = sbr.rel (%p874) target = $region68
      $region67: #{_lambda_.1} parent=11 // pred_region
        _
      $region68: #{_lambda_.1} parent=11 // pred_fallthru
        _
      // Predicated region
      $region69: #{_lambda_.1} parent=11 // pred_check
        %p877 = pneg %p416
      $region70: #{_lambda_.1} parent=11 // pred_check_branch
        %879 = sbr.rel (%p877) target = $region72
      $region71: #{_lambda_.1} parent=11 // pred_region
        _
      $region72: #{_lambda_.1} parent=11 // pred_fallthru
        _
      // Predicated region
      $region73: #{_lambda_.1} parent=11 // pred_check
        %p880 = pneg %p437
      $region74: #{_lambda_.1} parent=11 // pred_check_branch
        %882 = sbr.rel (%p880) target = $region76
      $region75: #{_lambda_.1} parent=11 // pred_region
        _
      $region76: #{_lambda_.1} parent=11 // pred_fallthru
        _
      // Predicated region
      $region77: #{_lambda_.1} parent=11 // pred_check
        %p883 = pneg %p458
      $region78: #{_lambda_.1} parent=11 // pred_check_branch
        %885 = sbr.rel (%p883) target = $region80
      $region79: #{_lambda_.1} parent=11 // pred_region
        _
      $region80: #{_lambda_.1} parent=11 // pred_fallthru
        _
      // Predicated region
      $region81: #{_lambda_.1} parent=11 // pred_check
        %p886 = pneg %p479
      $region82: #{_lambda_.1} parent=11 // pred_check_branch
        %888 = sbr.rel (%p886) target = $region84
      $region83: #{_lambda_.1} parent=11 // pred_region
        _
      $region84: #{_lambda_.1} parent=11 // pred_fallthru
        _
      // Predicated region
      $region85: #{_lambda_.1} parent=11 // pred_check
        %p889 = pneg %p500
      $region86: #{_lambda_.1} parent=11 // pred_check_branch
        %891 = sbr.rel (%p889) target = $region88
      $region87: #{_lambda_.1} parent=11 // pred_region
        _
      $region88: #{_lambda_.1} parent=11 // pred_fallthru
        _
      // Predicated region
      $region89: #{_lambda_.1} parent=11 // pred_check
        %p892 = pneg %p521
      $region90: #{_lambda_.1} parent=11 // pred_check_branch
        %894 = sbr.rel (%p892) target = $region92
      $region91: #{_lambda_.1} parent=11 // pred_region
        _
      $region92: #{_lambda_.1} parent=11 // pred_fallthru
        _
      // Predicated region
      $region93: #{_lambda_.1} parent=11 // pred_check
        %p895 = pneg %p542
      $region94: #{_lambda_.1} parent=11 // pred_check_branch
        %897 = sbr.rel (%p895) target = $region96
      $region95: #{_lambda_.1} parent=11 // pred_region
        _
      $region96: #{_lambda_.1} parent=11 // pred_fallthru
        _
      // Predicated region
      $region97: #{_lambda_.1} parent=11 // pred_check
        %p898 = pneg %p563
      $region98: #{_lambda_.1} parent=11 // pred_check_branch
        %900 = sbr.rel (%p898) target = $region100
      $region99: #{_lambda_.1} parent=11 // pred_region
        _
      $region100: #{_lambda_.1} parent=11 // pred_fallthru
        _
      // Predicated region
      $region101: #{_lambda_.1} parent=11 // pred_check
        %p901 = pneg %p584
      $region102: #{_lambda_.1} parent=11 // pred_check_branch
        %903 = sbr.rel (%p901) target = $region104
      $region103: #{_lambda_.1} parent=11 // pred_region
        _
      $region104: #{_lambda_.1} parent=11 // pred_fallthru
        _
      // Predicated region
      $region105: #{_lambda_.1} parent=11 // pred_check
        %p904 = pneg %p605
      $region106: #{_lambda_.1} parent=11 // pred_check_branch
        %906 = sbr.rel (%p904) target = $region108
      $region107: #{_lambda_.1} parent=11 // pred_region
        _
      $region108: #{_lambda_.1} parent=11 // pred_fallthru
        _
      // Predicated region
      $region109: #{_lambda_.1} parent=11 // pred_check
        %p907 = pneg %p626
      $region110: #{_lambda_.1} parent=11 // pred_check_branch
        %909 = sbr.rel (%p907) target = $region112
      $region111: #{_lambda_.1} parent=11 // pred_region
        _
      $region112: #{_lambda_.1} parent=11 // pred_fallthru
        _
      // Predicated region
      $region113: #{_lambda_.1} parent=11 // pred_check
        %p910 = pneg %p647
      $region114: #{_lambda_.1} parent=11 // pred_check_branch
        %912 = sbr.rel (%p910) target = $region116
      $region115: #{_lambda_.1} parent=11 // pred_region
        _
      $region116: #{_lambda_.1} parent=11 // pred_fallthru
        _
      // Predicated region
      $region117: #{_lambda_.1} parent=11 // pred_check
        %p913 = pneg %p668
      $region118: #{_lambda_.1} parent=11 // pred_check_branch
        %915 = sbr.rel (%p913) target = $region120
      $region119: #{_lambda_.1} parent=11 // pred_region
        _
      $region120: #{_lambda_.1} parent=11 // pred_fallthru
        _
      // Predicated region
      $region121: #{_lambda_.1} parent=11 // pred_check
        %p916 = pneg %p689
      $region122: #{_lambda_.1} parent=11 // pred_check_branch
        %918 = sbr.rel (%p916) target = $region124
      $region123: #{_lambda_.1} parent=11 // pred_region
        _
      $region124: #{_lambda_.1} parent=11 // pred_fallthru
        _
      // Predicated region
      $region125: #{_lambda_.1} parent=11 // pred_check
        %p919 = pneg %p710
      $region126: #{_lambda_.1} parent=11 // pred_check_branch
        %921 = sbr.rel (%p919) target = $region128
      $region127: #{_lambda_.1} parent=11 // pred_region
        _
      $region128: #{_lambda_.1} parent=11 // pred_fallthru
        _
      // Predicated region
      $region129: #{_lambda_.1} parent=11 // pred_check
        %p922 = pneg %p731
      $region130: #{_lambda_.1} parent=11 // pred_check_branch
        %924 = sbr.rel (%p922) target = $region132
      $region131: #{_lambda_.1} parent=11 // pred_region
        _
      $region132: #{_lambda_.1} parent=11 // pred_fallthru
        _
      // Predicated region
      $region133: #{_lambda_.1} parent=11 // pred_check
        %p925 = pneg %p752
      $region134: #{_lambda_.1} parent=11 // pred_check_branch
        %927 = sbr.rel (%p925) target = $region136
      $region135: #{_lambda_.1} parent=11 // pred_region
        _
      $region136: #{_lambda_.1} parent=11 // pred_fallthru
        _
      // Predicated region
      $region137: #{_lambda_.1} parent=11 // pred_check
        %p928 = pneg %p773
      $region138: #{_lambda_.1} parent=11 // pred_check_branch
        %930 = sbr.rel (%p928) target = $region140
      $region139: #{_lambda_.1} parent=11 // pred_region
        _
      $region140: #{_lambda_.1} parent=11 // pred_fallthru
        _
      // Predicated region
      $region141: #{_lambda_.1} parent=11 // pred_check
        %p931 = pneg %p794
      $region142: #{_lambda_.1} parent=11 // pred_check_branch
        %933 = sbr.rel (%p931) target = $region144
      $region143: #{_lambda_.1} parent=11 // pred_region
        _
      $region144: #{_lambda_.1} parent=11 // pred_fallthru
        _
    $region12: #{_lambda_.1} parent=5 // pred_fallthru
      _
    %p934 = scmp.lt.s32.totalorder %s75, 2
    // Predicated region
    $region145: #{_lambda_.1} parent=5 // pred_check
      %p935 = pneg %p934
    $region146: #{_lambda_.1} parent=5 // pred_check_branch
      %937 = sbr.rel (%p935) target = $region148
    $region147: #{_lambda_.1} parent=5 // pred_region
      // Predicated region
      $region149: #{_lambda_.1} parent=147 // pred_check
        %p938 = pneg %p95
      $region150: #{_lambda_.1} parent=147 // pred_check_branch
        %940 = sbr.rel (%p938) target = $region152
      $region151: #{_lambda_.1} parent=147 // pred_region
        %p941 = scmp.lt.s32.totalorder %s75, 1
        %s942 = scalar_select %p941, %s75, 1
        %s943 = smul.addr %s942, 4
        %s944 = smul.addr %s943, 8
        %s945 = scalar_lea.vmem %s1, %s944
      $region152: #{_lambda_.1} parent=147 // pred_fallthru
        _
    $region148: #{_lambda_.1} parent=5 // pred_fallthru
      _
    %p946 = scmp.le.s32.totalorder 1, %s75
    %p947 = scmp.lt.s32.totalorder %s75, 3
    %p948 = pnand %p946, %p947
    %p949 = pneg %p948
    // Predicated region
    $region153: #{_lambda_.1} parent=5 // pred_check
      _
    $region154: #{_lambda_.1} parent=5 // pred_check_branch
      %951 = sbr.rel (%p948) target = $region156
    $region155: #{_lambda_.1} parent=5 // pred_region
      %s952 = ssub.s32 %s75, 1
      %p953 = scmp.lt.s32.totalorder %s80, 1
      %s954 = scalar_select %p953, %s80, 1
      %s955 = smul.addr %s954, 4
      %s956 = smul.addr %s955, 8
      %s957 = scalar_lea.vmem %s1, %s956
      %p958 = pneg %p101
      %p959 = pneg %p98
      %p960 = pneg %p122
      %p961 = pneg %p119
      %p962 = pneg %p143
      %p963 = pneg %p140
      %p964 = pneg %p164
      %p965 = pneg %p161
      %p966 = pneg %p185
      %p967 = pneg %p182
      %p968 = pneg %p206
      %p969 = pneg %p203
      %p970 = pneg %p227
      %p971 = pneg %p224
      %p972 = pneg %p248
      %p973 = pneg %p245
      %p974 = pneg %p269
      %p975 = pneg %p266
      %p976 = pneg %p290
      %p977 = pneg %p287
      %p978 = pneg %p311
      %p979 = pneg %p308
      %p980 = pneg %p332
      %p981 = pneg %p329
      %p982 = pneg %p353
      %p983 = pneg %p350
      %p984 = pneg %p374
      %p985 = pneg %p371
      %p986 = pneg %p395
      %p987 = pneg %p392
      %p988 = pneg %p416
      %p989 = pneg %p413
      %p990 = pneg %p437
      %p991 = pneg %p434
      %p992 = pneg %p458
      %p993 = pneg %p455
      %p994 = pneg %p479
      %p995 = pneg %p476
      %p996 = pneg %p500
      %p997 = pneg %p497
      %p998 = pneg %p521
      %p999 = pneg %p518
      %p1000 = pneg %p542
      %p1001 = pneg %p539
      %p1002 = pneg %p563
      %p1003 = pneg %p560
      %p1004 = pneg %p584
      %p1005 = pneg %p581
      %p1006 = pneg %p605
      %p1007 = pneg %p602
      %p1008 = pneg %p626
      %p1009 = pneg %p623
      %p1010 = pneg %p647
      %p1011 = pneg %p644
      %p1012 = pneg %p668
      %p1013 = pneg %p665
      %p1014 = pneg %p689
      %p1015 = pneg %p686
      %p1016 = pneg %p710
      %p1017 = pneg %p707
      %p1018 = pneg %p731
      %p1019 = pneg %p728
      %p1020 = pneg %p752
      %p1021 = pneg %p749
      %p1022 = pneg %p773
      %p1023 = pneg %p770
      %p1024 = pneg %p794
      %p1025 = pneg %p791
      %p1026 = pneg %p820
      %p1027 = pneg %p817
      %p1028 = scmp.lt.s32.totalorder %s80, 1
      %s1029 = scalar_select %p1028, %s80, 1
      %s1030 = smul.addr %s1029, 8
      %s1031 = scalar_lea.vmem %s69, %s1030
      %p1032 = scmp.lt.s32.totalorder %s80, 1
      %s1033 = scalar_select %p1032, %s80, 1
      %s1034 = smul.addr %s1033, 4
      %s1035 = smul.addr %s1034, 8
      %s1036 = scalar_lea.vmem %s1, %s1035
      %p1037 = scmp.lt.s32.totalorder %s80, 1
      %s1038 = scalar_select %p1037, %s80, 1
      %s1039 = smul.addr %s1038, 8
      %s1040 = scalar_lea.vmem %s69, %s1039
      %v1041 = vlaneseq
      %v1042 = vand.u32 %v1041, 127
      %vm1043 = vcmp.lt.s32.totalorder %v1042, 5
      %v1044 = vsel %vm1043, 0.0, -1e+30
      %v1045 = vld [vmem:[%s1036] sm:$0xff]
      %v1046 = vld [vmem:[%s1036 + $0x8] sm:$0xff]
      %v1047 = vld [vmem:[%s1036 + $0x10] sm:$0xff]
      %v1048 = vld [vmem:[%s1036 + $0x18] sm:$0xff]
      %v1049 = vld [vmem:[%s3] sm:$0xff]
      %v1050 = vld [vmem:[%s3 + $0x8] sm:$0xff]
      %v1051 = vld [vmem:[%s3 + $0x10] sm:$0xff]
      %v1052 = vld [vmem:[%s3 + $0x18] sm:$0xff]
      %v1053 = vld [vmem:[%s3 + $0x20] sm:$0xff]
      %v1054 = vld [vmem:[%s3 + $0x28] sm:$0xff]
      %v1055 = vld [vmem:[%s3 + $0x30] sm:$0xff]
      %v1056 = vld [vmem:[%s3 + $0x38] sm:$0xff]
      %v1057 = vld [vmem:[%s3 + $0x40] sm:$0xff]
      %v1058 = vld [vmem:[%s3 + $0x48] sm:$0xff]
      %v1059 = vld [vmem:[%s3 + $0x50] sm:$0xff]
      %v1060 = vld [vmem:[%s3 + $0x58] sm:$0xff]
      %v1061 = vld [vmem:[%s3 + $0x60] sm:$0xff]
      %v1062 = vld [vmem:[%s3 + $0x68] sm:$0xff]
      %v1063 = vld [vmem:[%s3 + $0x70] sm:$0xff]
      %v1064 = vld [vmem:[%s3 + $0x78] sm:$0xff]
      %v1065 = vld [vmem:[%s3 + $0x80] sm:$0xff]
      %v1066 = vld [vmem:[%s3 + $0x88] sm:$0xff]
      %v1067 = vld [vmem:[%s3 + $0x90] sm:$0xff]
      %v1068 = vld [vmem:[%s3 + $0x98] sm:$0xff]
      %v1069 = vld [vmem:[%s3 + $0xa0] sm:$0xff]
      %v1070 = vld [vmem:[%s3 + $0xa8] sm:$0xff]
      %v1071 = vld [vmem:[%s3 + $0xb0] sm:$0xff]
      %v1072 = vld [vmem:[%s3 + $0xb8] sm:$0xff]
      %v1073 = vld [vmem:[%s3 + $0xc0] sm:$0xff]
      %v1074 = vld [vmem:[%s3 + $0xc8] sm:$0xff]
      %v1075 = vld [vmem:[%s3 + $0xd0] sm:$0xff]
      %v1076 = vld [vmem:[%s3 + $0xd8] sm:$0xff]
      %v1077 = vld [vmem:[%s3 + $0xe0] sm:$0xff]
      %v1078 = vld [vmem:[%s3 + $0xe8] sm:$0xff]
      %v1079 = vld [vmem:[%s3 + $0xf0] sm:$0xff]
      %v1080 = vld [vmem:[%s3 + $0xf8] sm:$0xff]
      %v1081 = vld [vmem:[%s3 + $0x100] sm:$0xff]
      %v1082 = vld [vmem:[%s3 + $0x108] sm:$0xff]
      %v1083 = vld [vmem:[%s3 + $0x110] sm:$0xff]
      %v1084 = vld [vmem:[%s3 + $0x118] sm:$0xff]
      %v1085 = vld [vmem:[%s3 + $0x120] sm:$0xff]
      %v1086 = vld [vmem:[%s3 + $0x128] sm:$0xff]
      %v1087 = vld [vmem:[%s3 + $0x130] sm:$0xff]
      %v1088 = vld [vmem:[%s3 + $0x138] sm:$0xff]
      %v1089 = vld [vmem:[%s3 + $0x140] sm:$0xff]
      %v1090 = vld [vmem:[%s3 + $0x148] sm:$0xff]
      %v1091 = vld [vmem:[%s3 + $0x150] sm:$0xff]
      %v1092 = vld [vmem:[%s3 + $0x158] sm:$0xff]
      %v1093 = vld [vmem:[%s3 + $0x160] sm:$0xff]
      %v1094 = vld [vmem:[%s3 + $0x168] sm:$0xff]
      %v1095 = vld [vmem:[%s3 + $0x170] sm:$0xff]
      %v1096 = vld [vmem:[%s3 + $0x178] sm:$0xff]
      %v1097 = vld [vmem:[%s3 + $0x180] sm:$0xff]
      %v1098 = vld [vmem:[%s3 + $0x188] sm:$0xff]
      %v1099 = vld [vmem:[%s3 + $0x190] sm:$0xff]
      %v1100 = vld [vmem:[%s3 + $0x198] sm:$0xff]
      %v1101 = vld [vmem:[%s3 + $0x1a0] sm:$0xff]
      %v1102 = vld [vmem:[%s3 + $0x1a8] sm:$0xff]
      %v1103 = vld [vmem:[%s3 + $0x1b0] sm:$0xff]
      %v1104 = vld [vmem:[%s3 + $0x1b8] sm:$0xff]
      %v1105 = vld [vmem:[%s3 + $0x1c0] sm:$0xff]
      %v1106 = vld [vmem:[%s3 + $0x1c8] sm:$0xff]
      %v1107 = vld [vmem:[%s3 + $0x1d0] sm:$0xff]
      %v1108 = vld [vmem:[%s3 + $0x1d8] sm:$0xff]
      %v1109 = vld [vmem:[%s3 + $0x1e0] sm:$0xff]
      %v1110 = vld [vmem:[%s3 + $0x1e8] sm:$0xff]
      %v1111 = vld [vmem:[%s3 + $0x1f0] sm:$0xff]
      %v1112 = vld [vmem:[%s3 + $0x1f8] sm:$0xff]
      %v1113 = vld [vmem:[%s5] sm:$0xff]
      %1114 = vmatpush.msra.mxu0 %v1064
      %1115 = vmatpush.msra.mxu0 %v1063
      %1116 = vmatpush.msra.mxu0 %v1062
      %1117 = vmatpush.msra.mxu0 %v1061
      %1118 = vmatpush.msra.mxu0 %v1060
      %1119 = vmatpush.msra.mxu0 %v1059
      %1120 = vmatpush.msra.mxu0 %v1058
      %1121 = vmatpush.msra.mxu0 %v1057
      %1122 = vmatpush.msra.mxu0 %v1056
      %1123 = vmatpush.msra.mxu0 %v1055
      %1124 = vmatpush.msra.mxu0 %v1054
      %1125 = vmatpush.msra.mxu0 %v1053
      %1126 = vmatpush.msra.mxu0 %v1052
      %1127 = vmatpush.msra.mxu0 %v1051
      %1128 = vmatpush.msra.mxu0 %v1050
      %1129 = vmatpush.msra.mxu0 %v1049
      %1130 = vmatmul.f32.gmra.mxu0 %v1045
      %v1131 = vpop.f32.mrf.mxu0
      %v1132 = vadd.f32 %v1113, %v1131
      %1133 = vdwg.mxu0
      %1134 = vmatpush.msra.mxu0 %v1080
      %1135 = vmatpush.msra.mxu0 %v1079
      %1136 = vmatpush.msra.mxu0 %v1078
      %1137 = vmatpush.msra.mxu0 %v1077
      %1138 = vmatpush.msra.mxu0 %v1076
      %1139 = vmatpush.msra.mxu0 %v1075
      %1140 = vmatpush.msra.mxu0 %v1074
      %1141 = vmatpush.msra.mxu0 %v1073
      %1142 = vmatpush.msra.mxu0 %v1072
      %1143 = vmatpush.msra.mxu0 %v1071
      %1144 = vmatpush.msra.mxu0 %v1070
      %1145 = vmatpush.msra.mxu0 %v1069
      %1146 = vmatpush.msra.mxu0 %v1068
      %1147 = vmatpush.msra.mxu0 %v1067
      %1148 = vmatpush.msra.mxu0 %v1066
      %1149 = vmatpush.msra.mxu0 %v1065
      %1150 = vmatmul.f32.gmra.mxu0 %v1046
      %v1151 = vpop.f32.mrf.mxu0
      %v1152 = vadd.f32 %v1132, %v1151
      %1153 = vdwg.mxu0
      %1154 = vmatpush.msra.mxu0 %v1096
      %1155 = vmatpush.msra.mxu0 %v1095
      %1156 = vmatpush.msra.mxu0 %v1094
      %1157 = vmatpush.msra.mxu0 %v1093
      %1158 = vmatpush.msra.mxu0 %v1092
      %1159 = vmatpush.msra.mxu0 %v1091
      %1160 = vmatpush.msra.mxu0 %v1090
      %1161 = vmatpush.msra.mxu0 %v1089
      %1162 = vmatpush.msra.mxu0 %v1088
      %1163 = vmatpush.msra.mxu0 %v1087
      %1164 = vmatpush.msra.mxu0 %v1086
      %1165 = vmatpush.msra.mxu0 %v1085
      %1166 = vmatpush.msra.mxu0 %v1084
      %1167 = vmatpush.msra.mxu0 %v1083
      %1168 = vmatpush.msra.mxu0 %v1082
      %1169 = vmatpush.msra.mxu0 %v1081
      %1170 = vmatmul.f32.gmra.mxu0 %v1047
      %v1171 = vpop.f32.mrf.mxu0
      %v1172 = vadd.f32 %v1152, %v1171
      %1173 = vdwg.mxu0
      %1174 = vmatpush.msra.mxu0 %v1112
      %1175 = vmatpush.msra.mxu0 %v1111
      %1176 = vmatpush.msra.mxu0 %v1110
      %1177 = vmatpush.msra.mxu0 %v1109
      %1178 = vmatpush.msra.mxu0 %v1108
      %1179 = vmatpush.msra.mxu0 %v1107
      %1180 = vmatpush.msra.mxu0 %v1106
      %1181 = vmatpush.msra.mxu0 %v1105
      %1182 = vmatpush.msra.mxu0 %v1104
      %1183 = vmatpush.msra.mxu0 %v1103
      %1184 = vmatpush.msra.mxu0 %v1102
      %1185 = vmatpush.msra.mxu0 %v1101
      %1186 = vmatpush.msra.mxu0 %v1100
      %1187 = vmatpush.msra.mxu0 %v1099
      %1188 = vmatpush.msra.mxu0 %v1098
      %1189 = vmatpush.msra.mxu0 %v1097
      %1190 = vmatmul.f32.gmra.mxu0 %v1048
      %v1191 = vpop.f32.mrf.mxu0
      %v1192 = vadd.f32 %v1172, %v1191
      %1193 = vdwg.mxu0
      %v1194 = vld [vmem:[%s7] sm:$0x1]
      %v1195 = vld [vmem:[%s9] sm:$0x1]
      %v1196 = vld [vmem:[%s11] sm:$0xff]
      %v1197 = vld [vmem:[%s11 + $0x8] sm:$0xff]
      %v1198 = vld [vmem:[%s11 + $0x10] sm:$0xff]
      %v1199 = vld [vmem:[%s11 + $0x18] sm:$0xff]
      %v1200 = vld [vmem:[%s11 + $0x20] sm:$0xff]
      %v1201 = vld [vmem:[%s11 + $0x28] sm:$0xff]
      %v1202 = vld [vmem:[%s11 + $0x30] sm:$0xff]
      %v1203 = vld [vmem:[%s11 + $0x38] sm:$0xff]
      %v1204 = vld [vmem:[%s11 + $0x40] sm:$0xff]
      %v1205 = vld [vmem:[%s11 + $0x48] sm:$0xff]
      %v1206 = vld [vmem:[%s11 + $0x50] sm:$0xff]
      %v1207 = vld [vmem:[%s11 + $0x58] sm:$0xff]
      %v1208 = vld [vmem:[%s11 + $0x60] sm:$0xff]
      %v1209 = vld [vmem:[%s11 + $0x68] sm:$0xff]
      %v1210 = vld [vmem:[%s11 + $0x70] sm:$0xff]
      %v1211 = vld [vmem:[%s11 + $0x78] sm:$0xff]
      %v1212 = vld [vmem:[%s13] sm:$0x3]
      %v1213 = vld [vmem:[%s15] sm:$0xff]
      %v1214 = vld [vmem:[%s15 + $0x8] sm:$0xff]
      %v1215 = vld [vmem:[%s15 + $0x10] sm:$0xff]
      %v1216 = vld [vmem:[%s15 + $0x18] sm:$0xff]
      %v1217 = vld [vmem:[%s15 + $0x20] sm:$0xff]
      %v1218 = vld [vmem:[%s15 + $0x28] sm:$0xff]
      %v1219 = vld [vmem:[%s15 + $0x30] sm:$0xff]
      %v1220 = vld [vmem:[%s15 + $0x38] sm:$0xff]
      %v1221 = vld [vmem:[%s17] sm:$0x1]
      %v1222 = vld [vmem:[%s19] sm:$0x1]
      %v1223 = vld [vmem:[%s21] sm:$0x1]
      %v1224 = vld [vmem:[%s23] sm:$0xff]
      %v1225 = vld [vmem:[%s23 + $0x8] sm:$0xff]
      %v1226 = vld [vmem:[%s23 + $0x10] sm:$0xff]
      %v1227 = vld [vmem:[%s23 + $0x18] sm:$0xff]
      %v1228 = vld [vmem:[%s23 + $0x20] sm:$0xff]
      %v1229 = vld [vmem:[%s23 + $0x28] sm:$0xff]
      %v1230 = vld [vmem:[%s23 + $0x30] sm:$0xff]
      %v1231 = vld [vmem:[%s23 + $0x38] sm:$0xff]
      %v1232 = vld [vmem:[%s23 + $0x40] sm:$0xff]
      %v1233 = vld [vmem:[%s23 + $0x48] sm:$0xff]
      %v1234 = vld [vmem:[%s23 + $0x50] sm:$0xff]
      %v1235 = vld [vmem:[%s23 + $0x58] sm:$0xff]
      %v1236 = vld [vmem:[%s23 + $0x60] sm:$0xff]
      %v1237 = vld [vmem:[%s23 + $0x68] sm:$0xff]
      %v1238 = vld [vmem:[%s23 + $0x70] sm:$0xff]
      %v1239 = vld [vmem:[%s23 + $0x78] sm:$0xff]
      %v1240 = vld [vmem:[%s25] sm:$0x3]
      %v1241 = vld [vmem:[%s27] sm:$0xff]
      %v1242 = vld [vmem:[%s27 + $0x8] sm:$0xff]
      %v1243 = vld [vmem:[%s27 + $0x10] sm:$0xff]
      %v1244 = vld [vmem:[%s27 + $0x18] sm:$0xff]
      %v1245 = vld [vmem:[%s27 + $0x20] sm:$0xff]
      %v1246 = vld [vmem:[%s27 + $0x28] sm:$0xff]
      %v1247 = vld [vmem:[%s27 + $0x30] sm:$0xff]
      %v1248 = vld [vmem:[%s27 + $0x38] sm:$0xff]
      %v1249 = vld [vmem:[%s27 + $0x40] sm:$0xff]
      %v1250 = vld [vmem:[%s27 + $0x48] sm:$0xff]
      %v1251 = vld [vmem:[%s27 + $0x50] sm:$0xff]
      %v1252 = vld [vmem:[%s27 + $0x58] sm:$0xff]
      %v1253 = vld [vmem:[%s27 + $0x60] sm:$0xff]
      %v1254 = vld [vmem:[%s27 + $0x68] sm:$0xff]
      %v1255 = vld [vmem:[%s27 + $0x70] sm:$0xff]
      %v1256 = vld [vmem:[%s27 + $0x78] sm:$0xff]
      %v1257 = vld [vmem:[%s27 + $0x80] sm:$0xff]
      %v1258 = vld [vmem:[%s27 + $0x88] sm:$0xff]
      %v1259 = vld [vmem:[%s27 + $0x90] sm:$0xff]
      %v1260 = vld [vmem:[%s27 + $0x98] sm:$0xff]
      %v1261 = vld [vmem:[%s27 + $0xa0] sm:$0xff]
      %v1262 = vld [vmem:[%s27 + $0xa8] sm:$0xff]
      %v1263 = vld [vmem:[%s27 + $0xb0] sm:$0xff]
      %v1264 = vld [vmem:[%s27 + $0xb8] sm:$0xff]
      %v1265 = vld [vmem:[%s27 + $0xc0] sm:$0xff]
      %v1266 = vld [vmem:[%s27 + $0xc8] sm:$0xff]
      %v1267 = vld [vmem:[%s27 + $0xd0] sm:$0xff]
      %v1268 = vld [vmem:[%s27 + $0xd8] sm:$0xff]
      %v1269 = vld [vmem:[%s27 + $0xe0] sm:$0xff]
      %v1270 = vld [vmem:[%s27 + $0xe8] sm:$0xff]
      %v1271 = vld [vmem:[%s27 + $0xf0] sm:$0xff]
      %v1272 = vld [vmem:[%s27 + $0xf8] sm:$0xff]
      %v1273 = vld [vmem:[%s29] sm:$0x1]
      %vm1274 = vcmask 523264
      %v1275 = vsel %vm1274, %v1192, 0.0
      %1276 = vadd.xlane.f32.xlu0 %v1275
      %v1277 = vpop.xlane.xlu0 %1276
      %v1278 = vrcp.pop 64.0
      %v1279 = vmul.f32 64.0, %v1278
      %v1280 = vsub.f32 1.0, %v1279
      %v1281 = vmul.f32 %v1278, %v1280
      %v1282 = vadd.f32 %v1278, %v1281
      %vm1283 = vweird.f32 %v1278
      %v1284 = vsel %vm1283, %v1278, %v1282
      %v1285 = vmul.f32 %v1277, %v1284
      %v1286 = vsub.f32 %v1192, %v1285
      %v1287 = vmul.f32 %v1286, %v1286
      %v1288 = vsel %vm1274, %v1287, 0.0
      %1289 = vadd.xlane.f32.xlu0 %v1288
      %v1290 = vpop.xlane.xlu0 %1289
      %v1291 = vmul.f32 %v1290, %v1284
      %v1292 = vadd.f32 %v1291, 1e-05
      %v1293 = vrsqrt.pop %v1292
      %v1294 = vmul.f32 %v1293, %v1292
      %v1295 = vmul.f32 %v1294, %v1293
      %v1296 = vmul.f32 0.5, %v1295
      %v1297 = vsub.f32 1.5, %v1296
      %v1298 = vmul.f32 %v1293, %v1297
      %vm1299 = vweird.f32 %v1292
      %vm1300 = vweird.f32 %v1293
      %vm1301 = vmor %vm1299, %vm1300
      %v1302 = vsel %vm1301, %v1293, %v1298
      %v1303 = vmul.f32 %v1286, %v1302
      %v1305 = vperm.slane %v1194, 0
      %v1307 = vmul.f32 %v1303, %v1305
      %v1309 = vperm.slane %v1195, 0
      %v1311 = vadd.f32 %v1307, %v1309
      %v1313 = vperm.slane %v1212, 0
      %v1314 = vperm.slane %v1212, 1
      %v1318 = vsel %vm1274, %v1311, 0
      %1320 = vmatpush.msra.mxu0 0.0
      %1321 = vmatpush.msra.mxu0 0.0
      %1322 = vmatpush.msra.mxu0 0.0
      %1323 = vmatpush.msra.mxu0 0.0
      %1324 = vmatpush.msra.mxu0 0.0
      %1325 = vmatpush.msra.mxu0 0.0
      %1326 = vmatpush.msra.mxu0 0.0
      %1327 = vmatpush.msra.mxu0 0.0
      %1328 = vmatpush.msra.mxu0 %v1210
      %1329 = vmatpush.msra.mxu0 %v1208
      %1330 = vmatpush.msra.mxu0 %v1206
      %1331 = vmatpush.msra.mxu0 %v1204
      %1332 = vmatpush.msra.mxu0 %v1202
      %1333 = vmatpush.msra.mxu0 %v1200
      %1334 = vmatpush.msra.mxu0 %v1198
      %1335 = vmatpush.msra.mxu0 %v1196
      %1336 = vmatmul.f32.gmra.mxu0 %v1318
      %v1337 = vpop.f32.mrf.mxu0
      %v1338 = vadd.f32 %v1313, %v1337
      %1339 = vdwg.mxu0
      %1340 = vmatpush.msra.mxu0 0.0
      %1341 = vmatpush.msra.mxu0 0.0
      %1342 = vmatpush.msra.mxu0 0.0
      %1343 = vmatpush.msra.mxu0 0.0
      %1344 = vmatpush.msra.mxu0 0.0
      %1345 = vmatpush.msra.mxu0 0.0
      %1346 = vmatpush.msra.mxu0 0.0
      %1347 = vmatpush.msra.mxu0 0.0
      %1348 = vmatpush.msra.mxu0 %v1211
      %1349 = vmatpush.msra.mxu0 %v1209
      %1350 = vmatpush.msra.mxu0 %v1207
      %1351 = vmatpush.msra.mxu0 %v1205
      %1352 = vmatpush.msra.mxu0 %v1203
      %1353 = vmatpush.msra.mxu0 %v1201
      %1354 = vmatpush.msra.mxu0 %v1199
      %1355 = vmatpush.msra.mxu0 %v1197
      %1356 = vmatmul.f32.gmra.mxu0 %v1318
      %v1357 = vpop.f32.mrf.mxu0
      %v1358 = vadd.f32 %v1314, %v1357
      %1359 = vdwg.mxu0
      %1361 = vrot.lane.b32.xlu0 %v1338, 64
      %v1362 = vpop.permute.xlu0 %1361
      %vm1363 = vcmask 130048
      %v1364 = vsel %vm1363, %v1338, 0
      %v1366 = vsel %vm1363, %v1362, 0
      %1368 = vmatpush.xpose.msra.mxu0 0.0
      %1369 = vmatpush.xpose.msra.mxu0 0.0
      %1370 = vmatpush.xpose.msra.mxu0 0.0
      %1371 = vmatpush.xpose.msra.mxu0 0.0
      %1372 = vmatpush.xpose.msra.mxu0 0.0
      %1373 = vmatpush.xpose.msra.mxu0 0.0
      %1374 = vmatpush.xpose.msra.mxu0 0.0
      %1375 = vmatpush.xpose.msra.mxu0 0.0
      %1376 = vmatpush.xpose.msra.mxu0 0.0
      %1377 = vmatpush.xpose.msra.mxu0 0.0
      %1378 = vmatpush.xpose.msra.mxu0 0.0
      %1379 = vmatpush.xpose.msra.mxu0 0.0
      %1380 = vmatpush.xpose.msra.mxu0 0.0
      %1381 = vmatpush.xpose.msra.mxu0 0.0
      %1382 = vmatpush.xpose.msra.mxu0 0.0
      %1383 = vmatpush.xpose.msra.mxu0 %v1366
      %1384 = vmatmul.f32.gmra.mxu0 %v1364
      %v1385 = vpop.f32.mrf.mxu0
      %v1386 = vadd.f32 %v1044, %v1385
      %1387 = vdwg.mxu0
      %vm1388 = vcmask 64512
      %v1389 = vsel %vm1388, %v1386, -inf
      %1390 = vmax.xlane.f32.xlu0 %v1389
      %v1391 = vpop.xlane.xlu0 %1390
      %v1392 = vsub.f32 %v1386, %v1391
      %v1393 = vmul.f32 %v1392, 1.442695
      %v1394 = vpow.pop %v1393
      %v1395 = vsel %vm1388, %v1394, 0.0
      %1396 = vadd.xlane.f32.xlu0 %v1395
      %v1397 = vpop.xlane.xlu0 %1396
      %v1398 = vrcp.pop %v1397
      %v1399 = vmul.f32 %v1394, %v1398
      %v1401 = vsel %vm1388, %v1399, 0
      %1403 = vmatpush.msra.mxu0 0.0
      %1404 = vmatpush.msra.mxu0 0.0
      %1405 = vmatpush.msra.mxu0 0.0
      %1406 = vmatpush.msra.mxu0 0.0
      %1407 = vmatpush.msra.mxu0 0.0
      %1408 = vmatpush.msra.mxu0 0.0
      %1409 = vmatpush.msra.mxu0 0.0
      %1410 = vmatpush.msra.mxu0 0.0
      %1411 = vmatpush.msra.mxu0 0.0
      %1412 = vmatpush.msra.mxu0 0.0
      %1413 = vmatpush.msra.mxu0 0.0
      %1414 = vmatpush.msra.mxu0 0.0
      %1415 = vmatpush.msra.mxu0 0.0
      %1416 = vmatpush.msra.mxu0 0.0
      %1417 = vmatpush.msra.mxu0 0.0
      %1418 = vmatpush.msra.mxu0 %v1358
      %1419 = vmatmul.f32.gmra.mxu0 %v1401
      %v1420 = vpop.f32.mrf.mxu0
      %v1421 = vadd.f32 0.0, %v1420
      %1422 = vdwg.mxu0
      %1423 = vrot.lane.b32.xlu0 %v1338, 112
      %v1424 = vpop.permute.xlu0 %1423
      %1425 = vrot.lane.b32.xlu0 %v1338, 48
      %v1426 = vpop.permute.xlu0 %1425
      %v1427 = vsel %vm1363, %v1424, 0
      %v1429 = vsel %vm1363, %v1426, 0
      %1431 = vmatpush.xpose.msra.mxu0 0.0
      %1432 = vmatpush.xpose.msra.mxu0 0.0
      %1433 = vmatpush.xpose.msra.mxu0 0.0
      %1434 = vmatpush.xpose.msra.mxu0 0.0
      %1435 = vmatpush.xpose.msra.mxu0 0.0
      %1436 = vmatpush.xpose.msra.mxu0 0.0
      %1437 = vmatpush.xpose.msra.mxu0 0.0
      %1438 = vmatpush.xpose.msra.mxu0 0.0
      %1439 = vmatpush.xpose.msra.mxu0 0.0
      %1440 = vmatpush.xpose.msra.mxu0 0.0
      %1441 = vmatpush.xpose.msra.mxu0 0.0
      %1442 = vmatpush.xpose.msra.mxu0 0.0
      %1443 = vmatpush.xpose.msra.mxu0 0.0
      %1444 = vmatpush.xpose.msra.mxu0 0.0
      %1445 = vmatpush.xpose.msra.mxu0 0.0
      %1446 = vmatpush.xpose.msra.mxu0 %v1429
      %1447 = vmatmul.f32.gmra.mxu0 %v1427
      %v1448 = vpop.f32.mrf.mxu0
      %v1449 = vadd.f32 %v1044, %v1448
      %1450 = vdwg.mxu0
      %v1451 = vsel %vm1388, %v1449, -inf
      %1452 = vmax.xlane.f32.xlu0 %v1451
      %v1453 = vpop.xlane.xlu0 %1452
      %v1454 = vsub.f32 %v1449, %v1453
      %v1455 = vmul.f32 %v1454, 1.442695
      %v1456 = vpow.pop %v1455
      %v1457 = vsel %vm1388, %v1456, 0.0
      %1458 = vadd.xlane.f32.xlu0 %v1457
      %v1459 = vpop.xlane.xlu0 %1458
      %v1460 = vrcp.pop %v1459
      %v1461 = vmul.f32 %v1456, %v1460
      %1463 = vrot.lane.b32.xlu0 %v1358, 112
      %v1464 = vpop.permute.xlu0 %1463
      %v1467 = vsel %vm1388, %v1461, 0
      %1469 = vmatpush.msra.mxu0 0.0
      %1470 = vmatpush.msra.mxu0 0.0
      %1471 = vmatpush.msra.mxu0 0.0
      %1472 = vmatpush.msra.mxu0 0.0
      %1473 = vmatpush.msra.mxu0 0.0
      %1474 = vmatpush.msra.mxu0 0.0
      %1475 = vmatpush.msra.mxu0 0.0
      %1476 = vmatpush.msra.mxu0 0.0
      %1477 = vmatpush.msra.mxu0 0.0
      %1478 = vmatpush.msra.mxu0 0.0
      %1479 = vmatpush.msra.mxu0 0.0
      %1480 = vmatpush.msra.mxu0 0.0
      %1481 = vmatpush.msra.mxu0 0.0
      %1482 = vmatpush.msra.mxu0 0.0
      %1483 = vmatpush.msra.mxu0 0.0
      %1484 = vmatpush.msra.mxu0 %v1464
      %1485 = vmatmul.f32.gmra.mxu0 %v1467
      %v1486 = vpop.f32.mrf.mxu0
      %v1487 = vadd.f32 0.0, %v1486
      %1488 = vdwg.mxu0
      %v1490 = vsel %vm1363, %v1487, 0
      %1492 = vmatpush.msra.mxu0 0.0
      %1493 = vmatpush.msra.mxu0 0.0
      %1494 = vmatpush.msra.mxu0 0.0
      %1495 = vmatpush.msra.mxu0 0.0
      %1496 = vmatpush.msra.mxu0 0.0
      %1497 = vmatpush.msra.mxu0 0.0
      %1498 = vmatpush.msra.mxu0 0.0
      %1499 = vmatpush.msra.mxu0 0.0
      %1500 = vmatpush.msra.mxu0 0.0
      %1501 = vmatpush.msra.mxu0 0.0
      %1502 = vmatpush.msra.mxu0 0.0
      %1503 = vmatpush.msra.mxu0 0.0
      %1504 = vmatpush.msra.mxu0 0.0
      %1505 = vmatpush.msra.mxu0 0.0
      %1506 = vmatpush.msra.mxu0 %v1216
      %1507 = vmatpush.msra.mxu0 %v1215
      %1508 = vmatmul.f32.gmra.mxu0 %v1490
      %v1509 = vpop.f32.mrf.mxu0
      %v1510 = vadd.f32 0.0, %v1509
      %1511 = vdwg.mxu0
      %v1513 = vsel %vm1363, %v1421, 0
      %1515 = vmatpush.msra.mxu0 0.0
      %1516 = vmatpush.msra.mxu0 0.0
      %1517 = vmatpush.msra.mxu0 0.0
      %1518 = vmatpush.msra.mxu0 0.0
      %1519 = vmatpush.msra.mxu0 0.0
      %1520 = vmatpush.msra.mxu0 0.0
      %1521 = vmatpush.msra.mxu0 0.0
      %1522 = vmatpush.msra.mxu0 0.0
      %1523 = vmatpush.msra.mxu0 0.0
      %1524 = vmatpush.msra.mxu0 0.0
      %1525 = vmatpush.msra.mxu0 0.0
      %1526 = vmatpush.msra.mxu0 0.0
      %1527 = vmatpush.msra.mxu0 0.0
      %1528 = vmatpush.msra.mxu0 0.0
      %1529 = vmatpush.msra.mxu0 %v1214
      %1530 = vmatpush.msra.mxu0 %v1213
      %1531 = vmatmul.f32.gmra.mxu0 %v1513
      %v1532 = vpop.f32.mrf.mxu0
      %v1533 = vadd.f32 %v1510, %v1532
      %1534 = vdwg.mxu0
      %1535 = vrot.lane.b32.xlu0 %v1338, 96
      %v1536 = vpop.permute.xlu0 %1535
      %1537 = vrot.lane.b32.xlu0 %v1338, 32
      %v1538 = vpop.permute.xlu0 %1537
      %v1539 = vsel %vm1363, %v1536, 0
      %v1541 = vsel %vm1363, %v1538, 0
      %1543 = vmatpush.xpose.msra.mxu0 0.0
      %1544 = vmatpush.xpose.msra.mxu0 0.0
      %1545 = vmatpush.xpose.msra.mxu0 0.0
      %1546 = vmatpush.xpose.msra.mxu0 0.0
      %1547 = vmatpush.xpose.msra.mxu0 0.0
      %1548 = vmatpush.xpose.msra.mxu0 0.0
      %1549 = vmatpush.xpose.msra.mxu0 0.0
      %1550 = vmatpush.xpose.msra.mxu0 0.0
      %1551 = vmatpush.xpose.msra.mxu0 0.0
      %1552 = vmatpush.xpose.msra.mxu0 0.0
      %1553 = vmatpush.xpose.msra.mxu0 0.0
      %1554 = vmatpush.xpose.msra.mxu0 0.0
      %1555 = vmatpush.xpose.msra.mxu0 0.0
      %1556 = vmatpush.xpose.msra.mxu0 0.0
      %1557 = vmatpush.xpose.msra.mxu0 0.0
      %1558 = vmatpush.xpose.msra.mxu0 %v1541
      %1559 = vmatmul.f32.gmra.mxu0 %v1539
      %v1560 = vpop.f32.mrf.mxu0
      %v1561 = vadd.f32 %v1044, %v1560
      %1562 = vdwg.mxu0
      %v1563 = vsel %vm1388, %v1561, -inf
      %1564 = vmax.xlane.f32.xlu0 %v1563
      %v1565 = vpop.xlane.xlu0 %1564
      %v1566 = vsub.f32 %v1561, %v1565
      %v1567 = vmul.f32 %v1566, 1.442695
      %v1568 = vpow.pop %v1567
      %v1569 = vsel %vm1388, %v1568, 0.0
      %1570 = vadd.xlane.f32.xlu0 %v1569
      %v1571 = vpop.xlane.xlu0 %1570
      %v1572 = vrcp.pop %v1571
      %v1573 = vmul.f32 %v1568, %v1572
      %1574 = vrot.lane.b32.xlu0 %v1358, 96
      %v1575 = vpop.permute.xlu0 %1574
      %v1578 = vsel %vm1388, %v1573, 0
      %1580 = vmatpush.msra.mxu0 0.0
      %1581 = vmatpush.msra.mxu0 0.0
      %1582 = vmatpush.msra.mxu0 0.0
      %1583 = vmatpush.msra.mxu0 0.0
      %1584 = vmatpush.msra.mxu0 0.0
      %1585 = vmatpush.msra.mxu0 0.0
      %1586 = vmatpush.msra.mxu0 0.0
      %1587 = vmatpush.msra.mxu0 0.0
      %1588 = vmatpush.msra.mxu0 0.0
      %1589 = vmatpush.msra.mxu0 0.0
      %1590 = vmatpush.msra.mxu0 0.0
      %1591 = vmatpush.msra.mxu0 0.0
      %1592 = vmatpush.msra.mxu0 0.0
      %1593 = vmatpush.msra.mxu0 0.0
      %1594 = vmatpush.msra.mxu0 0.0
      %1595 = vmatpush.msra.mxu0 %v1575
      %1596 = vmatmul.f32.gmra.mxu0 %v1578
      %v1597 = vpop.f32.mrf.mxu0
      %v1598 = vadd.f32 0.0, %v1597
      %1599 = vdwg.mxu0
      %v1601 = vsel %vm1363, %v1598, 0
      %1603 = vmatpush.msra.mxu0 0.0
      %1604 = vmatpush.msra.mxu0 0.0
      %1605 = vmatpush.msra.mxu0 0.0
      %1606 = vmatpush.msra.mxu0 0.0
      %1607 = vmatpush.msra.mxu0 0.0
      %1608 = vmatpush.msra.mxu0 0.0
      %1609 = vmatpush.msra.mxu0 0.0
      %1610 = vmatpush.msra.mxu0 0.0
      %1611 = vmatpush.msra.mxu0 0.0
      %1612 = vmatpush.msra.mxu0 0.0
      %1613 = vmatpush.msra.mxu0 0.0
      %1614 = vmatpush.msra.mxu0 0.0
      %1615 = vmatpush.msra.mxu0 0.0
      %1616 = vmatpush.msra.mxu0 0.0
      %1617 = vmatpush.msra.mxu0 %v1218
      %1618 = vmatpush.msra.mxu0 %v1217
      %1619 = vmatmul.f32.gmra.mxu0 %v1601
      %v1620 = vpop.f32.mrf.mxu0
      %v1621 = vadd.f32 0.0, %v1620
      %1622 = vdwg.mxu0
      %v1623 = vadd.f32 %v1533, %v1621
      %1624 = vrot.lane.b32.xlu0 %v1338, 80
      %v1625 = vpop.permute.xlu0 %1624
      %1626 = vrot.lane.b32.xlu0 %v1338, 16
      %v1627 = vpop.permute.xlu0 %1626
      %v1628 = vsel %vm1363, %v1625, 0
      %v1630 = vsel %vm1363, %v1627, 0
      %1632 = vmatpush.xpose.msra.mxu0 0.0
      %1633 = vmatpush.xpose.msra.mxu0 0.0
      %1634 = vmatpush.xpose.msra.mxu0 0.0
      %1635 = vmatpush.xpose.msra.mxu0 0.0
      %1636 = vmatpush.xpose.msra.mxu0 0.0
      %1637 = vmatpush.xpose.msra.mxu0 0.0
      %1638 = vmatpush.xpose.msra.mxu0 0.0
      %1639 = vmatpush.xpose.msra.mxu0 0.0
      %1640 = vmatpush.xpose.msra.mxu0 0.0
      %1641 = vmatpush.xpose.msra.mxu0 0.0
      %1642 = vmatpush.xpose.msra.mxu0 0.0
      %1643 = vmatpush.xpose.msra.mxu0 0.0
      %1644 = vmatpush.xpose.msra.mxu0 0.0
      %1645 = vmatpush.xpose.msra.mxu0 0.0
      %1646 = vmatpush.xpose.msra.mxu0 0.0
      %1647 = vmatpush.xpose.msra.mxu0 %v1630
      %1648 = vmatmul.f32.gmra.mxu0 %v1628
      %v1649 = vpop.f32.mrf.mxu0
      %v1650 = vadd.f32 %v1044, %v1649
      %1651 = vdwg.mxu0
      %v1652 = vsel %vm1388, %v1650, -inf
      %1653 = vmax.xlane.f32.xlu0 %v1652
      %v1654 = vpop.xlane.xlu0 %1653
      %v1655 = vsub.f32 %v1650, %v1654
      %v1656 = vmul.f32 %v1655, 1.442695
      %v1657 = vpow.pop %v1656
      %v1658 = vsel %vm1388, %v1657, 0.0
      %1659 = vadd.xlane.f32.xlu0 %v1658
      %v1660 = vpop.xlane.xlu0 %1659
      %v1661 = vrcp.pop %v1660
      %v1662 = vmul.f32 %v1657, %v1661
      %1663 = vrot.lane.b32.xlu0 %v1358, 80
      %v1664 = vpop.permute.xlu0 %1663
      %v1667 = vsel %vm1388, %v1662, 0
      %1669 = vmatpush.msra.mxu0 0.0
      %1670 = vmatpush.msra.mxu0 0.0
      %1671 = vmatpush.msra.mxu0 0.0
      %1672 = vmatpush.msra.mxu0 0.0
      %1673 = vmatpush.msra.mxu0 0.0
      %1674 = vmatpush.msra.mxu0 0.0
      %1675 = vmatpush.msra.mxu0 0.0
      %1676 = vmatpush.msra.mxu0 0.0
      %1677 = vmatpush.msra.mxu0 0.0
      %1678 = vmatpush.msra.mxu0 0.0
      %1679 = vmatpush.msra.mxu0 0.0
      %1680 = vmatpush.msra.mxu0 0.0
      %1681 = vmatpush.msra.mxu0 0.0
      %1682 = vmatpush.msra.mxu0 0.0
      %1683 = vmatpush.msra.mxu0 0.0
      %1684 = vmatpush.msra.mxu0 %v1664
      %1685 = vmatmul.f32.gmra.mxu0 %v1667
      %v1686 = vpop.f32.mrf.mxu0
      %v1687 = vadd.f32 0.0, %v1686
      %1688 = vdwg.mxu0
      %v1690 = vsel %vm1363, %v1687, 0
      %1692 = vmatpush.msra.mxu0 0.0
      %1693 = vmatpush.msra.mxu0 0.0
      %1694 = vmatpush.msra.mxu0 0.0
      %1695 = vmatpush.msra.mxu0 0.0
      %1696 = vmatpush.msra.mxu0 0.0
      %1697 = vmatpush.msra.mxu0 0.0
      %1698 = vmatpush.msra.mxu0 0.0
      %1699 = vmatpush.msra.mxu0 0.0
      %1700 = vmatpush.msra.mxu0 0.0
      %1701 = vmatpush.msra.mxu0 0.0
      %1702 = vmatpush.msra.mxu0 0.0
      %1703 = vmatpush.msra.mxu0 0.0
      %1704 = vmatpush.msra.mxu0 0.0
      %1705 = vmatpush.msra.mxu0 0.0
      %1706 = vmatpush.msra.mxu0 %v1220
      %1707 = vmatpush.msra.mxu0 %v1219
      %1708 = vmatmul.f32.gmra.mxu0 %v1690
      %v1709 = vpop.f32.mrf.mxu0
      %v1710 = vadd.f32 0.0, %v1709
      %1711 = vdwg.mxu0
      %v1712 = vadd.f32 %v1623, %v1710
      %v1713 = vadd.f32 %v1192, %v1712
      %v1715 = vperm.slane %v1221, 0
      %v1717 = vadd.f32 %v1713, %v1715
      %v1718 = vsel %vm1274, %v1717, 0.0
      %1719 = vadd.xlane.f32.xlu0 %v1718
      %v1720 = vpop.xlane.xlu0 %1719
      %v1721 = vmul.f32 %v1720, %v1284
      %v1722 = vsub.f32 %v1717, %v1721
      %v1723 = vmul.f32 %v1722, %v1722
      %v1724 = vsel %vm1274, %v1723, 0.0
      %1725 = vadd.xlane.f32.xlu0 %v1724
      %v1726 = vpop.xlane.xlu0 %1725
      %v1727 = vmul.f32 %v1726, %v1284
      %v1728 = vadd.f32 %v1727, 1e-05
      %v1729 = vrsqrt.pop %v1728
      %v1730 = vmul.f32 %v1729, %v1728
      %v1731 = vmul.f32 %v1730, %v1729
      %v1732 = vmul.f32 0.5, %v1731
      %v1733 = vsub.f32 1.5, %v1732
      %v1734 = vmul.f32 %v1729, %v1733
      %vm1735 = vweird.f32 %v1728
      %vm1736 = vweird.f32 %v1729
      %vm1737 = vmor %vm1735, %vm1736
      %v1738 = vsel %vm1737, %v1729, %v1734
      %v1739 = vmul.f32 %v1722, %v1738
      %v1741 = vperm.slane %v1222, 0
      %v1743 = vmul.f32 %v1739, %v1741
      %v1745 = vperm.slane %v1223, 0
      %v1747 = vadd.f32 %v1743, %v1745
      %v1749 = vperm.slane %v1240, 0
      %v1750 = vperm.slane %v1240, 1
      %v1754 = vsel %vm1274, %v1747, 0
      %1756 = vmatpush.msra.mxu0 0.0
      %1757 = vmatpush.msra.mxu0 0.0
      %1758 = vmatpush.msra.mxu0 0.0
      %1759 = vmatpush.msra.mxu0 0.0
      %1760 = vmatpush.msra.mxu0 0.0
      %1761 = vmatpush.msra.mxu0 0.0
      %1762 = vmatpush.msra.mxu0 0.0
      %1763 = vmatpush.msra.mxu0 0.0
      %1764 = vmatpush.msra.mxu0 %v1238
      %1765 = vmatpush.msra.mxu0 %v1236
      %1766 = vmatpush.msra.mxu0 %v1234
      %1767 = vmatpush.msra.mxu0 %v1232
      %1768 = vmatpush.msra.mxu0 %v1230
      %1769 = vmatpush.msra.mxu0 %v1228
      %1770 = vmatpush.msra.mxu0 %v1226
      %1771 = vmatpush.msra.mxu0 %v1224
      %1772 = vmatmul.f32.gmra.mxu0 %v1754
      %v1773 = vpop.f32.mrf.mxu0
      %v1774 = vadd.f32 %v1749, %v1773
      %1775 = vdwg.mxu0
      %1776 = vmatpush.msra.mxu0 0.0
      %1777 = vmatpush.msra.mxu0 0.0
      %1778 = vmatpush.msra.mxu0 0.0
      %1779 = vmatpush.msra.mxu0 0.0
      %1780 = vmatpush.msra.mxu0 0.0
      %1781 = vmatpush.msra.mxu0 0.0
      %1782 = vmatpush.msra.mxu0 0.0
      %1783 = vmatpush.msra.mxu0 0.0
      %1784 = vmatpush.msra.mxu0 %v1239
      %1785 = vmatpush.msra.mxu0 %v1237
      %1786 = vmatpush.msra.mxu0 %v1235
      %1787 = vmatpush.msra.mxu0 %v1233
      %1788 = vmatpush.msra.mxu0 %v1231
      %1789 = vmatpush.msra.mxu0 %v1229
      %1790 = vmatpush.msra.mxu0 %v1227
      %1791 = vmatpush.msra.mxu0 %v1225
      %1792 = vmatmul.f32.gmra.mxu0 %v1754
      %v1793 = vpop.f32.mrf.mxu0
      %v1794 = vadd.f32 %v1750, %v1793
      %1795 = vdwg.mxu0
      %v1796 = vmul.f32 %v1774, 0.5
      %v1797 = vmul.f32 %v1794, 0.5
      %v1798 = vmul.f32 %v1774, 0.70710677
      %v1799 = vmul.f32 %v1794, 0.70710677
      %vm1800 = vcmp.ge.f32.partialorder %v1798, 0.0
      %vm1801 = vcmp.ge.f32.partialorder %v1799, 0.0
      %v1802 = vsel %vm1800, 1.0, -1.0
      %v1803 = vsel %vm1801, 1.0, -1.0
      %v1804 = vand.u32 2147483647, %v1798
      %v1805 = vand.u32 2147483647, %v1799
      %v1806 = vmul.f32 %v1804, 0.3275911
      %v1807 = vmul.f32 %v1805, 0.3275911
      %v1808 = vadd.f32 %v1806, 1.0
      %v1809 = vadd.f32 %v1807, 1.0
      %v1810 = vrcp.pop %v1808
      %v1811 = vmul.f32 %v1808, %v1810
      %v1812 = vsub.f32 1.0, %v1811
      %v1813 = vmul.f32 %v1810, %v1812
      %v1814 = vadd.f32 %v1810, %v1813
      %vm1815 = vweird.f32 %v1808
      %vm1816 = vweird.f32 %v1810
      %vm1817 = vmor %vm1815, %vm1816
      %v1818 = vsel %vm1817, %v1810, %v1814
      %v1819 = vand.u32 2147483647, %v1808
      %vm1820 = vcmp.eq.f32.partialorder %v1819, 8.507059e+37
      %v1821 = vand.u32 %v1808, 2147483648
      %v1822 = vor.u32 1.1754944e-38, %v1821
      %v1823 = vsel %vm1820, %v1822, %v1818
      %v1824 = vmul.f32 1.0, %v1823
      %v1825 = vrcp.pop %v1809
      %v1826 = vmul.f32 %v1809, %v1825
      %v1827 = vsub.f32 1.0, %v1826
      %v1828 = vmul.f32 %v1825, %v1827
      %v1829 = vadd.f32 %v1825, %v1828
      %vm1830 = vweird.f32 %v1809
      %vm1831 = vweird.f32 %v1825
      %vm1832 = vmor %vm1830, %vm1831
      %v1833 = vsel %vm1832, %v1825, %v1829
      %v1834 = vand.u32 2147483647, %v1809
      %vm1835 = vcmp.eq.f32.partialorder %v1834, 8.507059e+37
      %v1836 = vand.u32 %v1809, 2147483648
      %v1837 = vor.u32 1.1754944e-38, %v1836
      %v1838 = vsel %vm1835, %v1837, %v1833
      %v1839 = vmul.f32 1.0, %v1838
      %v1840 = vmul.f32 %v1824, 1.0614054
      %v1841 = vmul.f32 %v1839, 1.0614054
      %v1842 = vadd.f32 %v1840, -1.4531521
      %v1843 = vadd.f32 %v1841, -1.4531521
      %v1844 = vmul.f32 %v1842, %v1824
      %v1845 = vmul.f32 %v1843, %v1839
      %v1846 = vadd.f32 %v1844, 1.4214138
      %v1847 = vadd.f32 %v1845, 1.4214138
      %v1848 = vmul.f32 %v1846, %v1824
      %v1849 = vmul.f32 %v1847, %v1839
      %v1850 = vadd.f32 %v1848, -0.28449672
      %v1851 = vadd.f32 %v1849, -0.28449672
      %v1852 = vmul.f32 %v1850, %v1824
      %v1853 = vmul.f32 %v1851, %v1839
      %v1854 = vadd.f32 %v1852, 0.2548296
      %v1855 = vadd.f32 %v1853, 0.2548296
      %v1856 = vmul.f32 %v1854, %v1824
      %v1857 = vmul.f32 %v1855, %v1839
      %v1858 = vsub.f32 0.0, %v1804
      %v1859 = vsub.f32 0.0, %v1805
      %v1860 = vmul.f32 %v1858, %v1804
      %v1861 = vmul.f32 %v1859, %v1805
      %v1862 = vmul.f32 %v1860, 1.442695
      %v1863 = vpow.pop %v1862
      %v1864 = vmul.f32 %v1861, 1.442695
      %v1865 = vpow.pop %v1864
      %v1866 = vmul.f32 %v1856, %v1863
      %v1867 = vmul.f32 %v1857, %v1865
      %v1868 = vsub.f32 1.0, %v1866
      %v1869 = vsub.f32 1.0, %v1867
      %v1870 = vmul.f32 %v1802, %v1868
      %v1871 = vmul.f32 %v1803, %v1869
      %v1872 = vadd.f32 %v1870, 1.0
      %v1873 = vadd.f32 %v1871, 1.0
      %v1874 = vmul.f32 %v1796, %v1872
      %v1875 = vmul.f32 %v1797, %v1873
      %v1877 = vperm.slane %v1273, 0
      %1879 = vmatpush.msra.mxu0 %v1256
      %1880 = vmatpush.msra.mxu0 %v1255
      %1881 = vmatpush.msra.mxu0 %v1254
      %1882 = vmatpush.msra.mxu0 %v1253
      %1883 = vmatpush.msra.mxu0 %v1252
      %1884 = vmatpush.msra.mxu0 %v1251
      %1885 = vmatpush.msra.mxu0 %v1250
      %1886 = vmatpush.msra.mxu0 %v1249
      %1887 = vmatpush.msra.mxu0 %v1248
      %1888 = vmatpush.msra.mxu0 %v1247
      %1889 = vmatpush.msra.mxu0 %v1246
      %1890 = vmatpush.msra.mxu0 %v1245
      %1891 = vmatpush.msra.mxu0 %v1244
      %1892 = vmatpush.msra.mxu0 %v1243
      %1893 = vmatpush.msra.mxu0 %v1242
      %1894 = vmatpush.msra.mxu0 %v1241
      %1895 = vmatmul.f32.gmra.mxu0 %v1874
      %v1896 = vpop.f32.mrf.mxu0
      %v1897 = vadd.f32 %v1877, %v1896
      %1898 = vdwg.mxu0
      %1899 = vmatpush.msra.mxu0 %v1272
      %1900 = vmatpush.msra.mxu0 %v1271
      %1901 = vmatpush.msra.mxu0 %v1270
      %1902 = vmatpush.msra.mxu0 %v1269
      %1903 = vmatpush.msra.mxu0 %v1268
      %1904 = vmatpush.msra.mxu0 %v1267
      %1905 = vmatpush.msra.mxu0 %v1266
      %1906 = vmatpush.msra.mxu0 %v1265
      %1907 = vmatpush.msra.mxu0 %v1264
      %1908 = vmatpush.msra.mxu0 %v1263
      %1909 = vmatpush.msra.mxu0 %v1262
      %1910 = vmatpush.msra.mxu0 %v1261
      %1911 = vmatpush.msra.mxu0 %v1260
      %1912 = vmatpush.msra.mxu0 %v1259
      %1913 = vmatpush.msra.mxu0 %v1258
      %1914 = vmatpush.msra.mxu0 %v1257
      %1915 = vmatmul.f32.gmra.mxu0 %v1875
      %v1916 = vpop.f32.mrf.mxu0
      %v1917 = vadd.f32 %v1897, %v1916
      %1918 = vdwg.mxu0
      %v1919 = vadd.f32 %v1717, %v1917
      %s1920 = scalar_lea.vmem %s7, 1
      %v1921 = vld [vmem:[%s1920] sm:$0x1]
      %s1922 = scalar_lea.vmem %s9, 1
      %v1923 = vld [vmem:[%s1922] sm:$0x1]
      %s1924 = scalar_lea.vmem %s11, 128
      %v1925 = vld [vmem:[%s1924] sm:$0xff]
      %v1926 = vld [vmem:[%s1924 + $0x8] sm:$0xff]
      %v1927 = vld [vmem:[%s1924 + $0x10] sm:$0xff]
      %v1928 = vld [vmem:[%s1924 + $0x18] sm:$0xff]
      %v1929 = vld [vmem:[%s1924 + $0x20] sm:$0xff]
      %v1930 = vld [vmem:[%s1924 + $0x28] sm:$0xff]
      %v1931 = vld [vmem:[%s1924 + $0x30] sm:$0xff]
      %v1932 = vld [vmem:[%s1924 + $0x38] sm:$0xff]
      %v1933 = vld [vmem:[%s1924 + $0x40] sm:$0xff]
      %v1934 = vld [vmem:[%s1924 + $0x48] sm:$0xff]
      %v1935 = vld [vmem:[%s1924 + $0x50] sm:$0xff]
      %v1936 = vld [vmem:[%s1924 + $0x58] sm:$0xff]
      %v1937 = vld [vmem:[%s1924 + $0x60] sm:$0xff]
      %v1938 = vld [vmem:[%s1924 + $0x68] sm:$0xff]
      %v1939 = vld [vmem:[%s1924 + $0x70] sm:$0xff]
      %v1940 = vld [vmem:[%s1924 + $0x78] sm:$0xff]
      %s1941 = scalar_lea.vmem %s13, 2
      %v1942 = vld [vmem:[%s1941] sm:$0x3]
      %s1943 = scalar_lea.vmem %s15, 64
      %v1944 = vld [vmem:[%s1943] sm:$0xff]
      %v1945 = vld [vmem:[%s1943 + $0x8] sm:$0xff]
      %v1946 = vld [vmem:[%s1943 + $0x10] sm:$0xff]
      %v1947 = vld [vmem:[%s1943 + $0x18] sm:$0xff]
      %v1948 = vld [vmem:[%s1943 + $0x20] sm:$0xff]
      %v1949 = vld [vmem:[%s1943 + $0x28] sm:$0xff]
      %v1950 = vld [vmem:[%s1943 + $0x30] sm:$0xff]
      %v1951 = vld [vmem:[%s1943 + $0x38] sm:$0xff]
      %s1952 = scalar_lea.vmem %s17, 1
      %v1953 = vld [vmem:[%s1952] sm:$0x1]
      %s1954 = scalar_lea.vmem %s19, 1
      %v1955 = vld [vmem:[%s1954] sm:$0x1]
      %s1956 = scalar_lea.vmem %s21, 1
      %v1957 = vld [vmem:[%s1956] sm:$0x1]
      %s1958 = scalar_lea.vmem %s23, 128
      %v1959 = vld [vmem:[%s1958] sm:$0xff]
      %v1960 = vld [vmem:[%s1958 + $0x8] sm:$0xff]
      %v1961 = vld [vmem:[%s1958 + $0x10] sm:$0xff]
      %v1962 = vld [vmem:[%s1958 + $0x18] sm:$0xff]
      %v1963 = vld [vmem:[%s1958 + $0x20] sm:$0xff]
      %v1964 = vld [vmem:[%s1958 + $0x28] sm:$0xff]
      %v1965 = vld [vmem:[%s1958 + $0x30] sm:$0xff]
      %v1966 = vld [vmem:[%s1958 + $0x38] sm:$0xff]
      %v1967 = vld [vmem:[%s1958 + $0x40] sm:$0xff]
      %v1968 = vld [vmem:[%s1958 + $0x48] sm:$0xff]
      %v1969 = vld [vmem:[%s1958 + $0x50] sm:$0xff]
      %v1970 = vld [vmem:[%s1958 + $0x58] sm:$0xff]
      %v1971 = vld [vmem:[%s1958 + $0x60] sm:$0xff]
      %v1972 = vld [vmem:[%s1958 + $0x68] sm:$0xff]
      %v1973 = vld [vmem:[%s1958 + $0x70] sm:$0xff]
      %v1974 = vld [vmem:[%s1958 + $0x78] sm:$0xff]
      %s1975 = scalar_lea.vmem %s25, 2
      %v1976 = vld [vmem:[%s1975] sm:$0x3]
      %s1977 = scalar_lea.vmem %s27, 256
      %v1978 = vld [vmem:[%s1977] sm:$0xff]
      %v1979 = vld [vmem:[%s1977 + $0x8] sm:$0xff]
      %v1980 = vld [vmem:[%s1977 + $0x10] sm:$0xff]
      %v1981 = vld [vmem:[%s1977 + $0x18] sm:$0xff]
      %v1982 = vld [vmem:[%s1977 + $0x20] sm:$0xff]
      %v1983 = vld [vmem:[%s1977 + $0x28] sm:$0xff]
      %v1984 = vld [vmem:[%s1977 + $0x30] sm:$0xff]
      %v1985 = vld [vmem:[%s1977 + $0x38] sm:$0xff]
      %v1986 = vld [vmem:[%s1977 + $0x40] sm:$0xff]
      %v1987 = vld [vmem:[%s1977 + $0x48] sm:$0xff]
      %v1988 = vld [vmem:[%s1977 + $0x50] sm:$0xff]
      %v1989 = vld [vmem:[%s1977 + $0x58] sm:$0xff]
      %v1990 = vld [vmem:[%s1977 + $0x60] sm:$0xff]
      %v1991 = vld [vmem:[%s1977 + $0x68] sm:$0xff]
      %v1992 = vld [vmem:[%s1977 + $0x70] sm:$0xff]
      %v1993 = vld [vmem:[%s1977 + $0x78] sm:$0xff]
      %v1994 = vld [vmem:[%s1977 + $0x80] sm:$0xff]
      %v1995 = vld [vmem:[%s1977 + $0x88] sm:$0xff]
      %v1996 = vld [vmem:[%s1977 + $0x90] sm:$0xff]
      %v1997 = vld [vmem:[%s1977 + $0x98] sm:$0xff]
      %v1998 = vld [vmem:[%s1977 + $0xa0] sm:$0xff]
      %v1999 = vld [vmem:[%s1977 + $0xa8] sm:$0xff]
      %v2000 = vld [vmem:[%s1977 + $0xb0] sm:$0xff]
      %v2001 = vld [vmem:[%s1977 + $0xb8] sm:$0xff]
      %v2002 = vld [vmem:[%s1977 + $0xc0] sm:$0xff]
      %v2003 = vld [vmem:[%s1977 + $0xc8] sm:$0xff]
      %v2004 = vld [vmem:[%s1977 + $0xd0] sm:$0xff]
      %v2005 = vld [vmem:[%s1977 + $0xd8] sm:$0xff]
      %v2006 = vld [vmem:[%s1977 + $0xe0] sm:$0xff]
      %v2007 = vld [vmem:[%s1977 + $0xe8] sm:$0xff]
      %v2008 = vld [vmem:[%s1977 + $0xf0] sm:$0xff]
      %v2009 = vld [vmem:[%s1977 + $0xf8] sm:$0xff]
      %s2010 = scalar_lea.vmem %s29, 1
      %v2011 = vld [vmem:[%s2010] sm:$0x1]
      %v2012 = vsel %vm1274, %v1919, 0.0
      %2013 = vadd.xlane.f32.xlu0 %v2012
      %v2014 = vpop.xlane.xlu0 %2013
      %v2015 = vmul.f32 %v2014, %v1284
      %v2016 = vsub.f32 %v1919, %v2015
      %v2017 = vmul.f32 %v2016, %v2016
      %v2018 = vsel %vm1274, %v2017, 0.0
      %2019 = vadd.xlane.f32.xlu0 %v2018
      %v2020 = vpop.xlane.xlu0 %2019
      %v2021 = vmul.f32 %v2020, %v1284
      %v2022 = vadd.f32 %v2021, 1e-05
      %v2023 = vrsqrt.pop %v2022
      %v2024 = vmul.f32 %v2023, %v2022
      %v2025 = vmul.f32 %v2024, %v2023
      %v2026 = vmul.f32 0.5, %v2025
      %v2027 = vsub.f32 1.5, %v2026
      %v2028 = vmul.f32 %v2023, %v2027
      %vm2029 = vweird.f32 %v2022
      %vm2030 = vweird.f32 %v2023
      %vm2031 = vmor %vm2029, %vm2030
      %v2032 = vsel %vm2031, %v2023, %v2028
      %v2033 = vmul.f32 %v2016, %v2032
      %v2035 = vperm.slane %v1921, 0
      %v2037 = vmul.f32 %v2033, %v2035
      %v2039 = vperm.slane %v1923, 0
      %v2041 = vadd.f32 %v2037, %v2039
      %v2043 = vperm.slane %v1942, 0
      %v2044 = vperm.slane %v1942, 1
      %v2048 = vsel %vm1274, %v2041, 0
      %2050 = vmatpush.msra.mxu0 0.0
      %2051 = vmatpush.msra.mxu0 0.0
      %2052 = vmatpush.msra.mxu0 0.0
      %2053 = vmatpush.msra.mxu0 0.0
      %2054 = vmatpush.msra.mxu0 0.0
      %2055 = vmatpush.msra.mxu0 0.0
      %2056 = vmatpush.msra.mxu0 0.0
      %2057 = vmatpush.msra.mxu0 0.0
      %2058 = vmatpush.msra.mxu0 %v1939
      %2059 = vmatpush.msra.mxu0 %v1937
      %2060 = vmatpush.msra.mxu0 %v1935
      %2061 = vmatpush.msra.mxu0 %v1933
      %2062 = vmatpush.msra.mxu0 %v1931
      %2063 = vmatpush.msra.mxu0 %v1929
      %2064 = vmatpush.msra.mxu0 %v1927
      %2065 = vmatpush.msra.mxu0 %v1925
      %2066 = vmatmul.f32.gmra.mxu0 %v2048
      %v2067 = vpop.f32.mrf.mxu0
      %v2068 = vadd.f32 %v2043, %v2067
      %2069 = vdwg.mxu0
      %2070 = vmatpush.msra.mxu0 0.0
      %2071 = vmatpush.msra.mxu0 0.0
      %2072 = vmatpush.msra.mxu0 0.0
      %2073 = vmatpush.msra.mxu0 0.0
      %2074 = vmatpush.msra.mxu0 0.0
      %2075 = vmatpush.msra.mxu0 0.0
      %2076 = vmatpush.msra.mxu0 0.0
      %2077 = vmatpush.msra.mxu0 0.0
      %2078 = vmatpush.msra.mxu0 %v1940
      %2079 = vmatpush.msra.mxu0 %v1938
      %2080 = vmatpush.msra.mxu0 %v1936
      %2081 = vmatpush.msra.mxu0 %v1934
      %2082 = vmatpush.msra.mxu0 %v1932
      %2083 = vmatpush.msra.mxu0 %v1930
      %2084 = vmatpush.msra.mxu0 %v1928
      %2085 = vmatpush.msra.mxu0 %v1926
      %2086 = vmatmul.f32.gmra.mxu0 %v2048
      %v2087 = vpop.f32.mrf.mxu0
      %v2088 = vadd.f32 %v2044, %v2087
      %2089 = vdwg.mxu0
      %2091 = vrot.lane.b32.xlu0 %v2068, 64
      %v2092 = vpop.permute.xlu0 %2091
      %v2093 = vsel %vm1363, %v2068, 0
      %v2095 = vsel %vm1363, %v2092, 0
      %2097 = vmatpush.xpose.msra.mxu0 0.0
      %2098 = vmatpush.xpose.msra.mxu0 0.0
      %2099 = vmatpush.xpose.msra.mxu0 0.0
      %2100 = vmatpush.xpose.msra.mxu0 0.0
      %2101 = vmatpush.xpose.msra.mxu0 0.0
      %2102 = vmatpush.xpose.msra.mxu0 0.0
      %2103 = vmatpush.xpose.msra.mxu0 0.0
      %2104 = vmatpush.xpose.msra.mxu0 0.0
      %2105 = vmatpush.xpose.msra.mxu0 0.0
      %2106 = vmatpush.xpose.msra.mxu0 0.0
      %2107 = vmatpush.xpose.msra.mxu0 0.0
      %2108 = vmatpush.xpose.msra.mxu0 0.0
      %2109 = vmatpush.xpose.msra.mxu0 0.0
      %2110 = vmatpush.xpose.msra.mxu0 0.0
      %2111 = vmatpush.xpose.msra.mxu0 0.0
      %2112 = vmatpush.xpose.msra.mxu0 %v2095
      %2113 = vmatmul.f32.gmra.mxu0 %v2093
      %v2114 = vpop.f32.mrf.mxu0
      %v2115 = vadd.f32 %v1044, %v2114
      %2116 = vdwg.mxu0
      %v2117 = vsel %vm1388, %v2115, -inf
      %2118 = vmax.xlane.f32.xlu0 %v2117
      %v2119 = vpop.xlane.xlu0 %2118
      %v2120 = vsub.f32 %v2115, %v2119
      %v2121 = vmul.f32 %v2120, 1.442695
      %v2122 = vpow.pop %v2121
      %v2123 = vsel %vm1388, %v2122, 0.0
      %2124 = vadd.xlane.f32.xlu0 %v2123
      %v2125 = vpop.xlane.xlu0 %2124
      %v2126 = vrcp.pop %v2125
      %v2127 = vmul.f32 %v2122, %v2126
      %v2129 = vsel %vm1388, %v2127, 0
      %2131 = vmatpush.msra.mxu0 0.0
      %2132 = vmatpush.msra.mxu0 0.0
      %2133 = vmatpush.msra.mxu0 0.0
      %2134 = vmatpush.msra.mxu0 0.0
      %2135 = vmatpush.msra.mxu0 0.0
      %2136 = vmatpush.msra.mxu0 0.0
      %2137 = vmatpush.msra.mxu0 0.0
      %2138 = vmatpush.msra.mxu0 0.0
      %2139 = vmatpush.msra.mxu0 0.0
      %2140 = vmatpush.msra.mxu0 0.0
      %2141 = vmatpush.msra.mxu0 0.0
      %2142 = vmatpush.msra.mxu0 0.0
      %2143 = vmatpush.msra.mxu0 0.0
      %2144 = vmatpush.msra.mxu0 0.0
      %2145 = vmatpush.msra.mxu0 0.0
      %2146 = vmatpush.msra.mxu0 %v2088
      %2147 = vmatmul.f32.gmra.mxu0 %v2129
      %v2148 = vpop.f32.mrf.mxu0
      %v2149 = vadd.f32 0.0, %v2148
      %2150 = vdwg.mxu0
      %2151 = vrot.lane.b32.xlu0 %v2068, 112
      %v2152 = vpop.permute.xlu0 %2151
      %2153 = vrot.lane.b32.xlu0 %v2068, 48
      %v2154 = vpop.permute.xlu0 %2153
      %v2155 = vsel %vm1363, %v2152, 0
      %v2157 = vsel %vm1363, %v2154, 0
      %2159 = vmatpush.xpose.msra.mxu0 0.0
      %2160 = vmatpush.xpose.msra.mxu0 0.0
      %2161 = vmatpush.xpose.msra.mxu0 0.0
      %2162 = vmatpush.xpose.msra.mxu0 0.0
      %2163 = vmatpush.xpose.msra.mxu0 0.0
      %2164 = vmatpush.xpose.msra.mxu0 0.0
      %2165 = vmatpush.xpose.msra.mxu0 0.0
      %2166 = vmatpush.xpose.msra.mxu0 0.0
      %2167 = vmatpush.xpose.msra.mxu0 0.0
      %2168 = vmatpush.xpose.msra.mxu0 0.0
      %2169 = vmatpush.xpose.msra.mxu0 0.0
      %2170 = vmatpush.xpose.msra.mxu0 0.0
      %2171 = vmatpush.xpose.msra.mxu0 0.0
      %2172 = vmatpush.xpose.msra.mxu0 0.0
      %2173 = vmatpush.xpose.msra.mxu0 0.0
      %2174 = vmatpush.xpose.msra.mxu0 %v2157
      %2175 = vmatmul.f32.gmra.mxu0 %v2155
      %v2176 = vpop.f32.mrf.mxu0
      %v2177 = vadd.f32 %v1044, %v2176
      %2178 = vdwg.mxu0
      %v2179 = vsel %vm1388, %v2177, -inf
      %2180 = vmax.xlane.f32.xlu0 %v2179
      %v2181 = vpop.xlane.xlu0 %2180
      %v2182 = vsub.f32 %v2177, %v2181
      %v2183 = vmul.f32 %v2182, 1.442695
      %v2184 = vpow.pop %v2183
      %v2185 = vsel %vm1388, %v2184, 0.0
      %2186 = vadd.xlane.f32.xlu0 %v2185
      %v2187 = vpop.xlane.xlu0 %2186
      %v2188 = vrcp.pop %v2187
      %v2189 = vmul.f32 %v2184, %v2188
      %2191 = vrot.lane.b32.xlu0 %v2088, 112
      %v2192 = vpop.permute.xlu0 %2191
      %v2195 = vsel %vm1388, %v2189, 0
      %2197 = vmatpush.msra.mxu0 0.0
      %2198 = vmatpush.msra.mxu0 0.0
      %2199 = vmatpush.msra.mxu0 0.0
      %2200 = vmatpush.msra.mxu0 0.0
      %2201 = vmatpush.msra.mxu0 0.0
      %2202 = vmatpush.msra.mxu0 0.0
      %2203 = vmatpush.msra.mxu0 0.0
      %2204 = vmatpush.msra.mxu0 0.0
      %2205 = vmatpush.msra.mxu0 0.0
      %2206 = vmatpush.msra.mxu0 0.0
      %2207 = vmatpush.msra.mxu0 0.0
      %2208 = vmatpush.msra.mxu0 0.0
      %2209 = vmatpush.msra.mxu0 0.0
      %2210 = vmatpush.msra.mxu0 0.0
      %2211 = vmatpush.msra.mxu0 0.0
      %2212 = vmatpush.msra.mxu0 %v2192
      %2213 = vmatmul.f32.gmra.mxu0 %v2195
      %v2214 = vpop.f32.mrf.mxu0
      %v2215 = vadd.f32 0.0, %v2214
      %2216 = vdwg.mxu0
      %v2218 = vsel %vm1363, %v2215, 0
      %2220 = vmatpush.msra.mxu0 0.0
      %2221 = vmatpush.msra.mxu0 0.0
      %2222 = vmatpush.msra.mxu0 0.0
      %2223 = vmatpush.msra.mxu0 0.0
      %2224 = vmatpush.msra.mxu0 0.0
      %2225 = vmatpush.msra.mxu0 0.0
      %2226 = vmatpush.msra.mxu0 0.0
      %2227 = vmatpush.msra.mxu0 0.0
      %2228 = vmatpush.msra.mxu0 0.0
      %2229 = vmatpush.msra.mxu0 0.0
      %2230 = vmatpush.msra.mxu0 0.0
      %2231 = vmatpush.msra.mxu0 0.0
      %2232 = vmatpush.msra.mxu0 0.0
      %2233 = vmatpush.msra.mxu0 0.0
      %2234 = vmatpush.msra.mxu0 %v1947
      %2235 = vmatpush.msra.mxu0 %v1946
      %2236 = vmatmul.f32.gmra.mxu0 %v2218
      %v2237 = vpop.f32.mrf.mxu0
      %v2238 = vadd.f32 0.0, %v2237
      %2239 = vdwg.mxu0
      %v2241 = vsel %vm1363, %v2149, 0
      %2243 = vmatpush.msra.mxu0 0.0
      %2244 = vmatpush.msra.mxu0 0.0
      %2245 = vmatpush.msra.mxu0 0.0
      %2246 = vmatpush.msra.mxu0 0.0
      %2247 = vmatpush.msra.mxu0 0.0
      %2248 = vmatpush.msra.mxu0 0.0
      %2249 = vmatpush.msra.mxu0 0.0
      %2250 = vmatpush.msra.mxu0 0.0
      %2251 = vmatpush.msra.mxu0 0.0
      %2252 = vmatpush.msra.mxu0 0.0
      %2253 = vmatpush.msra.mxu0 0.0
      %2254 = vmatpush.msra.mxu0 0.0
      %2255 = vmatpush.msra.mxu0 0.0
      %2256 = vmatpush.msra.mxu0 0.0
      %2257 = vmatpush.msra.mxu0 %v1945
      %2258 = vmatpush.msra.mxu0 %v1944
      %2259 = vmatmul.f32.gmra.mxu0 %v2241
      %v2260 = vpop.f32.mrf.mxu0
      %v2261 = vadd.f32 %v2238, %v2260
      %2262 = vdwg.mxu0
      %2263 = vrot.lane.b32.xlu0 %v2068, 96
      %v2264 = vpop.permute.xlu0 %2263
      %2265 = vrot.lane.b32.xlu0 %v2068, 32
      %v2266 = vpop.permute.xlu0 %2265
      %v2267 = vsel %vm1363, %v2264, 0
      %v2269 = vsel %vm1363, %v2266, 0
      %2271 = vmatpush.xpose.msra.mxu0 0.0
      %2272 = vmatpush.xpose.msra.mxu0 0.0
      %2273 = vmatpush.xpose.msra.mxu0 0.0
      %2274 = vmatpush.xpose.msra.mxu0 0.0
      %2275 = vmatpush.xpose.msra.mxu0 0.0
      %2276 = vmatpush.xpose.msra.mxu0 0.0
      %2277 = vmatpush.xpose.msra.mxu0 0.0
      %2278 = vmatpush.xpose.msra.mxu0 0.0
      %2279 = vmatpush.xpose.msra.mxu0 0.0
      %2280 = vmatpush.xpose.msra.mxu0 0.0
      %2281 = vmatpush.xpose.msra.mxu0 0.0
      %2282 = vmatpush.xpose.msra.mxu0 0.0
      %2283 = vmatpush.xpose.msra.mxu0 0.0
      %2284 = vmatpush.xpose.msra.mxu0 0.0
      %2285 = vmatpush.xpose.msra.mxu0 0.0
      %2286 = vmatpush.xpose.msra.mxu0 %v2269
      %2287 = vmatmul.f32.gmra.mxu0 %v2267
      %v2288 = vpop.f32.mrf.mxu0
      %v2289 = vadd.f32 %v1044, %v2288
      %2290 = vdwg.mxu0
      %v2291 = vsel %vm1388, %v2289, -inf
      %2292 = vmax.xlane.f32.xlu0 %v2291
      %v2293 = vpop.xlane.xlu0 %2292
      %v2294 = vsub.f32 %v2289, %v2293
      %v2295 = vmul.f32 %v2294, 1.442695
      %v2296 = vpow.pop %v2295
      %v2297 = vsel %vm1388, %v2296, 0.0
      %2298 = vadd.xlane.f32.xlu0 %v2297
      %v2299 = vpop.xlane.xlu0 %2298
      %v2300 = vrcp.pop %v2299
      %v2301 = vmul.f32 %v2296, %v2300
      %2302 = vrot.lane.b32.xlu0 %v2088, 96
      %v2303 = vpop.permute.xlu0 %2302
      %v2306 = vsel %vm1388, %v2301, 0
      %2308 = vmatpush.msra.mxu0 0.0
      %2309 = vmatpush.msra.mxu0 0.0
      %2310 = vmatpush.msra.mxu0 0.0
      %2311 = vmatpush.msra.mxu0 0.0
      %2312 = vmatpush.msra.mxu0 0.0
      %2313 = vmatpush.msra.mxu0 0.0
      %2314 = vmatpush.msra.mxu0 0.0
      %2315 = vmatpush.msra.mxu0 0.0
      %2316 = vmatpush.msra.mxu0 0.0
      %2317 = vmatpush.msra.mxu0 0.0
      %2318 = vmatpush.msra.mxu0 0.0
      %2319 = vmatpush.msra.mxu0 0.0
      %2320 = vmatpush.msra.mxu0 0.0
      %2321 = vmatpush.msra.mxu0 0.0
      %2322 = vmatpush.msra.mxu0 0.0
      %2323 = vmatpush.msra.mxu0 %v2303
      %2324 = vmatmul.f32.gmra.mxu0 %v2306
      %v2325 = vpop.f32.mrf.mxu0
      %v2326 = vadd.f32 0.0, %v2325
      %2327 = vdwg.mxu0
      %v2329 = vsel %vm1363, %v2326, 0
      %2331 = vmatpush.msra.mxu0 0.0
      %2332 = vmatpush.msra.mxu0 0.0
      %2333 = vmatpush.msra.mxu0 0.0
      %2334 = vmatpush.msra.mxu0 0.0
      %2335 = vmatpush.msra.mxu0 0.0
      %2336 = vmatpush.msra.mxu0 0.0
      %2337 = vmatpush.msra.mxu0 0.0
      %2338 = vmatpush.msra.mxu0 0.0
      %2339 = vmatpush.msra.mxu0 0.0
      %2340 = vmatpush.msra.mxu0 0.0
      %2341 = vmatpush.msra.mxu0 0.0
      %2342 = vmatpush.msra.mxu0 0.0
      %2343 = vmatpush.msra.mxu0 0.0
      %2344 = vmatpush.msra.mxu0 0.0
      %2345 = vmatpush.msra.mxu0 %v1949
      %2346 = vmatpush.msra.mxu0 %v1948
      %2347 = vmatmul.f32.gmra.mxu0 %v2329
      %v2348 = vpop.f32.mrf.mxu0
      %v2349 = vadd.f32 0.0, %v2348
      %2350 = vdwg.mxu0
      %v2351 = vadd.f32 %v2261, %v2349
      %2352 = vrot.lane.b32.xlu0 %v2068, 80
      %v2353 = vpop.permute.xlu0 %2352
      %2354 = vrot.lane.b32.xlu0 %v2068, 16
      %v2355 = vpop.permute.xlu0 %2354
      %v2356 = vsel %vm1363, %v2353, 0
      %v2358 = vsel %vm1363, %v2355, 0
      %2360 = vmatpush.xpose.msra.mxu0 0.0
      %2361 = vmatpush.xpose.msra.mxu0 0.0
      %2362 = vmatpush.xpose.msra.mxu0 0.0
      %2363 = vmatpush.xpose.msra.mxu0 0.0
      %2364 = vmatpush.xpose.msra.mxu0 0.0
      %2365 = vmatpush.xpose.msra.mxu0 0.0
      %2366 = vmatpush.xpose.msra.mxu0 0.0
      %2367 = vmatpush.xpose.msra.mxu0 0.0
      %2368 = vmatpush.xpose.msra.mxu0 0.0
      %2369 = vmatpush.xpose.msra.mxu0 0.0
      %2370 = vmatpush.xpose.msra.mxu0 0.0
      %2371 = vmatpush.xpose.msra.mxu0 0.0
      %2372 = vmatpush.xpose.msra.mxu0 0.0
      %2373 = vmatpush.xpose.msra.mxu0 0.0
      %2374 = vmatpush.xpose.msra.mxu0 0.0
      %2375 = vmatpush.xpose.msra.mxu0 %v2358
      %2376 = vmatmul.f32.gmra.mxu0 %v2356
      %v2377 = vpop.f32.mrf.mxu0
      %v2378 = vadd.f32 %v1044, %v2377
      %2379 = vdwg.mxu0
      %v2380 = vsel %vm1388, %v2378, -inf
      %2381 = vmax.xlane.f32.xlu0 %v2380
      %v2382 = vpop.xlane.xlu0 %2381
      %v2383 = vsub.f32 %v2378, %v2382
      %v2384 = vmul.f32 %v2383, 1.442695
      %v2385 = vpow.pop %v2384
      %v2386 = vsel %vm1388, %v2385, 0.0
      %2387 = vadd.xlane.f32.xlu0 %v2386
      %v2388 = vpop.xlane.xlu0 %2387
      %v2389 = vrcp.pop %v2388
      %v2390 = vmul.f32 %v2385, %v2389
      %2391 = vrot.lane.b32.xlu0 %v2088, 80
      %v2392 = vpop.permute.xlu0 %2391
      %v2395 = vsel %vm1388, %v2390, 0
      %2397 = vmatpush.msra.mxu0 0.0
      %2398 = vmatpush.msra.mxu0 0.0
      %2399 = vmatpush.msra.mxu0 0.0
      %2400 = vmatpush.msra.mxu0 0.0
      %2401 = vmatpush.msra.mxu0 0.0
      %2402 = vmatpush.msra.mxu0 0.0
      %2403 = vmatpush.msra.mxu0 0.0
      %2404 = vmatpush.msra.mxu0 0.0
      %2405 = vmatpush.msra.mxu0 0.0
      %2406 = vmatpush.msra.mxu0 0.0
      %2407 = vmatpush.msra.mxu0 0.0
      %2408 = vmatpush.msra.mxu0 0.0
      %2409 = vmatpush.msra.mxu0 0.0
      %2410 = vmatpush.msra.mxu0 0.0
      %2411 = vmatpush.msra.mxu0 0.0
      %2412 = vmatpush.msra.mxu0 %v2392
      %2413 = vmatmul.f32.gmra.mxu0 %v2395
      %v2414 = vpop.f32.mrf.mxu0
      %v2415 = vadd.f32 0.0, %v2414
      %2416 = vdwg.mxu0
      %v2418 = vsel %vm1363, %v2415, 0
      %2420 = vmatpush.msra.mxu0 0.0
      %2421 = vmatpush.msra.mxu0 0.0
      %2422 = vmatpush.msra.mxu0 0.0
      %2423 = vmatpush.msra.mxu0 0.0
      %2424 = vmatpush.msra.mxu0 0.0
      %2425 = vmatpush.msra.mxu0 0.0
      %2426 = vmatpush.msra.mxu0 0.0
      %2427 = vmatpush.msra.mxu0 0.0
      %2428 = vmatpush.msra.mxu0 0.0
      %2429 = vmatpush.msra.mxu0 0.0
      %2430 = vmatpush.msra.mxu0 0.0
      %2431 = vmatpush.msra.mxu0 0.0
      %2432 = vmatpush.msra.mxu0 0.0
      %2433 = vmatpush.msra.mxu0 0.0
      %2434 = vmatpush.msra.mxu0 %v1951
      %2435 = vmatpush.msra.mxu0 %v1950
      %2436 = vmatmul.f32.gmra.mxu0 %v2418
      %v2437 = vpop.f32.mrf.mxu0
      %v2438 = vadd.f32 0.0, %v2437
      %2439 = vdwg.mxu0
      %v2440 = vadd.f32 %v2351, %v2438
      %v2441 = vadd.f32 %v1919, %v2440
      %v2443 = vperm.slane %v1953, 0
      %v2445 = vadd.f32 %v2441, %v2443
      %v2446 = vsel %vm1274, %v2445, 0.0
      %2447 = vadd.xlane.f32.xlu0 %v2446
      %v2448 = vpop.xlane.xlu0 %2447
      %v2449 = vmul.f32 %v2448, %v1284
      %v2450 = vsub.f32 %v2445, %v2449
      %v2451 = vmul.f32 %v2450, %v2450
      %v2452 = vsel %vm1274, %v2451, 0.0
      %2453 = vadd.xlane.f32.xlu0 %v2452
      %v2454 = vpop.xlane.xlu0 %2453
      %v2455 = vmul.f32 %v2454, %v1284
      %v2456 = vadd.f32 %v2455, 1e-05
      %v2457 = vrsqrt.pop %v2456
      %v2458 = vmul.f32 %v2457, %v2456
      %v2459 = vmul.f32 %v2458, %v2457
      %v2460 = vmul.f32 0.5, %v2459
      %v2461 = vsub.f32 1.5, %v2460
      %v2462 = vmul.f32 %v2457, %v2461
      %vm2463 = vweird.f32 %v2456
      %vm2464 = vweird.f32 %v2457
      %vm2465 = vmor %vm2463, %vm2464
      %v2466 = vsel %vm2465, %v2457, %v2462
      %v2467 = vmul.f32 %v2450, %v2466
      %v2469 = vperm.slane %v1955, 0
      %v2471 = vmul.f32 %v2467, %v2469
      %v2473 = vperm.slane %v1957, 0
      %v2475 = vadd.f32 %v2471, %v2473
      %v2477 = vperm.slane %v1976, 0
      %v2478 = vperm.slane %v1976, 1
      %v2482 = vsel %vm1274, %v2475, 0
      %2484 = vmatpush.msra.mxu0 0.0
      %2485 = vmatpush.msra.mxu0 0.0
      %2486 = vmatpush.msra.mxu0 0.0
      %2487 = vmatpush.msra.mxu0 0.0
      %2488 = vmatpush.msra.mxu0 0.0
      %2489 = vmatpush.msra.mxu0 0.0
      %2490 = vmatpush.msra.mxu0 0.0
      %2491 = vmatpush.msra.mxu0 0.0
      %2492 = vmatpush.msra.mxu0 %v1973
      %2493 = vmatpush.msra.mxu0 %v1971
      %2494 = vmatpush.msra.mxu0 %v1969
      %2495 = vmatpush.msra.mxu0 %v1967
      %2496 = vmatpush.msra.mxu0 %v1965
      %2497 = vmatpush.msra.mxu0 %v1963
      %2498 = vmatpush.msra.mxu0 %v1961
      %2499 = vmatpush.msra.mxu0 %v1959
      %2500 = vmatmul.f32.gmra.mxu0 %v2482
      %v2501 = vpop.f32.mrf.mxu0
      %v2502 = vadd.f32 %v2477, %v2501
      %2503 = vdwg.mxu0
      %2504 = vmatpush.msra.mxu0 0.0
      %2505 = vmatpush.msra.mxu0 0.0
      %2506 = vmatpush.msra.mxu0 0.0
      %2507 = vmatpush.msra.mxu0 0.0
      %2508 = vmatpush.msra.mxu0 0.0
      %2509 = vmatpush.msra.mxu0 0.0
      %2510 = vmatpush.msra.mxu0 0.0
      %2511 = vmatpush.msra.mxu0 0.0
      %2512 = vmatpush.msra.mxu0 %v1974
      %2513 = vmatpush.msra.mxu0 %v1972
      %2514 = vmatpush.msra.mxu0 %v1970
      %2515 = vmatpush.msra.mxu0 %v1968
      %2516 = vmatpush.msra.mxu0 %v1966
      %2517 = vmatpush.msra.mxu0 %v1964
      %2518 = vmatpush.msra.mxu0 %v1962
      %2519 = vmatpush.msra.mxu0 %v1960
      %2520 = vmatmul.f32.gmra.mxu0 %v2482
      %v2521 = vpop.f32.mrf.mxu0
      %v2522 = vadd.f32 %v2478, %v2521
      %2523 = vdwg.mxu0
      %v2524 = vmul.f32 %v2502, 0.5
      %v2525 = vmul.f32 %v2522, 0.5
      %v2526 = vmul.f32 %v2502, 0.70710677
      %v2527 = vmul.f32 %v2522, 0.70710677
      %vm2528 = vcmp.ge.f32.partialorder %v2526, 0.0
      %vm2529 = vcmp.ge.f32.partialorder %v2527, 0.0
      %v2530 = vsel %vm2528, 1.0, -1.0
      %v2531 = vsel %vm2529, 1.0, -1.0
      %v2532 = vand.u32 2147483647, %v2526
      %v2533 = vand.u32 2147483647, %v2527
      %v2534 = vmul.f32 %v2532, 0.3275911
      %v2535 = vmul.f32 %v2533, 0.3275911
      %v2536 = vadd.f32 %v2534, 1.0
      %v2537 = vadd.f32 %v2535, 1.0
      %v2538 = vrcp.pop %v2536
      %v2539 = vmul.f32 %v2536, %v2538
      %v2540 = vsub.f32 1.0, %v2539
      %v2541 = vmul.f32 %v2538, %v2540
      %v2542 = vadd.f32 %v2538, %v2541
      %vm2543 = vweird.f32 %v2536
      %vm2544 = vweird.f32 %v2538
      %vm2545 = vmor %vm2543, %vm2544
      %v2546 = vsel %vm2545, %v2538, %v2542
      %v2547 = vand.u32 2147483647, %v2536
      %vm2548 = vcmp.eq.f32.partialorder %v2547, 8.507059e+37
      %v2549 = vand.u32 %v2536, 2147483648
      %v2550 = vor.u32 1.1754944e-38, %v2549
      %v2551 = vsel %vm2548, %v2550, %v2546
      %v2552 = vmul.f32 1.0, %v2551
      %v2553 = vrcp.pop %v2537
      %v2554 = vmul.f32 %v2537, %v2553
      %v2555 = vsub.f32 1.0, %v2554
      %v2556 = vmul.f32 %v2553, %v2555
      %v2557 = vadd.f32 %v2553, %v2556
      %vm2558 = vweird.f32 %v2537
      %vm2559 = vweird.f32 %v2553
      %vm2560 = vmor %vm2558, %vm2559
      %v2561 = vsel %vm2560, %v2553, %v2557
      %v2562 = vand.u32 2147483647, %v2537
      %vm2563 = vcmp.eq.f32.partialorder %v2562, 8.507059e+37
      %v2564 = vand.u32 %v2537, 2147483648
      %v2565 = vor.u32 1.1754944e-38, %v2564
      %v2566 = vsel %vm2563, %v2565, %v2561
      %v2567 = vmul.f32 1.0, %v2566
      %v2568 = vmul.f32 %v2552, 1.0614054
      %v2569 = vmul.f32 %v2567, 1.0614054
      %v2570 = vadd.f32 %v2568, -1.4531521
      %v2571 = vadd.f32 %v2569, -1.4531521
      %v2572 = vmul.f32 %v2570, %v2552
      %v2573 = vmul.f32 %v2571, %v2567
      %v2574 = vadd.f32 %v2572, 1.4214138
      %v2575 = vadd.f32 %v2573, 1.4214138
      %v2576 = vmul.f32 %v2574, %v2552
      %v2577 = vmul.f32 %v2575, %v2567
      %v2578 = vadd.f32 %v2576, -0.28449672
      %v2579 = vadd.f32 %v2577, -0.28449672
      %v2580 = vmul.f32 %v2578, %v2552
      %v2581 = vmul.f32 %v2579, %v2567
      %v2582 = vadd.f32 %v2580, 0.2548296
      %v2583 = vadd.f32 %v2581, 0.2548296
      %v2584 = vmul.f32 %v2582, %v2552
      %v2585 = vmul.f32 %v2583, %v2567
      %v2586 = vsub.f32 0.0, %v2532
      %v2587 = vsub.f32 0.0, %v2533
      %v2588 = vmul.f32 %v2586, %v2532
      %v2589 = vmul.f32 %v2587, %v2533
      %v2590 = vmul.f32 %v2588, 1.442695
      %v2591 = vpow.pop %v2590
      %v2592 = vmul.f32 %v2589, 1.442695
      %v2593 = vpow.pop %v2592
      %v2594 = vmul.f32 %v2584, %v2591
      %v2595 = vmul.f32 %v2585, %v2593
      %v2596 = vsub.f32 1.0, %v2594
      %v2597 = vsub.f32 1.0, %v2595
      %v2598 = vmul.f32 %v2530, %v2596
      %v2599 = vmul.f32 %v2531, %v2597
      %v2600 = vadd.f32 %v2598, 1.0
      %v2601 = vadd.f32 %v2599, 1.0
      %v2602 = vmul.f32 %v2524, %v2600
      %v2603 = vmul.f32 %v2525, %v2601
      %v2605 = vperm.slane %v2011, 0
      %2607 = vmatpush.msra.mxu0 %v1993
      %2608 = vmatpush.msra.mxu0 %v1992
      %2609 = vmatpush.msra.mxu0 %v1991
      %2610 = vmatpush.msra.mxu0 %v1990
      %2611 = vmatpush.msra.mxu0 %v1989
      %2612 = vmatpush.msra.mxu0 %v1988
      %2613 = vmatpush.msra.mxu0 %v1987
      %2614 = vmatpush.msra.mxu0 %v1986
      %2615 = vmatpush.msra.mxu0 %v1985
      %2616 = vmatpush.msra.mxu0 %v1984
      %2617 = vmatpush.msra.mxu0 %v1983
      %2618 = vmatpush.msra.mxu0 %v1982
      %2619 = vmatpush.msra.mxu0 %v1981
      %2620 = vmatpush.msra.mxu0 %v1980
      %2621 = vmatpush.msra.mxu0 %v1979
      %2622 = vmatpush.msra.mxu0 %v1978
      %2623 = vmatmul.f32.gmra.mxu0 %v2602
      %v2624 = vpop.f32.mrf.mxu0
      %v2625 = vadd.f32 %v2605, %v2624
      %2626 = vdwg.mxu0
      %2627 = vmatpush.msra.mxu0 %v2009
      %2628 = vmatpush.msra.mxu0 %v2008
      %2629 = vmatpush.msra.mxu0 %v2007
      %2630 = vmatpush.msra.mxu0 %v2006
      %2631 = vmatpush.msra.mxu0 %v2005
      %2632 = vmatpush.msra.mxu0 %v2004
      %2633 = vmatpush.msra.mxu0 %v2003
      %2634 = vmatpush.msra.mxu0 %v2002
      %2635 = vmatpush.msra.mxu0 %v2001
      %2636 = vmatpush.msra.mxu0 %v2000
      %2637 = vmatpush.msra.mxu0 %v1999
      %2638 = vmatpush.msra.mxu0 %v1998
      %2639 = vmatpush.msra.mxu0 %v1997
      %2640 = vmatpush.msra.mxu0 %v1996
      %2641 = vmatpush.msra.mxu0 %v1995
      %2642 = vmatpush.msra.mxu0 %v1994
      %2643 = vmatmul.f32.gmra.mxu0 %v2603
      %v2644 = vpop.f32.mrf.mxu0
      %v2645 = vadd.f32 %v2625, %v2644
      %2646 = vdwg.mxu0
      %v2647 = vadd.f32 %v2445, %v2645
      %v2648 = vld [vmem:[%s31] sm:$0x1]
      %v2649 = vld [vmem:[%s33] sm:$0x1]
      %v2650 = vsel %vm1274, %v2647, 0.0
      %2651 = vadd.xlane.f32.xlu0 %v2650
      %v2652 = vpop.xlane.xlu0 %2651
      %v2653 = vmul.f32 %v2652, %v1284
      %v2654 = vsub.f32 %v2647, %v2653
      %v2655 = vmul.f32 %v2654, %v2654
      %v2656 = vsel %vm1274, %v2655, 0.0
      %2657 = vadd.xlane.f32.xlu0 %v2656
      %v2658 = vpop.xlane.xlu0 %2657
      %v2659 = vmul.f32 %v2658, %v1284
      %v2660 = vadd.f32 %v2659, 1e-05
      %v2661 = vrsqrt.pop %v2660
      %v2662 = vmul.f32 %v2661, %v2660
      %v2663 = vmul.f32 %v2662, %v2661
      %v2664 = vmul.f32 0.5, %v2663
      %v2665 = vsub.f32 1.5, %v2664
      %v2666 = vmul.f32 %v2661, %v2665
      %vm2667 = vweird.f32 %v2660
      %vm2668 = vweird.f32 %v2661
      %vm2669 = vmor %vm2667, %vm2668
      %v2670 = vsel %vm2669, %v2661, %v2666
      %v2671 = vmul.f32 %v2654, %v2670
      %v2673 = vperm.slane %v2648, 0
      %v2675 = vmul.f32 %v2671, %v2673
      %v2677 = vperm.slane %v2649, 0
      %v2679 = vadd.f32 %v2675, %v2677
      %v2680 = vld [vmem:[%s35] sm:$0xff]
      %v2681 = vld [vmem:[%s35 + $0x8] sm:$0xff]
      %v2682 = vld [vmem:[%s35 + $0x10] sm:$0xff]
      %v2683 = vld [vmem:[%s35 + $0x18] sm:$0xff]
      %v2684 = vld [vmem:[%s35 + $0x20] sm:$0xff]
      %v2685 = vld [vmem:[%s35 + $0x28] sm:$0xff]
      %v2686 = vld [vmem:[%s35 + $0x30] sm:$0xff]
      %v2687 = vld [vmem:[%s35 + $0x38] sm:$0xff]
      %v2688 = vld [vmem:[%s37] sm:$0x1]
      %v2690 = vperm.slane %v2688, 0
      %v2693 = vsel %vm1274, %v2679, 0
      %2695 = vmatpush.msra.mxu0 0.0
      %2696 = vmatpush.msra.mxu0 0.0
      %2697 = vmatpush.msra.mxu0 0.0
      %2698 = vmatpush.msra.mxu0 0.0
      %2699 = vmatpush.msra.mxu0 0.0
      %2700 = vmatpush.msra.mxu0 0.0
      %2701 = vmatpush.msra.mxu0 0.0
      %2702 = vmatpush.msra.mxu0 0.0
      %2703 = vmatpush.msra.mxu0 %v2687
      %2704 = vmatpush.msra.mxu0 %v2686
      %2705 = vmatpush.msra.mxu0 %v2685
      %2706 = vmatpush.msra.mxu0 %v2684
      %2707 = vmatpush.msra.mxu0 %v2683
      %2708 = vmatpush.msra.mxu0 %v2682
      %2709 = vmatpush.msra.mxu0 %v2681
      %2710 = vmatpush.msra.mxu0 %v2680
      %2711 = vmatmul.f32.gmra.mxu0 %v2693
      %v2712 = vpop.f32.mrf.mxu0
      %v2713 = vadd.f32 %v2690, %v2712
      %2714 = vdwg.mxu0
      %v2715 = vld [vmem:[%s39] sm:$0xff]
      %v2716 = vadd.f32 %v2713, %v2715
      %v2717 = vld [vmem:[%s41] sm:$0x1]
      %v2718 = vld [vmem:[%s43] sm:$0x1]
      %v2719 = vld [vmem:[%s45] sm:$0xff]
      %v2720 = vld [vmem:[%s45 + $0x8] sm:$0xff]
      %v2721 = vld [vmem:[%s45 + $0x10] sm:$0xff]
      %v2722 = vld [vmem:[%s45 + $0x18] sm:$0xff]
      %v2723 = vld [vmem:[%s45 + $0x20] sm:$0xff]
      %v2724 = vld [vmem:[%s45 + $0x28] sm:$0xff]
      %v2725 = vld [vmem:[%s45 + $0x30] sm:$0xff]
      %v2726 = vld [vmem:[%s45 + $0x38] sm:$0xff]
      %v2727 = vld [vmem:[%s45 + $0x40] sm:$0xff]
      %v2728 = vld [vmem:[%s45 + $0x48] sm:$0xff]
      %v2729 = vld [vmem:[%s45 + $0x50] sm:$0xff]
      %v2730 = vld [vmem:[%s45 + $0x58] sm:$0xff]
      %v2731 = vld [vmem:[%s45 + $0x60] sm:$0xff]
      %v2732 = vld [vmem:[%s45 + $0x68] sm:$0xff]
      %v2733 = vld [vmem:[%s45 + $0x70] sm:$0xff]
      %v2734 = vld [vmem:[%s45 + $0x78] sm:$0xff]
      %v2735 = vld [vmem:[%s47] sm:$0x3]
      %v2736 = vld [vmem:[%s49] sm:$0xff]
      %v2737 = vld [vmem:[%s49 + $0x8] sm:$0xff]
      %v2738 = vld [vmem:[%s49 + $0x10] sm:$0xff]
      %v2739 = vld [vmem:[%s49 + $0x18] sm:$0xff]
      %v2740 = vld [vmem:[%s49 + $0x20] sm:$0xff]
      %v2741 = vld [vmem:[%s49 + $0x28] sm:$0xff]
      %v2742 = vld [vmem:[%s49 + $0x30] sm:$0xff]
      %v2743 = vld [vmem:[%s49 + $0x38] sm:$0xff]
      %v2744 = vld [vmem:[%s51] sm:$0x1]
      %v2745 = vld [vmem:[%s53] sm:$0x1]
      %v2746 = vld [vmem:[%s55] sm:$0x1]
      %v2747 = vld [vmem:[%s57] sm:$0xff]
      %v2748 = vld [vmem:[%s57 + $0x8] sm:$0xff]
      %v2749 = vld [vmem:[%s57 + $0x10] sm:$0xff]
      %v2750 = vld [vmem:[%s57 + $0x18] sm:$0xff]
      %v2751 = vld [vmem:[%s57 + $0x20] sm:$0xff]
      %v2752 = vld [vmem:[%s57 + $0x28] sm:$0xff]
      %v2753 = vld [vmem:[%s57 + $0x30] sm:$0xff]
      %v2754 = vld [vmem:[%s57 + $0x38] sm:$0xff]
      %v2755 = vld [vmem:[%s57 + $0x40] sm:$0xff]
      %v2756 = vld [vmem:[%s57 + $0x48] sm:$0xff]
      %v2757 = vld [vmem:[%s57 + $0x50] sm:$0xff]
      %v2758 = vld [vmem:[%s57 + $0x58] sm:$0xff]
      %v2759 = vld [vmem:[%s57 + $0x60] sm:$0xff]
      %v2760 = vld [vmem:[%s57 + $0x68] sm:$0xff]
      %v2761 = vld [vmem:[%s57 + $0x70] sm:$0xff]
      %v2762 = vld [vmem:[%s57 + $0x78] sm:$0xff]
      %v2763 = vld [vmem:[%s59] sm:$0x3]
      %v2764 = vld [vmem:[%s61] sm:$0xff]
      %v2765 = vld [vmem:[%s61 + $0x8] sm:$0xff]
      %v2766 = vld [vmem:[%s61 + $0x10] sm:$0xff]
      %v2767 = vld [vmem:[%s61 + $0x18] sm:$0xff]
      %v2768 = vld [vmem:[%s61 + $0x20] sm:$0xff]
      %v2769 = vld [vmem:[%s61 + $0x28] sm:$0xff]
      %v2770 = vld [vmem:[%s61 + $0x30] sm:$0xff]
      %v2771 = vld [vmem:[%s61 + $0x38] sm:$0xff]
      %v2772 = vld [vmem:[%s61 + $0x40] sm:$0xff]
      %v2773 = vld [vmem:[%s61 + $0x48] sm:$0xff]
      %v2774 = vld [vmem:[%s61 + $0x50] sm:$0xff]
      %v2775 = vld [vmem:[%s61 + $0x58] sm:$0xff]
      %v2776 = vld [vmem:[%s61 + $0x60] sm:$0xff]
      %v2777 = vld [vmem:[%s61 + $0x68] sm:$0xff]
      %v2778 = vld [vmem:[%s61 + $0x70] sm:$0xff]
      %v2779 = vld [vmem:[%s61 + $0x78] sm:$0xff]
      %v2780 = vld [vmem:[%s61 + $0x80] sm:$0xff]
      %v2781 = vld [vmem:[%s61 + $0x88] sm:$0xff]
      %v2782 = vld [vmem:[%s61 + $0x90] sm:$0xff]
      %v2783 = vld [vmem:[%s61 + $0x98] sm:$0xff]
      %v2784 = vld [vmem:[%s61 + $0xa0] sm:$0xff]
      %v2785 = vld [vmem:[%s61 + $0xa8] sm:$0xff]
      %v2786 = vld [vmem:[%s61 + $0xb0] sm:$0xff]
      %v2787 = vld [vmem:[%s61 + $0xb8] sm:$0xff]
      %v2788 = vld [vmem:[%s61 + $0xc0] sm:$0xff]
      %v2789 = vld [vmem:[%s61 + $0xc8] sm:$0xff]
      %v2790 = vld [vmem:[%s61 + $0xd0] sm:$0xff]
      %v2791 = vld [vmem:[%s61 + $0xd8] sm:$0xff]
      %v2792 = vld [vmem:[%s61 + $0xe0] sm:$0xff]
      %v2793 = vld [vmem:[%s61 + $0xe8] sm:$0xff]
      %v2794 = vld [vmem:[%s61 + $0xf0] sm:$0xff]
      %v2795 = vld [vmem:[%s61 + $0xf8] sm:$0xff]
      %v2796 = vld [vmem:[%s63] sm:$0x1]
      %v2797 = vsel %vm1274, %v2716, 0.0
      %2798 = vadd.xlane.f32.xlu0 %v2797
      %v2799 = vpop.xlane.xlu0 %2798
      %v2800 = vmul.f32 %v2799, %v1284
      %v2801 = vsub.f32 %v2716, %v2800
      %v2802 = vmul.f32 %v2801, %v2801
      %v2803 = vsel %vm1274, %v2802, 0.0
      %2804 = vadd.xlane.f32.xlu0 %v2803
      %v2805 = vpop.xlane.xlu0 %2804
      %v2806 = vmul.f32 %v2805, %v1284
      %v2807 = vadd.f32 %v2806, 1e-05
      %v2808 = vrsqrt.pop %v2807
      %v2809 = vmul.f32 %v2808, %v2807
      %v2810 = vmul.f32 %v2809, %v2808
      %v2811 = vmul.f32 0.5, %v2810
      %v2812 = vsub.f32 1.5, %v2811
      %v2813 = vmul.f32 %v2808, %v2812
      %vm2814 = vweird.f32 %v2807
      %vm2815 = vweird.f32 %v2808
      %vm2816 = vmor %vm2814, %vm2815
      %v2817 = vsel %vm2816, %v2808, %v2813
      %v2818 = vmul.f32 %v2801, %v2817
      %v2820 = vperm.slane %v2717, 0
      %v2822 = vmul.f32 %v2818, %v2820
      %v2824 = vperm.slane %v2718, 0
      %v2826 = vadd.f32 %v2822, %v2824
      %v2828 = vperm.slane %v2735, 0
      %v2829 = vperm.slane %v2735, 1
      %v2833 = vsel %vm1274, %v2826, 0
      %2835 = vmatpush.msra.mxu0 0.0
      %2836 = vmatpush.msra.mxu0 0.0
      %2837 = vmatpush.msra.mxu0 0.0
      %2838 = vmatpush.msra.mxu0 0.0
      %2839 = vmatpush.msra.mxu0 0.0
      %2840 = vmatpush.msra.mxu0 0.0
      %2841 = vmatpush.msra.mxu0 0.0
      %2842 = vmatpush.msra.mxu0 0.0
      %2843 = vmatpush.msra.mxu0 %v2733
      %2844 = vmatpush.msra.mxu0 %v2731
      %2845 = vmatpush.msra.mxu0 %v2729
      %2846 = vmatpush.msra.mxu0 %v2727
      %2847 = vmatpush.msra.mxu0 %v2725
      %2848 = vmatpush.msra.mxu0 %v2723
      %2849 = vmatpush.msra.mxu0 %v2721
      %2850 = vmatpush.msra.mxu0 %v2719
      %2851 = vmatmul.f32.gmra.mxu0 %v2833
      %v2852 = vpop.f32.mrf.mxu0
      %v2853 = vadd.f32 %v2828, %v2852
      %2854 = vdwg.mxu0
      %2855 = vmatpush.msra.mxu0 0.0
      %2856 = vmatpush.msra.mxu0 0.0
      %2857 = vmatpush.msra.mxu0 0.0
      %2858 = vmatpush.msra.mxu0 0.0
      %2859 = vmatpush.msra.mxu0 0.0
      %2860 = vmatpush.msra.mxu0 0.0
      %2861 = vmatpush.msra.mxu0 0.0
      %2862 = vmatpush.msra.mxu0 0.0
      %2863 = vmatpush.msra.mxu0 %v2734
      %2864 = vmatpush.msra.mxu0 %v2732
      %2865 = vmatpush.msra.mxu0 %v2730
      %2866 = vmatpush.msra.mxu0 %v2728
      %2867 = vmatpush.msra.mxu0 %v2726
      %2868 = vmatpush.msra.mxu0 %v2724
      %2869 = vmatpush.msra.mxu0 %v2722
      %2870 = vmatpush.msra.mxu0 %v2720
      %2871 = vmatmul.f32.gmra.mxu0 %v2833
      %v2872 = vpop.f32.mrf.mxu0
      %v2873 = vadd.f32 %v2829, %v2872
      %2874 = vdwg.mxu0
      %2876 = vrot.lane.b32.xlu0 %v2853, 64
      %v2877 = vpop.permute.xlu0 %2876
      %v2878 = vsel %vm1363, %v2853, 0
      %v2880 = vsel %vm1363, %v2877, 0
      %2882 = vmatpush.xpose.msra.mxu0 0.0
      %2883 = vmatpush.xpose.msra.mxu0 0.0
      %2884 = vmatpush.xpose.msra.mxu0 0.0
      %2885 = vmatpush.xpose.msra.mxu0 0.0
      %2886 = vmatpush.xpose.msra.mxu0 0.0
      %2887 = vmatpush.xpose.msra.mxu0 0.0
      %2888 = vmatpush.xpose.msra.mxu0 0.0
      %2889 = vmatpush.xpose.msra.mxu0 0.0
      %2890 = vmatpush.xpose.msra.mxu0 0.0
      %2891 = vmatpush.xpose.msra.mxu0 0.0
      %2892 = vmatpush.xpose.msra.mxu0 0.0
      %2893 = vmatpush.xpose.msra.mxu0 0.0
      %2894 = vmatpush.xpose.msra.mxu0 0.0
      %2895 = vmatpush.xpose.msra.mxu0 0.0
      %2896 = vmatpush.xpose.msra.mxu0 0.0
      %2897 = vmatpush.xpose.msra.mxu0 %v2880
      %2898 = vmatmul.f32.gmra.mxu0 %v2878
      %v2899 = vpop.f32.mrf.mxu0
      %v2900 = vadd.f32 %v1044, %v2899
      %2901 = vdwg.mxu0
      %v2902 = vsel %vm1388, %v2900, -inf
      %2903 = vmax.xlane.f32.xlu0 %v2902
      %v2904 = vpop.xlane.xlu0 %2903
      %v2905 = vsub.f32 %v2900, %v2904
      %v2906 = vmul.f32 %v2905, 1.442695
      %v2907 = vpow.pop %v2906
      %v2908 = vsel %vm1388, %v2907, 0.0
      %2909 = vadd.xlane.f32.xlu0 %v2908
      %v2910 = vpop.xlane.xlu0 %2909
      %v2911 = vrcp.pop %v2910
      %v2912 = vmul.f32 %v2907, %v2911
      %v2914 = vsel %vm1388, %v2912, 0
      %2916 = vmatpush.msra.mxu0 0.0
      %2917 = vmatpush.msra.mxu0 0.0
      %2918 = vmatpush.msra.mxu0 0.0
      %2919 = vmatpush.msra.mxu0 0.0
      %2920 = vmatpush.msra.mxu0 0.0
      %2921 = vmatpush.msra.mxu0 0.0
      %2922 = vmatpush.msra.mxu0 0.0
      %2923 = vmatpush.msra.mxu0 0.0
      %2924 = vmatpush.msra.mxu0 0.0
      %2925 = vmatpush.msra.mxu0 0.0
      %2926 = vmatpush.msra.mxu0 0.0
      %2927 = vmatpush.msra.mxu0 0.0
      %2928 = vmatpush.msra.mxu0 0.0
      %2929 = vmatpush.msra.mxu0 0.0
      %2930 = vmatpush.msra.mxu0 0.0
      %2931 = vmatpush.msra.mxu0 %v2873
      %2932 = vmatmul.f32.gmra.mxu0 %v2914
      %v2933 = vpop.f32.mrf.mxu0
      %v2934 = vadd.f32 0.0, %v2933
      %2935 = vdwg.mxu0
      %2936 = vrot.lane.b32.xlu0 %v2853, 112
      %v2937 = vpop.permute.xlu0 %2936
      %2938 = vrot.lane.b32.xlu0 %v2853, 48
      %v2939 = vpop.permute.xlu0 %2938
      %v2940 = vsel %vm1363, %v2937, 0
      %v2942 = vsel %vm1363, %v2939, 0
      %2944 = vmatpush.xpose.msra.mxu0 0.0
      %2945 = vmatpush.xpose.msra.mxu0 0.0
      %2946 = vmatpush.xpose.msra.mxu0 0.0
      %2947 = vmatpush.xpose.msra.mxu0 0.0
      %2948 = vmatpush.xpose.msra.mxu0 0.0
      %2949 = vmatpush.xpose.msra.mxu0 0.0
      %2950 = vmatpush.xpose.msra.mxu0 0.0
      %2951 = vmatpush.xpose.msra.mxu0 0.0
      %2952 = vmatpush.xpose.msra.mxu0 0.0
      %2953 = vmatpush.xpose.msra.mxu0 0.0
      %2954 = vmatpush.xpose.msra.mxu0 0.0
      %2955 = vmatpush.xpose.msra.mxu0 0.0
      %2956 = vmatpush.xpose.msra.mxu0 0.0
      %2957 = vmatpush.xpose.msra.mxu0 0.0
      %2958 = vmatpush.xpose.msra.mxu0 0.0
      %2959 = vmatpush.xpose.msra.mxu0 %v2942
      %2960 = vmatmul.f32.gmra.mxu0 %v2940
      %v2961 = vpop.f32.mrf.mxu0
      %v2962 = vadd.f32 %v1044, %v2961
      %2963 = vdwg.mxu0
      %v2964 = vsel %vm1388, %v2962, -inf
      %2965 = vmax.xlane.f32.xlu0 %v2964
      %v2966 = vpop.xlane.xlu0 %2965
      %v2967 = vsub.f32 %v2962, %v2966
      %v2968 = vmul.f32 %v2967, 1.442695
      %v2969 = vpow.pop %v2968
      %v2970 = vsel %vm1388, %v2969, 0.0
      %2971 = vadd.xlane.f32.xlu0 %v2970
      %v2972 = vpop.xlane.xlu0 %2971
      %v2973 = vrcp.pop %v2972
      %v2974 = vmul.f32 %v2969, %v2973
      %2976 = vrot.lane.b32.xlu0 %v2873, 112
      %v2977 = vpop.permute.xlu0 %2976
      %v2980 = vsel %vm1388, %v2974, 0
      %2982 = vmatpush.msra.mxu0 0.0
      %2983 = vmatpush.msra.mxu0 0.0
      %2984 = vmatpush.msra.mxu0 0.0
      %2985 = vmatpush.msra.mxu0 0.0
      %2986 = vmatpush.msra.mxu0 0.0
      %2987 = vmatpush.msra.mxu0 0.0
      %2988 = vmatpush.msra.mxu0 0.0
      %2989 = vmatpush.msra.mxu0 0.0
      %2990 = vmatpush.msra.mxu0 0.0
      %2991 = vmatpush.msra.mxu0 0.0
      %2992 = vmatpush.msra.mxu0 0.0
      %2993 = vmatpush.msra.mxu0 0.0
      %2994 = vmatpush.msra.mxu0 0.0
      %2995 = vmatpush.msra.mxu0 0.0
      %2996 = vmatpush.msra.mxu0 0.0
      %2997 = vmatpush.msra.mxu0 %v2977
      %2998 = vmatmul.f32.gmra.mxu0 %v2980
      %v2999 = vpop.f32.mrf.mxu0
      %v3000 = vadd.f32 0.0, %v2999
      %3001 = vdwg.mxu0
      %v3003 = vsel %vm1363, %v3000, 0
      %3005 = vmatpush.msra.mxu0 0.0
      %3006 = vmatpush.msra.mxu0 0.0
      %3007 = vmatpush.msra.mxu0 0.0
      %3008 = vmatpush.msra.mxu0 0.0
      %3009 = vmatpush.msra.mxu0 0.0
      %3010 = vmatpush.msra.mxu0 0.0
      %3011 = vmatpush.msra.mxu0 0.0
      %3012 = vmatpush.msra.mxu0 0.0
      %3013 = vmatpush.msra.mxu0 0.0
      %3014 = vmatpush.msra.mxu0 0.0
      %3015 = vmatpush.msra.mxu0 0.0
      %3016 = vmatpush.msra.mxu0 0.0
      %3017 = vmatpush.msra.mxu0 0.0
      %3018 = vmatpush.msra.mxu0 0.0
      %3019 = vmatpush.msra.mxu0 %v2739
      %3020 = vmatpush.msra.mxu0 %v2738
      %3021 = vmatmul.f32.gmra.mxu0 %v3003
      %v3022 = vpop.f32.mrf.mxu0
      %v3023 = vadd.f32 0.0, %v3022
      %3024 = vdwg.mxu0
      %v3026 = vsel %vm1363, %v2934, 0
      %3028 = vmatpush.msra.mxu0 0.0
      %3029 = vmatpush.msra.mxu0 0.0
      %3030 = vmatpush.msra.mxu0 0.0
      %3031 = vmatpush.msra.mxu0 0.0
      %3032 = vmatpush.msra.mxu0 0.0
      %3033 = vmatpush.msra.mxu0 0.0
      %3034 = vmatpush.msra.mxu0 0.0
      %3035 = vmatpush.msra.mxu0 0.0
      %3036 = vmatpush.msra.mxu0 0.0
      %3037 = vmatpush.msra.mxu0 0.0
      %3038 = vmatpush.msra.mxu0 0.0
      %3039 = vmatpush.msra.mxu0 0.0
      %3040 = vmatpush.msra.mxu0 0.0
      %3041 = vmatpush.msra.mxu0 0.0
      %3042 = vmatpush.msra.mxu0 %v2737
      %3043 = vmatpush.msra.mxu0 %v2736
      %3044 = vmatmul.f32.gmra.mxu0 %v3026
      %v3045 = vpop.f32.mrf.mxu0
      %v3046 = vadd.f32 %v3023, %v3045
      %3047 = vdwg.mxu0
      %3048 = vrot.lane.b32.xlu0 %v2853, 96
      %v3049 = vpop.permute.xlu0 %3048
      %3050 = vrot.lane.b32.xlu0 %v2853, 32
      %v3051 = vpop.permute.xlu0 %3050
      %v3052 = vsel %vm1363, %v3049, 0
      %v3054 = vsel %vm1363, %v3051, 0
      %3056 = vmatpush.xpose.msra.mxu0 0.0
      %3057 = vmatpush.xpose.msra.mxu0 0.0
      %3058 = vmatpush.xpose.msra.mxu0 0.0
      %3059 = vmatpush.xpose.msra.mxu0 0.0
      %3060 = vmatpush.xpose.msra.mxu0 0.0
      %3061 = vmatpush.xpose.msra.mxu0 0.0
      %3062 = vmatpush.xpose.msra.mxu0 0.0
      %3063 = vmatpush.xpose.msra.mxu0 0.0
      %3064 = vmatpush.xpose.msra.mxu0 0.0
      %3065 = vmatpush.xpose.msra.mxu0 0.0
      %3066 = vmatpush.xpose.msra.mxu0 0.0
      %3067 = vmatpush.xpose.msra.mxu0 0.0
      %3068 = vmatpush.xpose.msra.mxu0 0.0
      %3069 = vmatpush.xpose.msra.mxu0 0.0
      %3070 = vmatpush.xpose.msra.mxu0 0.0
      %3071 = vmatpush.xpose.msra.mxu0 %v3054
      %3072 = vmatmul.f32.gmra.mxu0 %v3052
      %v3073 = vpop.f32.mrf.mxu0
      %v3074 = vadd.f32 %v1044, %v3073
      %3075 = vdwg.mxu0
      %v3076 = vsel %vm1388, %v3074, -inf
      %3077 = vmax.xlane.f32.xlu0 %v3076
      %v3078 = vpop.xlane.xlu0 %3077
      %v3079 = vsub.f32 %v3074, %v3078
      %v3080 = vmul.f32 %v3079, 1.442695
      %v3081 = vpow.pop %v3080
      %v3082 = vsel %vm1388, %v3081, 0.0
      %3083 = vadd.xlane.f32.xlu0 %v3082
      %v3084 = vpop.xlane.xlu0 %3083
      %v3085 = vrcp.pop %v3084
      %v3086 = vmul.f32 %v3081, %v3085
      %3087 = vrot.lane.b32.xlu0 %v2873, 96
      %v3088 = vpop.permute.xlu0 %3087
      %v3091 = vsel %vm1388, %v3086, 0
      %3093 = vmatpush.msra.mxu0 0.0
      %3094 = vmatpush.msra.mxu0 0.0
      %3095 = vmatpush.msra.mxu0 0.0
      %3096 = vmatpush.msra.mxu0 0.0
      %3097 = vmatpush.msra.mxu0 0.0
      %3098 = vmatpush.msra.mxu0 0.0
      %3099 = vmatpush.msra.mxu0 0.0
      %3100 = vmatpush.msra.mxu0 0.0
      %3101 = vmatpush.msra.mxu0 0.0
      %3102 = vmatpush.msra.mxu0 0.0
      %3103 = vmatpush.msra.mxu0 0.0
      %3104 = vmatpush.msra.mxu0 0.0
      %3105 = vmatpush.msra.mxu0 0.0
      %3106 = vmatpush.msra.mxu0 0.0
      %3107 = vmatpush.msra.mxu0 0.0
      %3108 = vmatpush.msra.mxu0 %v3088
      %3109 = vmatmul.f32.gmra.mxu0 %v3091
      %v3110 = vpop.f32.mrf.mxu0
      %v3111 = vadd.f32 0.0, %v3110
      %3112 = vdwg.mxu0
      %v3114 = vsel %vm1363, %v3111, 0
      %3116 = vmatpush.msra.mxu0 0.0
      %3117 = vmatpush.msra.mxu0 0.0
      %3118 = vmatpush.msra.mxu0 0.0
      %3119 = vmatpush.msra.mxu0 0.0
      %3120 = vmatpush.msra.mxu0 0.0
      %3121 = vmatpush.msra.mxu0 0.0
      %3122 = vmatpush.msra.mxu0 0.0
      %3123 = vmatpush.msra.mxu0 0.0
      %3124 = vmatpush.msra.mxu0 0.0
      %3125 = vmatpush.msra.mxu0 0.0
      %3126 = vmatpush.msra.mxu0 0.0
      %3127 = vmatpush.msra.mxu0 0.0
      %3128 = vmatpush.msra.mxu0 0.0
      %3129 = vmatpush.msra.mxu0 0.0
      %3130 = vmatpush.msra.mxu0 %v2741
      %3131 = vmatpush.msra.mxu0 %v2740
      %3132 = vmatmul.f32.gmra.mxu0 %v3114
      %v3133 = vpop.f32.mrf.mxu0
      %v3134 = vadd.f32 0.0, %v3133
      %3135 = vdwg.mxu0
      %v3136 = vadd.f32 %v3046, %v3134
      %3137 = vrot.lane.b32.xlu0 %v2853, 80
      %v3138 = vpop.permute.xlu0 %3137
      %3139 = vrot.lane.b32.xlu0 %v2853, 16
      %v3140 = vpop.permute.xlu0 %3139
      %v3141 = vsel %vm1363, %v3138, 0
      %v3143 = vsel %vm1363, %v3140, 0
      %3145 = vmatpush.xpose.msra.mxu0 0.0
      %3146 = vmatpush.xpose.msra.mxu0 0.0
      %3147 = vmatpush.xpose.msra.mxu0 0.0
      %3148 = vmatpush.xpose.msra.mxu0 0.0
      %3149 = vmatpush.xpose.msra.mxu0 0.0
      %3150 = vmatpush.xpose.msra.mxu0 0.0
      %3151 = vmatpush.xpose.msra.mxu0 0.0
      %3152 = vmatpush.xpose.msra.mxu0 0.0
      %3153 = vmatpush.xpose.msra.mxu0 0.0
      %3154 = vmatpush.xpose.msra.mxu0 0.0
      %3155 = vmatpush.xpose.msra.mxu0 0.0
      %3156 = vmatpush.xpose.msra.mxu0 0.0
      %3157 = vmatpush.xpose.msra.mxu0 0.0
      %3158 = vmatpush.xpose.msra.mxu0 0.0
      %3159 = vmatpush.xpose.msra.mxu0 0.0
      %3160 = vmatpush.xpose.msra.mxu0 %v3143
      %3161 = vmatmul.f32.gmra.mxu0 %v3141
      %v3162 = vpop.f32.mrf.mxu0
      %v3163 = vadd.f32 %v1044, %v3162
      %3164 = vdwg.mxu0
      %v3165 = vsel %vm1388, %v3163, -inf
      %3166 = vmax.xlane.f32.xlu0 %v3165
      %v3167 = vpop.xlane.xlu0 %3166
      %v3168 = vsub.f32 %v3163, %v3167
      %v3169 = vmul.f32 %v3168, 1.442695
      %v3170 = vpow.pop %v3169
      %v3171 = vsel %vm1388, %v3170, 0.0
      %3172 = vadd.xlane.f32.xlu0 %v3171
      %v3173 = vpop.xlane.xlu0 %3172
      %v3174 = vrcp.pop %v3173
      %v3175 = vmul.f32 %v3170, %v3174
      %3176 = vrot.lane.b32.xlu0 %v2873, 80
      %v3177 = vpop.permute.xlu0 %3176
      %v3180 = vsel %vm1388, %v3175, 0
      %3182 = vmatpush.msra.mxu0 0.0
      %3183 = vmatpush.msra.mxu0 0.0
      %3184 = vmatpush.msra.mxu0 0.0
      %3185 = vmatpush.msra.mxu0 0.0
      %3186 = vmatpush.msra.mxu0 0.0
      %3187 = vmatpush.msra.mxu0 0.0
      %3188 = vmatpush.msra.mxu0 0.0
      %3189 = vmatpush.msra.mxu0 0.0
      %3190 = vmatpush.msra.mxu0 0.0
      %3191 = vmatpush.msra.mxu0 0.0
      %3192 = vmatpush.msra.mxu0 0.0
      %3193 = vmatpush.msra.mxu0 0.0
      %3194 = vmatpush.msra.mxu0 0.0
      %3195 = vmatpush.msra.mxu0 0.0
      %3196 = vmatpush.msra.mxu0 0.0
      %3197 = vmatpush.msra.mxu0 %v3177
      %3198 = vmatmul.f32.gmra.mxu0 %v3180
      %v3199 = vpop.f32.mrf.mxu0
      %v3200 = vadd.f32 0.0, %v3199
      %3201 = vdwg.mxu0
      %v3203 = vsel %vm1363, %v3200, 0
      %3205 = vmatpush.msra.mxu0 0.0
      %3206 = vmatpush.msra.mxu0 0.0
      %3207 = vmatpush.msra.mxu0 0.0
      %3208 = vmatpush.msra.mxu0 0.0
      %3209 = vmatpush.msra.mxu0 0.0
      %3210 = vmatpush.msra.mxu0 0.0
      %3211 = vmatpush.msra.mxu0 0.0
      %3212 = vmatpush.msra.mxu0 0.0
      %3213 = vmatpush.msra.mxu0 0.0
      %3214 = vmatpush.msra.mxu0 0.0
      %3215 = vmatpush.msra.mxu0 0.0
      %3216 = vmatpush.msra.mxu0 0.0
      %3217 = vmatpush.msra.mxu0 0.0
      %3218 = vmatpush.msra.mxu0 0.0
      %3219 = vmatpush.msra.mxu0 %v2743
      %3220 = vmatpush.msra.mxu0 %v2742
      %3221 = vmatmul.f32.gmra.mxu0 %v3203
      %v3222 = vpop.f32.mrf.mxu0
      %v3223 = vadd.f32 0.0, %v3222
      %3224 = vdwg.mxu0
      %v3225 = vadd.f32 %v3136, %v3223
      %v3226 = vadd.f32 %v2716, %v3225
      %v3228 = vperm.slane %v2744, 0
      %v3230 = vadd.f32 %v3226, %v3228
      %v3231 = vsel %vm1274, %v3230, 0.0
      %3232 = vadd.xlane.f32.xlu0 %v3231
      %v3233 = vpop.xlane.xlu0 %3232
      %v3234 = vmul.f32 %v3233, %v1284
      %v3235 = vsub.f32 %v3230, %v3234
      %v3236 = vmul.f32 %v3235, %v3235
      %v3237 = vsel %vm1274, %v3236, 0.0
      %3238 = vadd.xlane.f32.xlu0 %v3237
      %v3239 = vpop.xlane.xlu0 %3238
      %v3240 = vmul.f32 %v3239, %v1284
      %v3241 = vadd.f32 %v3240, 1e-05
      %v3242 = vrsqrt.pop %v3241
      %v3243 = vmul.f32 %v3242, %v3241
      %v3244 = vmul.f32 %v3243, %v3242
      %v3245 = vmul.f32 0.5, %v3244
      %v3246 = vsub.f32 1.5, %v3245
      %v3247 = vmul.f32 %v3242, %v3246
      %vm3248 = vweird.f32 %v3241
      %vm3249 = vweird.f32 %v3242
      %vm3250 = vmor %vm3248, %vm3249
      %v3251 = vsel %vm3250, %v3242, %v3247
      %v3252 = vmul.f32 %v3235, %v3251
      %v3254 = vperm.slane %v2745, 0
      %v3256 = vmul.f32 %v3252, %v3254
      %v3258 = vperm.slane %v2746, 0
      %v3260 = vadd.f32 %v3256, %v3258
      %v3262 = vperm.slane %v2763, 0
      %v3263 = vperm.slane %v2763, 1
      %v3267 = vsel %vm1274, %v3260, 0
      %3269 = vmatpush.msra.mxu0 0.0
      %3270 = vmatpush.msra.mxu0 0.0
      %3271 = vmatpush.msra.mxu0 0.0
      %3272 = vmatpush.msra.mxu0 0.0
      %3273 = vmatpush.msra.mxu0 0.0
      %3274 = vmatpush.msra.mxu0 0.0
      %3275 = vmatpush.msra.mxu0 0.0
      %3276 = vmatpush.msra.mxu0 0.0
      %3277 = vmatpush.msra.mxu0 %v2761
      %3278 = vmatpush.msra.mxu0 %v2759
      %3279 = vmatpush.msra.mxu0 %v2757
      %3280 = vmatpush.msra.mxu0 %v2755
      %3281 = vmatpush.msra.mxu0 %v2753
      %3282 = vmatpush.msra.mxu0 %v2751
      %3283 = vmatpush.msra.mxu0 %v2749
      %3284 = vmatpush.msra.mxu0 %v2747
      %3285 = vmatmul.f32.gmra.mxu0 %v3267
      %v3286 = vpop.f32.mrf.mxu0
      %v3287 = vadd.f32 %v3262, %v3286
      %3288 = vdwg.mxu0
      %3289 = vmatpush.msra.mxu0 0.0
      %3290 = vmatpush.msra.mxu0 0.0
      %3291 = vmatpush.msra.mxu0 0.0
      %3292 = vmatpush.msra.mxu0 0.0
      %3293 = vmatpush.msra.mxu0 0.0
      %3294 = vmatpush.msra.mxu0 0.0
      %3295 = vmatpush.msra.mxu0 0.0
      %3296 = vmatpush.msra.mxu0 0.0
      %3297 = vmatpush.msra.mxu0 %v2762
      %3298 = vmatpush.msra.mxu0 %v2760
      %3299 = vmatpush.msra.mxu0 %v2758
      %3300 = vmatpush.msra.mxu0 %v2756
      %3301 = vmatpush.msra.mxu0 %v2754
      %3302 = vmatpush.msra.mxu0 %v2752
      %3303 = vmatpush.msra.mxu0 %v2750
      %3304 = vmatpush.msra.mxu0 %v2748
      %3305 = vmatmul.f32.gmra.mxu0 %v3267
      %v3306 = vpop.f32.mrf.mxu0
      %v3307 = vadd.f32 %v3263, %v3306
      %3308 = vdwg.mxu0
      %v3309 = vmul.f32 %v3287, 0.5
      %v3310 = vmul.f32 %v3307, 0.5
      %v3311 = vmul.f32 %v3287, 0.70710677
      %v3312 = vmul.f32 %v3307, 0.70710677
      %vm3313 = vcmp.ge.f32.partialorder %v3311, 0.0
      %vm3314 = vcmp.ge.f32.partialorder %v3312, 0.0
      %v3315 = vsel %vm3313, 1.0, -1.0
      %v3316 = vsel %vm3314, 1.0, -1.0
      %v3317 = vand.u32 2147483647, %v3311
      %v3318 = vand.u32 2147483647, %v3312
      %v3319 = vmul.f32 %v3317, 0.3275911
      %v3320 = vmul.f32 %v3318, 0.3275911
      %v3321 = vadd.f32 %v3319, 1.0
      %v3322 = vadd.f32 %v3320, 1.0
      %v3323 = vrcp.pop %v3321
      %v3324 = vmul.f32 %v3321, %v3323
      %v3325 = vsub.f32 1.0, %v3324
      %v3326 = vmul.f32 %v3323, %v3325
      %v3327 = vadd.f32 %v3323, %v3326
      %vm3328 = vweird.f32 %v3321
      %vm3329 = vweird.f32 %v3323
      %vm3330 = vmor %vm3328, %vm3329
      %v3331 = vsel %vm3330, %v3323, %v3327
      %v3332 = vand.u32 2147483647, %v3321
      %vm3333 = vcmp.eq.f32.partialorder %v3332, 8.507059e+37
      %v3334 = vand.u32 %v3321, 2147483648
      %v3335 = vor.u32 1.1754944e-38, %v3334
      %v3336 = vsel %vm3333, %v3335, %v3331
      %v3337 = vmul.f32 1.0, %v3336
      %v3338 = vrcp.pop %v3322
      %v3339 = vmul.f32 %v3322, %v3338
      %v3340 = vsub.f32 1.0, %v3339
      %v3341 = vmul.f32 %v3338, %v3340
      %v3342 = vadd.f32 %v3338, %v3341
      %vm3343 = vweird.f32 %v3322
      %vm3344 = vweird.f32 %v3338
      %vm3345 = vmor %vm3343, %vm3344
      %v3346 = vsel %vm3345, %v3338, %v3342
      %v3347 = vand.u32 2147483647, %v3322
      %vm3348 = vcmp.eq.f32.partialorder %v3347, 8.507059e+37
      %v3349 = vand.u32 %v3322, 2147483648
      %v3350 = vor.u32 1.1754944e-38, %v3349
      %v3351 = vsel %vm3348, %v3350, %v3346
      %v3352 = vmul.f32 1.0, %v3351
      %v3353 = vmul.f32 %v3337, 1.0614054
      %v3354 = vmul.f32 %v3352, 1.0614054
      %v3355 = vadd.f32 %v3353, -1.4531521
      %v3356 = vadd.f32 %v3354, -1.4531521
      %v3357 = vmul.f32 %v3355, %v3337
      %v3358 = vmul.f32 %v3356, %v3352
      %v3359 = vadd.f32 %v3357, 1.4214138
      %v3360 = vadd.f32 %v3358, 1.4214138
      %v3361 = vmul.f32 %v3359, %v3337
      %v3362 = vmul.f32 %v3360, %v3352
      %v3363 = vadd.f32 %v3361, -0.28449672
      %v3364 = vadd.f32 %v3362, -0.28449672
      %v3365 = vmul.f32 %v3363, %v3337
      %v3366 = vmul.f32 %v3364, %v3352
      %v3367 = vadd.f32 %v3365, 0.2548296
      %v3368 = vadd.f32 %v3366, 0.2548296
      %v3369 = vmul.f32 %v3367, %v3337
      %v3370 = vmul.f32 %v3368, %v3352
      %v3371 = vsub.f32 0.0, %v3317
      %v3372 = vsub.f32 0.0, %v3318
      %v3373 = vmul.f32 %v3371, %v3317
      %v3374 = vmul.f32 %v3372, %v3318
      %v3375 = vmul.f32 %v3373, 1.442695
      %v3376 = vpow.pop %v3375
      %v3377 = vmul.f32 %v3374, 1.442695
      %v3378 = vpow.pop %v3377
      %v3379 = vmul.f32 %v3369, %v3376
      %v3380 = vmul.f32 %v3370, %v3378
      %v3381 = vsub.f32 1.0, %v3379
      %v3382 = vsub.f32 1.0, %v3380
      %v3383 = vmul.f32 %v3315, %v3381
      %v3384 = vmul.f32 %v3316, %v3382
      %v3385 = vadd.f32 %v3383, 1.0
      %v3386 = vadd.f32 %v3384, 1.0
      %v3387 = vmul.f32 %v3309, %v3385
      %v3388 = vmul.f32 %v3310, %v3386
      %v3390 = vperm.slane %v2796, 0
      %3392 = vmatpush.msra.mxu0 %v2779
      %3393 = vmatpush.msra.mxu0 %v2778
      %3394 = vmatpush.msra.mxu0 %v2777
      %3395 = vmatpush.msra.mxu0 %v2776
      %3396 = vmatpush.msra.mxu0 %v2775
      %3397 = vmatpush.msra.mxu0 %v2774
      %3398 = vmatpush.msra.mxu0 %v2773
      %3399 = vmatpush.msra.mxu0 %v2772
      %3400 = vmatpush.msra.mxu0 %v2771
      %3401 = vmatpush.msra.mxu0 %v2770
      %3402 = vmatpush.msra.mxu0 %v2769
      %3403 = vmatpush.msra.mxu0 %v2768
      %3404 = vmatpush.msra.mxu0 %v2767
      %3405 = vmatpush.msra.mxu0 %v2766
      %3406 = vmatpush.msra.mxu0 %v2765
      %3407 = vmatpush.msra.mxu0 %v2764
      %3408 = vmatmul.f32.gmra.mxu0 %v3387
      %v3409 = vpop.f32.mrf.mxu0
      %v3410 = vadd.f32 %v3390, %v3409
      %3411 = vdwg.mxu0
      %3412 = vmatpush.msra.mxu0 %v2795
      %3413 = vmatpush.msra.mxu0 %v2794
      %3414 = vmatpush.msra.mxu0 %v2793
      %3415 = vmatpush.msra.mxu0 %v2792
      %3416 = vmatpush.msra.mxu0 %v2791
      %3417 = vmatpush.msra.mxu0 %v2790
      %3418 = vmatpush.msra.mxu0 %v2789
      %3419 = vmatpush.msra.mxu0 %v2788
      %3420 = vmatpush.msra.mxu0 %v2787
      %3421 = vmatpush.msra.mxu0 %v2786
      %3422 = vmatpush.msra.mxu0 %v2785
      %3423 = vmatpush.msra.mxu0 %v2784
      %3424 = vmatpush.msra.mxu0 %v2783
      %3425 = vmatpush.msra.mxu0 %v2782
      %3426 = vmatpush.msra.mxu0 %v2781
      %3427 = vmatpush.msra.mxu0 %v2780
      %3428 = vmatmul.f32.gmra.mxu0 %v3388
      %v3429 = vpop.f32.mrf.mxu0
      %v3430 = vadd.f32 %v3410, %v3429
      %3431 = vdwg.mxu0
      %v3432 = vadd.f32 %v3230, %v3430
      %s3433 = scalar_lea.vmem %s41, 1
      %v3434 = vld [vmem:[%s3433] sm:$0x1]
      %s3435 = scalar_lea.vmem %s43, 1
      %v3436 = vld [vmem:[%s3435] sm:$0x1]
      %s3437 = scalar_lea.vmem %s45, 128
      %v3438 = vld [vmem:[%s3437] sm:$0xff]
      %v3439 = vld [vmem:[%s3437 + $0x8] sm:$0xff]
      %v3440 = vld [vmem:[%s3437 + $0x10] sm:$0xff]
      %v3441 = vld [vmem:[%s3437 + $0x18] sm:$0xff]
      %v3442 = vld [vmem:[%s3437 + $0x20] sm:$0xff]
      %v3443 = vld [vmem:[%s3437 + $0x28] sm:$0xff]
      %v3444 = vld [vmem:[%s3437 + $0x30] sm:$0xff]
      %v3445 = vld [vmem:[%s3437 + $0x38] sm:$0xff]
      %v3446 = vld [vmem:[%s3437 + $0x40] sm:$0xff]
      %v3447 = vld [vmem:[%s3437 + $0x48] sm:$0xff]
      %v3448 = vld [vmem:[%s3437 + $0x50] sm:$0xff]
      %v3449 = vld [vmem:[%s3437 + $0x58] sm:$0xff]
      %v3450 = vld [vmem:[%s3437 + $0x60] sm:$0xff]
      %v3451 = vld [vmem:[%s3437 + $0x68] sm:$0xff]
      %v3452 = vld [vmem:[%s3437 + $0x70] sm:$0xff]
      %v3453 = vld [vmem:[%s3437 + $0x78] sm:$0xff]
      %s3454 = scalar_lea.vmem %s47, 2
      %v3455 = vld [vmem:[%s3454] sm:$0x3]
      %s3456 = scalar_lea.vmem %s49, 64
      %v3457 = vld [vmem:[%s3456] sm:$0xff]
      %v3458 = vld [vmem:[%s3456 + $0x8] sm:$0xff]
      %v3459 = vld [vmem:[%s3456 + $0x10] sm:$0xff]
      %v3460 = vld [vmem:[%s3456 + $0x18] sm:$0xff]
      %v3461 = vld [vmem:[%s3456 + $0x20] sm:$0xff]
      %v3462 = vld [vmem:[%s3456 + $0x28] sm:$0xff]
      %v3463 = vld [vmem:[%s3456 + $0x30] sm:$0xff]
      %v3464 = vld [vmem:[%s3456 + $0x38] sm:$0xff]
      %s3465 = scalar_lea.vmem %s51, 1
      %v3466 = vld [vmem:[%s3465] sm:$0x1]
      %s3467 = scalar_lea.vmem %s53, 1
      %v3468 = vld [vmem:[%s3467] sm:$0x1]
      %s3469 = scalar_lea.vmem %s55, 1
      %v3470 = vld [vmem:[%s3469] sm:$0x1]
      %s3471 = scalar_lea.vmem %s57, 128
      %v3472 = vld [vmem:[%s3471] sm:$0xff]
      %v3473 = vld [vmem:[%s3471 + $0x8] sm:$0xff]
      %v3474 = vld [vmem:[%s3471 + $0x10] sm:$0xff]
      %v3475 = vld [vmem:[%s3471 + $0x18] sm:$0xff]
      %v3476 = vld [vmem:[%s3471 + $0x20] sm:$0xff]
      %v3477 = vld [vmem:[%s3471 + $0x28] sm:$0xff]
      %v3478 = vld [vmem:[%s3471 + $0x30] sm:$0xff]
      %v3479 = vld [vmem:[%s3471 + $0x38] sm:$0xff]
      %v3480 = vld [vmem:[%s3471 + $0x40] sm:$0xff]
      %v3481 = vld [vmem:[%s3471 + $0x48] sm:$0xff]
      %v3482 = vld [vmem:[%s3471 + $0x50] sm:$0xff]
      %v3483 = vld [vmem:[%s3471 + $0x58] sm:$0xff]
      %v3484 = vld [vmem:[%s3471 + $0x60] sm:$0xff]
      %v3485 = vld [vmem:[%s3471 + $0x68] sm:$0xff]
      %v3486 = vld [vmem:[%s3471 + $0x70] sm:$0xff]
      %v3487 = vld [vmem:[%s3471 + $0x78] sm:$0xff]
      %s3488 = scalar_lea.vmem %s59, 2
      %v3489 = vld [vmem:[%s3488] sm:$0x3]
      %s3490 = scalar_lea.vmem %s61, 256
      %v3491 = vld [vmem:[%s3490] sm:$0xff]
      %v3492 = vld [vmem:[%s3490 + $0x8] sm:$0xff]
      %v3493 = vld [vmem:[%s3490 + $0x10] sm:$0xff]
      %v3494 = vld [vmem:[%s3490 + $0x18] sm:$0xff]
      %v3495 = vld [vmem:[%s3490 + $0x20] sm:$0xff]
      %v3496 = vld [vmem:[%s3490 + $0x28] sm:$0xff]
      %v3497 = vld [vmem:[%s3490 + $0x30] sm:$0xff]
      %v3498 = vld [vmem:[%s3490 + $0x38] sm:$0xff]
      %v3499 = vld [vmem:[%s3490 + $0x40] sm:$0xff]
      %v3500 = vld [vmem:[%s3490 + $0x48] sm:$0xff]
      %v3501 = vld [vmem:[%s3490 + $0x50] sm:$0xff]
      %v3502 = vld [vmem:[%s3490 + $0x58] sm:$0xff]
      %v3503 = vld [vmem:[%s3490 + $0x60] sm:$0xff]
      %v3504 = vld [vmem:[%s3490 + $0x68] sm:$0xff]
      %v3505 = vld [vmem:[%s3490 + $0x70] sm:$0xff]
      %v3506 = vld [vmem:[%s3490 + $0x78] sm:$0xff]
      %v3507 = vld [vmem:[%s3490 + $0x80] sm:$0xff]
      %v3508 = vld [vmem:[%s3490 + $0x88] sm:$0xff]
      %v3509 = vld [vmem:[%s3490 + $0x90] sm:$0xff]
      %v3510 = vld [vmem:[%s3490 + $0x98] sm:$0xff]
      %v3511 = vld [vmem:[%s3490 + $0xa0] sm:$0xff]
      %v3512 = vld [vmem:[%s3490 + $0xa8] sm:$0xff]
      %v3513 = vld [vmem:[%s3490 + $0xb0] sm:$0xff]
      %v3514 = vld [vmem:[%s3490 + $0xb8] sm:$0xff]
      %v3515 = vld [vmem:[%s3490 + $0xc0] sm:$0xff]
      %v3516 = vld [vmem:[%s3490 + $0xc8] sm:$0xff]
      %v3517 = vld [vmem:[%s3490 + $0xd0] sm:$0xff]
      %v3518 = vld [vmem:[%s3490 + $0xd8] sm:$0xff]
      %v3519 = vld [vmem:[%s3490 + $0xe0] sm:$0xff]
      %v3520 = vld [vmem:[%s3490 + $0xe8] sm:$0xff]
      %v3521 = vld [vmem:[%s3490 + $0xf0] sm:$0xff]
      %v3522 = vld [vmem:[%s3490 + $0xf8] sm:$0xff]
      %s3523 = scalar_lea.vmem %s63, 1
      %v3524 = vld [vmem:[%s3523] sm:$0x1]
      %v3525 = vsel %vm1274, %v3432, 0.0
      %3526 = vadd.xlane.f32.xlu0 %v3525
      %v3527 = vpop.xlane.xlu0 %3526
      %v3528 = vmul.f32 %v3527, %v1284
      %v3529 = vsub.f32 %v3432, %v3528
      %v3530 = vmul.f32 %v3529, %v3529
      %v3531 = vsel %vm1274, %v3530, 0.0
      %3532 = vadd.xlane.f32.xlu0 %v3531
      %v3533 = vpop.xlane.xlu0 %3532
      %v3534 = vmul.f32 %v3533, %v1284
      %v3535 = vadd.f32 %v3534, 1e-05
      %v3536 = vrsqrt.pop %v3535
      %v3537 = vmul.f32 %v3536, %v3535
      %v3538 = vmul.f32 %v3537, %v3536
      %v3539 = vmul.f32 0.5, %v3538
      %v3540 = vsub.f32 1.5, %v3539
      %v3541 = vmul.f32 %v3536, %v3540
      %vm3542 = vweird.f32 %v3535
      %vm3543 = vweird.f32 %v3536
      %vm3544 = vmor %vm3542, %vm3543
      %v3545 = vsel %vm3544, %v3536, %v3541
      %v3546 = vmul.f32 %v3529, %v3545
      %v3548 = vperm.slane %v3434, 0
      %v3550 = vmul.f32 %v3546, %v3548
      %v3552 = vperm.slane %v3436, 0
      %v3554 = vadd.f32 %v3550, %v3552
      %v3556 = vperm.slane %v3455, 0
      %v3557 = vperm.slane %v3455, 1
      %v3561 = vsel %vm1274, %v3554, 0
      %3563 = vmatpush.msra.mxu0 0.0
      %3564 = vmatpush.msra.mxu0 0.0
      %3565 = vmatpush.msra.mxu0 0.0
      %3566 = vmatpush.msra.mxu0 0.0
      %3567 = vmatpush.msra.mxu0 0.0
      %3568 = vmatpush.msra.mxu0 0.0
      %3569 = vmatpush.msra.mxu0 0.0
      %3570 = vmatpush.msra.mxu0 0.0
      %3571 = vmatpush.msra.mxu0 %v3452
      %3572 = vmatpush.msra.mxu0 %v3450
      %3573 = vmatpush.msra.mxu0 %v3448
      %3574 = vmatpush.msra.mxu0 %v3446
      %3575 = vmatpush.msra.mxu0 %v3444
      %3576 = vmatpush.msra.mxu0 %v3442
      %3577 = vmatpush.msra.mxu0 %v3440
      %3578 = vmatpush.msra.mxu0 %v3438
      %3579 = vmatmul.f32.gmra.mxu0 %v3561
      %v3580 = vpop.f32.mrf.mxu0
      %v3581 = vadd.f32 %v3556, %v3580
      %3582 = vdwg.mxu0
      %3583 = vmatpush.msra.mxu0 0.0
      %3584 = vmatpush.msra.mxu0 0.0
      %3585 = vmatpush.msra.mxu0 0.0
      %3586 = vmatpush.msra.mxu0 0.0
      %3587 = vmatpush.msra.mxu0 0.0
      %3588 = vmatpush.msra.mxu0 0.0
      %3589 = vmatpush.msra.mxu0 0.0
      %3590 = vmatpush.msra.mxu0 0.0
      %3591 = vmatpush.msra.mxu0 %v3453
      %3592 = vmatpush.msra.mxu0 %v3451
      %3593 = vmatpush.msra.mxu0 %v3449
      %3594 = vmatpush.msra.mxu0 %v3447
      %3595 = vmatpush.msra.mxu0 %v3445
      %3596 = vmatpush.msra.mxu0 %v3443
      %3597 = vmatpush.msra.mxu0 %v3441
      %3598 = vmatpush.msra.mxu0 %v3439
      %3599 = vmatmul.f32.gmra.mxu0 %v3561
      %v3600 = vpop.f32.mrf.mxu0
      %v3601 = vadd.f32 %v3557, %v3600
      %3602 = vdwg.mxu0
      %3604 = vrot.lane.b32.xlu0 %v3581, 64
      %v3605 = vpop.permute.xlu0 %3604
      %v3606 = vsel %vm1363, %v3581, 0
      %v3608 = vsel %vm1363, %v3605, 0
      %3610 = vmatpush.xpose.msra.mxu0 0.0
      %3611 = vmatpush.xpose.msra.mxu0 0.0
      %3612 = vmatpush.xpose.msra.mxu0 0.0
      %3613 = vmatpush.xpose.msra.mxu0 0.0
      %3614 = vmatpush.xpose.msra.mxu0 0.0
      %3615 = vmatpush.xpose.msra.mxu0 0.0
      %3616 = vmatpush.xpose.msra.mxu0 0.0
      %3617 = vmatpush.xpose.msra.mxu0 0.0
      %3618 = vmatpush.xpose.msra.mxu0 0.0
      %3619 = vmatpush.xpose.msra.mxu0 0.0
      %3620 = vmatpush.xpose.msra.mxu0 0.0
      %3621 = vmatpush.xpose.msra.mxu0 0.0
      %3622 = vmatpush.xpose.msra.mxu0 0.0
      %3623 = vmatpush.xpose.msra.mxu0 0.0
      %3624 = vmatpush.xpose.msra.mxu0 0.0
      %3625 = vmatpush.xpose.msra.mxu0 %v3608
      %3626 = vmatmul.f32.gmra.mxu0 %v3606
      %v3627 = vpop.f32.mrf.mxu0
      %v3628 = vadd.f32 %v1044, %v3627
      %3629 = vdwg.mxu0
      %v3630 = vsel %vm1388, %v3628, -inf
      %3631 = vmax.xlane.f32.xlu0 %v3630
      %v3632 = vpop.xlane.xlu0 %3631
      %v3633 = vsub.f32 %v3628, %v3632
      %v3634 = vmul.f32 %v3633, 1.442695
      %v3635 = vpow.pop %v3634
      %v3636 = vsel %vm1388, %v3635, 0.0
      %3637 = vadd.xlane.f32.xlu0 %v3636
      %v3638 = vpop.xlane.xlu0 %3637
      %v3639 = vrcp.pop %v3638
      %v3640 = vmul.f32 %v3635, %v3639
      %v3642 = vsel %vm1388, %v3640, 0
      %3644 = vmatpush.msra.mxu0 0.0
      %3645 = vmatpush.msra.mxu0 0.0
      %3646 = vmatpush.msra.mxu0 0.0
      %3647 = vmatpush.msra.mxu0 0.0
      %3648 = vmatpush.msra.mxu0 0.0
      %3649 = vmatpush.msra.mxu0 0.0
      %3650 = vmatpush.msra.mxu0 0.0
      %3651 = vmatpush.msra.mxu0 0.0
      %3652 = vmatpush.msra.mxu0 0.0
      %3653 = vmatpush.msra.mxu0 0.0
      %3654 = vmatpush.msra.mxu0 0.0
      %3655 = vmatpush.msra.mxu0 0.0
      %3656 = vmatpush.msra.mxu0 0.0
      %3657 = vmatpush.msra.mxu0 0.0
      %3658 = vmatpush.msra.mxu0 0.0
      %3659 = vmatpush.msra.mxu0 %v3601
      %3660 = vmatmul.f32.gmra.mxu0 %v3642
      %v3661 = vpop.f32.mrf.mxu0
      %v3662 = vadd.f32 0.0, %v3661
      %3663 = vdwg.mxu0
      %3664 = vrot.lane.b32.xlu0 %v3581, 112
      %v3665 = vpop.permute.xlu0 %3664
      %3666 = vrot.lane.b32.xlu0 %v3581, 48
      %v3667 = vpop.permute.xlu0 %3666
      %v3668 = vsel %vm1363, %v3665, 0
      %v3670 = vsel %vm1363, %v3667, 0
      %3672 = vmatpush.xpose.msra.mxu0 0.0
      %3673 = vmatpush.xpose.msra.mxu0 0.0
      %3674 = vmatpush.xpose.msra.mxu0 0.0
      %3675 = vmatpush.xpose.msra.mxu0 0.0
      %3676 = vmatpush.xpose.msra.mxu0 0.0
      %3677 = vmatpush.xpose.msra.mxu0 0.0
      %3678 = vmatpush.xpose.msra.mxu0 0.0
      %3679 = vmatpush.xpose.msra.mxu0 0.0
      %3680 = vmatpush.xpose.msra.mxu0 0.0
      %3681 = vmatpush.xpose.msra.mxu0 0.0
      %3682 = vmatpush.xpose.msra.mxu0 0.0
      %3683 = vmatpush.xpose.msra.mxu0 0.0
      %3684 = vmatpush.xpose.msra.mxu0 0.0
      %3685 = vmatpush.xpose.msra.mxu0 0.0
      %3686 = vmatpush.xpose.msra.mxu0 0.0
      %3687 = vmatpush.xpose.msra.mxu0 %v3670
      %3688 = vmatmul.f32.gmra.mxu0 %v3668
      %v3689 = vpop.f32.mrf.mxu0
      %v3690 = vadd.f32 %v1044, %v3689
      %3691 = vdwg.mxu0
      %v3692 = vsel %vm1388, %v3690, -inf
      %3693 = vmax.xlane.f32.xlu0 %v3692
      %v3694 = vpop.xlane.xlu0 %3693
      %v3695 = vsub.f32 %v3690, %v3694
      %v3696 = vmul.f32 %v3695, 1.442695
      %v3697 = vpow.pop %v3696
      %v3698 = vsel %vm1388, %v3697, 0.0
      %3699 = vadd.xlane.f32.xlu0 %v3698
      %v3700 = vpop.xlane.xlu0 %3699
      %v3701 = vrcp.pop %v3700
      %v3702 = vmul.f32 %v3697, %v3701
      %3704 = vrot.lane.b32.xlu0 %v3601, 112
      %v3705 = vpop.permute.xlu0 %3704
      %v3708 = vsel %vm1388, %v3702, 0
      %3710 = vmatpush.msra.mxu0 0.0
      %3711 = vmatpush.msra.mxu0 0.0
      %3712 = vmatpush.msra.mxu0 0.0
      %3713 = vmatpush.msra.mxu0 0.0
      %3714 = vmatpush.msra.mxu0 0.0
      %3715 = vmatpush.msra.mxu0 0.0
      %3716 = vmatpush.msra.mxu0 0.0
      %3717 = vmatpush.msra.mxu0 0.0
      %3718 = vmatpush.msra.mxu0 0.0
      %3719 = vmatpush.msra.mxu0 0.0
      %3720 = vmatpush.msra.mxu0 0.0
      %3721 = vmatpush.msra.mxu0 0.0
      %3722 = vmatpush.msra.mxu0 0.0
      %3723 = vmatpush.msra.mxu0 0.0
      %3724 = vmatpush.msra.mxu0 0.0
      %3725 = vmatpush.msra.mxu0 %v3705
      %3726 = vmatmul.f32.gmra.mxu0 %v3708
      %v3727 = vpop.f32.mrf.mxu0
      %v3728 = vadd.f32 0.0, %v3727
      %3729 = vdwg.mxu0
      %v3731 = vsel %vm1363, %v3728, 0
      %3733 = vmatpush.msra.mxu0 0.0
      %3734 = vmatpush.msra.mxu0 0.0
      %3735 = vmatpush.msra.mxu0 0.0
      %3736 = vmatpush.msra.mxu0 0.0
      %3737 = vmatpush.msra.mxu0 0.0
      %3738 = vmatpush.msra.mxu0 0.0
      %3739 = vmatpush.msra.mxu0 0.0
      %3740 = vmatpush.msra.mxu0 0.0
      %3741 = vmatpush.msra.mxu0 0.0
      %3742 = vmatpush.msra.mxu0 0.0
      %3743 = vmatpush.msra.mxu0 0.0
      %3744 = vmatpush.msra.mxu0 0.0
      %3745 = vmatpush.msra.mxu0 0.0
      %3746 = vmatpush.msra.mxu0 0.0
      %3747 = vmatpush.msra.mxu0 %v3460
      %3748 = vmatpush.msra.mxu0 %v3459
      %3749 = vmatmul.f32.gmra.mxu0 %v3731
      %v3750 = vpop.f32.mrf.mxu0
      %v3751 = vadd.f32 0.0, %v3750
      %3752 = vdwg.mxu0
      %v3754 = vsel %vm1363, %v3662, 0
      %3756 = vmatpush.msra.mxu0 0.0
      %3757 = vmatpush.msra.mxu0 0.0
      %3758 = vmatpush.msra.mxu0 0.0
      %3759 = vmatpush.msra.mxu0 0.0
      %3760 = vmatpush.msra.mxu0 0.0
      %3761 = vmatpush.msra.mxu0 0.0
      %3762 = vmatpush.msra.mxu0 0.0
      %3763 = vmatpush.msra.mxu0 0.0
      %3764 = vmatpush.msra.mxu0 0.0
      %3765 = vmatpush.msra.mxu0 0.0
      %3766 = vmatpush.msra.mxu0 0.0
      %3767 = vmatpush.msra.mxu0 0.0
      %3768 = vmatpush.msra.mxu0 0.0
      %3769 = vmatpush.msra.mxu0 0.0
      %3770 = vmatpush.msra.mxu0 %v3458
      %3771 = vmatpush.msra.mxu0 %v3457
      %3772 = vmatmul.f32.gmra.mxu0 %v3754
      %v3773 = vpop.f32.mrf.mxu0
      %v3774 = vadd.f32 %v3751, %v3773
      %3775 = vdwg.mxu0
      %3776 = vrot.lane.b32.xlu0 %v3581, 96
      %v3777 = vpop.permute.xlu0 %3776
      %3778 = vrot.lane.b32.xlu0 %v3581, 32
      %v3779 = vpop.permute.xlu0 %3778
      %v3780 = vsel %vm1363, %v3777, 0
      %v3782 = vsel %vm1363, %v3779, 0
      %3784 = vmatpush.xpose.msra.mxu0 0.0
      %3785 = vmatpush.xpose.msra.mxu0 0.0
      %3786 = vmatpush.xpose.msra.mxu0 0.0
      %3787 = vmatpush.xpose.msra.mxu0 0.0
      %3788 = vmatpush.xpose.msra.mxu0 0.0
      %3789 = vmatpush.xpose.msra.mxu0 0.0
      %3790 = vmatpush.xpose.msra.mxu0 0.0
      %3791 = vmatpush.xpose.msra.mxu0 0.0
      %3792 = vmatpush.xpose.msra.mxu0 0.0
      %3793 = vmatpush.xpose.msra.mxu0 0.0
      %3794 = vmatpush.xpose.msra.mxu0 0.0
      %3795 = vmatpush.xpose.msra.mxu0 0.0
      %3796 = vmatpush.xpose.msra.mxu0 0.0
      %3797 = vmatpush.xpose.msra.mxu0 0.0
      %3798 = vmatpush.xpose.msra.mxu0 0.0
      %3799 = vmatpush.xpose.msra.mxu0 %v3782
      %3800 = vmatmul.f32.gmra.mxu0 %v3780
      %v3801 = vpop.f32.mrf.mxu0
      %v3802 = vadd.f32 %v1044, %v3801
      %3803 = vdwg.mxu0
      %v3804 = vsel %vm1388, %v3802, -inf
      %3805 = vmax.xlane.f32.xlu0 %v3804
      %v3806 = vpop.xlane.xlu0 %3805
      %v3807 = vsub.f32 %v3802, %v3806
      %v3808 = vmul.f32 %v3807, 1.442695
      %v3809 = vpow.pop %v3808
      %v3810 = vsel %vm1388, %v3809, 0.0
      %3811 = vadd.xlane.f32.xlu0 %v3810
      %v3812 = vpop.xlane.xlu0 %3811
      %v3813 = vrcp.pop %v3812
      %v3814 = vmul.f32 %v3809, %v3813
      %3815 = vrot.lane.b32.xlu0 %v3601, 96
      %v3816 = vpop.permute.xlu0 %3815
      %v3819 = vsel %vm1388, %v3814, 0
      %3821 = vmatpush.msra.mxu0 0.0
      %3822 = vmatpush.msra.mxu0 0.0
      %3823 = vmatpush.msra.mxu0 0.0
      %3824 = vmatpush.msra.mxu0 0.0
      %3825 = vmatpush.msra.mxu0 0.0
      %3826 = vmatpush.msra.mxu0 0.0
      %3827 = vmatpush.msra.mxu0 0.0
      %3828 = vmatpush.msra.mxu0 0.0
      %3829 = vmatpush.msra.mxu0 0.0
      %3830 = vmatpush.msra.mxu0 0.0
      %3831 = vmatpush.msra.mxu0 0.0
      %3832 = vmatpush.msra.mxu0 0.0
      %3833 = vmatpush.msra.mxu0 0.0
      %3834 = vmatpush.msra.mxu0 0.0
      %3835 = vmatpush.msra.mxu0 0.0
      %3836 = vmatpush.msra.mxu0 %v3816
      %3837 = vmatmul.f32.gmra.mxu0 %v3819
      %v3838 = vpop.f32.mrf.mxu0
      %v3839 = vadd.f32 0.0, %v3838
      %3840 = vdwg.mxu0
      %v3842 = vsel %vm1363, %v3839, 0
      %3844 = vmatpush.msra.mxu0 0.0
      %3845 = vmatpush.msra.mxu0 0.0
      %3846 = vmatpush.msra.mxu0 0.0
      %3847 = vmatpush.msra.mxu0 0.0
      %3848 = vmatpush.msra.mxu0 0.0
      %3849 = vmatpush.msra.mxu0 0.0
      %3850 = vmatpush.msra.mxu0 0.0
      %3851 = vmatpush.msra.mxu0 0.0
      %3852 = vmatpush.msra.mxu0 0.0
      %3853 = vmatpush.msra.mxu0 0.0
      %3854 = vmatpush.msra.mxu0 0.0
      %3855 = vmatpush.msra.mxu0 0.0
      %3856 = vmatpush.msra.mxu0 0.0
      %3857 = vmatpush.msra.mxu0 0.0
      %3858 = vmatpush.msra.mxu0 %v3462
      %3859 = vmatpush.msra.mxu0 %v3461
      %3860 = vmatmul.f32.gmra.mxu0 %v3842
      %v3861 = vpop.f32.mrf.mxu0
      %v3862 = vadd.f32 0.0, %v3861
      %3863 = vdwg.mxu0
      %v3864 = vadd.f32 %v3774, %v3862
      %3865 = vrot.lane.b32.xlu0 %v3581, 80
      %v3866 = vpop.permute.xlu0 %3865
      %3867 = vrot.lane.b32.xlu0 %v3581, 16
      %v3868 = vpop.permute.xlu0 %3867
      %v3869 = vsel %vm1363, %v3866, 0
      %v3871 = vsel %vm1363, %v3868, 0
      %3873 = vmatpush.xpose.msra.mxu0 0.0
      %3874 = vmatpush.xpose.msra.mxu0 0.0
      %3875 = vmatpush.xpose.msra.mxu0 0.0
      %3876 = vmatpush.xpose.msra.mxu0 0.0
      %3877 = vmatpush.xpose.msra.mxu0 0.0
      %3878 = vmatpush.xpose.msra.mxu0 0.0
      %3879 = vmatpush.xpose.msra.mxu0 0.0
      %3880 = vmatpush.xpose.msra.mxu0 0.0
      %3881 = vmatpush.xpose.msra.mxu0 0.0
      %3882 = vmatpush.xpose.msra.mxu0 0.0
      %3883 = vmatpush.xpose.msra.mxu0 0.0
      %3884 = vmatpush.xpose.msra.mxu0 0.0
      %3885 = vmatpush.xpose.msra.mxu0 0.0
      %3886 = vmatpush.xpose.msra.mxu0 0.0
      %3887 = vmatpush.xpose.msra.mxu0 0.0
      %3888 = vmatpush.xpose.msra.mxu0 %v3871
      %3889 = vmatmul.f32.gmra.mxu0 %v3869
      %v3890 = vpop.f32.mrf.mxu0
      %v3891 = vadd.f32 %v1044, %v3890
      %3892 = vdwg.mxu0
      %v3893 = vsel %vm1388, %v3891, -inf
      %3894 = vmax.xlane.f32.xlu0 %v3893
      %v3895 = vpop.xlane.xlu0 %3894
      %v3896 = vsub.f32 %v3891, %v3895
      %v3897 = vmul.f32 %v3896, 1.442695
      %v3898 = vpow.pop %v3897
      %v3899 = vsel %vm1388, %v3898, 0.0
      %3900 = vadd.xlane.f32.xlu0 %v3899
      %v3901 = vpop.xlane.xlu0 %3900
      %v3902 = vrcp.pop %v3901
      %v3903 = vmul.f32 %v3898, %v3902
      %3904 = vrot.lane.b32.xlu0 %v3601, 80
      %v3905 = vpop.permute.xlu0 %3904
      %v3908 = vsel %vm1388, %v3903, 0
      %3910 = vmatpush.msra.mxu0 0.0
      %3911 = vmatpush.msra.mxu0 0.0
      %3912 = vmatpush.msra.mxu0 0.0
      %3913 = vmatpush.msra.mxu0 0.0
      %3914 = vmatpush.msra.mxu0 0.0
      %3915 = vmatpush.msra.mxu0 0.0
      %3916 = vmatpush.msra.mxu0 0.0
      %3917 = vmatpush.msra.mxu0 0.0
      %3918 = vmatpush.msra.mxu0 0.0
      %3919 = vmatpush.msra.mxu0 0.0
      %3920 = vmatpush.msra.mxu0 0.0
      %3921 = vmatpush.msra.mxu0 0.0
      %3922 = vmatpush.msra.mxu0 0.0
      %3923 = vmatpush.msra.mxu0 0.0
      %3924 = vmatpush.msra.mxu0 0.0
      %3925 = vmatpush.msra.mxu0 %v3905
      %3926 = vmatmul.f32.gmra.mxu0 %v3908
      %v3927 = vpop.f32.mrf.mxu0
      %v3928 = vadd.f32 0.0, %v3927
      %3929 = vdwg.mxu0
      %v3931 = vsel %vm1363, %v3928, 0
      %3933 = vmatpush.msra.mxu0 0.0
      %3934 = vmatpush.msra.mxu0 0.0
      %3935 = vmatpush.msra.mxu0 0.0
      %3936 = vmatpush.msra.mxu0 0.0
      %3937 = vmatpush.msra.mxu0 0.0
      %3938 = vmatpush.msra.mxu0 0.0
      %3939 = vmatpush.msra.mxu0 0.0
      %3940 = vmatpush.msra.mxu0 0.0
      %3941 = vmatpush.msra.mxu0 0.0
      %3942 = vmatpush.msra.mxu0 0.0
      %3943 = vmatpush.msra.mxu0 0.0
      %3944 = vmatpush.msra.mxu0 0.0
      %3945 = vmatpush.msra.mxu0 0.0
      %3946 = vmatpush.msra.mxu0 0.0
      %3947 = vmatpush.msra.mxu0 %v3464
      %3948 = vmatpush.msra.mxu0 %v3463
      %3949 = vmatmul.f32.gmra.mxu0 %v3931
      %v3950 = vpop.f32.mrf.mxu0
      %v3951 = vadd.f32 0.0, %v3950
      %3952 = vdwg.mxu0
      %v3953 = vadd.f32 %v3864, %v3951
      %v3954 = vadd.f32 %v3432, %v3953
      %v3956 = vperm.slane %v3466, 0
      %v3958 = vadd.f32 %v3954, %v3956
      %v3959 = vsel %vm1274, %v3958, 0.0
      %3960 = vadd.xlane.f32.xlu0 %v3959
      %v3961 = vpop.xlane.xlu0 %3960
      %v3962 = vmul.f32 %v3961, %v1284
      %v3963 = vsub.f32 %v3958, %v3962
      %v3964 = vmul.f32 %v3963, %v3963
      %v3965 = vsel %vm1274, %v3964, 0.0
      %3966 = vadd.xlane.f32.xlu0 %v3965
      %v3967 = vpop.xlane.xlu0 %3966
      %v3968 = vmul.f32 %v3967, %v1284
      %v3969 = vadd.f32 %v3968, 1e-05
      %v3970 = vrsqrt.pop %v3969
      %v3971 = vmul.f32 %v3970, %v3969
      %v3972 = vmul.f32 %v3971, %v3970
      %v3973 = vmul.f32 0.5, %v3972
      %v3974 = vsub.f32 1.5, %v3973
      %v3975 = vmul.f32 %v3970, %v3974
      %vm3976 = vweird.f32 %v3969
      %vm3977 = vweird.f32 %v3970
      %vm3978 = vmor %vm3976, %vm3977
      %v3979 = vsel %vm3978, %v3970, %v3975
      %v3980 = vmul.f32 %v3963, %v3979
      %v3982 = vperm.slane %v3468, 0
      %v3984 = vmul.f32 %v3980, %v3982
      %v3986 = vperm.slane %v3470, 0
      %v3988 = vadd.f32 %v3984, %v3986
      %v3990 = vperm.slane %v3489, 0
      %v3991 = vperm.slane %v3489, 1
      %v3995 = vsel %vm1274, %v3988, 0
      %3997 = vmatpush.msra.mxu0 0.0
      %3998 = vmatpush.msra.mxu0 0.0
      %3999 = vmatpush.msra.mxu0 0.0
      %4000 = vmatpush.msra.mxu0 0.0
      %4001 = vmatpush.msra.mxu0 0.0
      %4002 = vmatpush.msra.mxu0 0.0
      %4003 = vmatpush.msra.mxu0 0.0
      %4004 = vmatpush.msra.mxu0 0.0
      %4005 = vmatpush.msra.mxu0 %v3486
      %4006 = vmatpush.msra.mxu0 %v3484
      %4007 = vmatpush.msra.mxu0 %v3482
      %4008 = vmatpush.msra.mxu0 %v3480
      %4009 = vmatpush.msra.mxu0 %v3478
      %4010 = vmatpush.msra.mxu0 %v3476
      %4011 = vmatpush.msra.mxu0 %v3474
      %4012 = vmatpush.msra.mxu0 %v3472
      %4013 = vmatmul.f32.gmra.mxu0 %v3995
      %v4014 = vpop.f32.mrf.mxu0
      %v4015 = vadd.f32 %v3990, %v4014
      %4016 = vdwg.mxu0
      %4017 = vmatpush.msra.mxu0 0.0
      %4018 = vmatpush.msra.mxu0 0.0
      %4019 = vmatpush.msra.mxu0 0.0
      %4020 = vmatpush.msra.mxu0 0.0
      %4021 = vmatpush.msra.mxu0 0.0
      %4022 = vmatpush.msra.mxu0 0.0
      %4023 = vmatpush.msra.mxu0 0.0
      %4024 = vmatpush.msra.mxu0 0.0
      %4025 = vmatpush.msra.mxu0 %v3487
      %4026 = vmatpush.msra.mxu0 %v3485
      %4027 = vmatpush.msra.mxu0 %v3483
      %4028 = vmatpush.msra.mxu0 %v3481
      %4029 = vmatpush.msra.mxu0 %v3479
      %4030 = vmatpush.msra.mxu0 %v3477
      %4031 = vmatpush.msra.mxu0 %v3475
      %4032 = vmatpush.msra.mxu0 %v3473
      %4033 = vmatmul.f32.gmra.mxu0 %v3995
      %v4034 = vpop.f32.mrf.mxu0
      %v4035 = vadd.f32 %v3991, %v4034
      %4036 = vdwg.mxu0
      %v4037 = vmul.f32 %v4015, 0.5
      %v4038 = vmul.f32 %v4035, 0.5
      %v4039 = vmul.f32 %v4015, 0.70710677
      %v4040 = vmul.f32 %v4035, 0.70710677
      %vm4041 = vcmp.ge.f32.partialorder %v4039, 0.0
      %vm4042 = vcmp.ge.f32.partialorder %v4040, 0.0
      %v4043 = vsel %vm4041, 1.0, -1.0
      %v4044 = vsel %vm4042, 1.0, -1.0
      %v4045 = vand.u32 2147483647, %v4039
      %v4046 = vand.u32 2147483647, %v4040
      %v4047 = vmul.f32 %v4045, 0.3275911
      %v4048 = vmul.f32 %v4046, 0.3275911
      %v4049 = vadd.f32 %v4047, 1.0
      %v4050 = vadd.f32 %v4048, 1.0
      %v4051 = vrcp.pop %v4049
      %v4052 = vmul.f32 %v4049, %v4051
      %v4053 = vsub.f32 1.0, %v4052
      %v4054 = vmul.f32 %v4051, %v4053
      %v4055 = vadd.f32 %v4051, %v4054
      %vm4056 = vweird.f32 %v4049
      %vm4057 = vweird.f32 %v4051
      %vm4058 = vmor %vm4056, %vm4057
      %v4059 = vsel %vm4058, %v4051, %v4055
      %v4060 = vand.u32 2147483647, %v4049
      %vm4061 = vcmp.eq.f32.partialorder %v4060, 8.507059e+37
      %v4062 = vand.u32 %v4049, 2147483648
      %v4063 = vor.u32 1.1754944e-38, %v4062
      %v4064 = vsel %vm4061, %v4063, %v4059
      %v4065 = vmul.f32 1.0, %v4064
      %v4066 = vrcp.pop %v4050
      %v4067 = vmul.f32 %v4050, %v4066
      %v4068 = vsub.f32 1.0, %v4067
      %v4069 = vmul.f32 %v4066, %v4068
      %v4070 = vadd.f32 %v4066, %v4069
      %vm4071 = vweird.f32 %v4050
      %vm4072 = vweird.f32 %v4066
      %vm4073 = vmor %vm4071, %vm4072
      %v4074 = vsel %vm4073, %v4066, %v4070
      %v4075 = vand.u32 2147483647, %v4050
      %vm4076 = vcmp.eq.f32.partialorder %v4075, 8.507059e+37
      %v4077 = vand.u32 %v4050, 2147483648
      %v4078 = vor.u32 1.1754944e-38, %v4077
      %v4079 = vsel %vm4076, %v4078, %v4074
      %v4080 = vmul.f32 1.0, %v4079
      %v4081 = vmul.f32 %v4065, 1.0614054
      %v4082 = vmul.f32 %v4080, 1.0614054
      %v4083 = vadd.f32 %v4081, -1.4531521
      %v4084 = vadd.f32 %v4082, -1.4531521
      %v4085 = vmul.f32 %v4083, %v4065
      %v4086 = vmul.f32 %v4084, %v4080
      %v4087 = vadd.f32 %v4085, 1.4214138
      %v4088 = vadd.f32 %v4086, 1.4214138
      %v4089 = vmul.f32 %v4087, %v4065
      %v4090 = vmul.f32 %v4088, %v4080
      %v4091 = vadd.f32 %v4089, -0.28449672
      %v4092 = vadd.f32 %v4090, -0.28449672
      %v4093 = vmul.f32 %v4091, %v4065
      %v4094 = vmul.f32 %v4092, %v4080
      %v4095 = vadd.f32 %v4093, 0.2548296
      %v4096 = vadd.f32 %v4094, 0.2548296
      %v4097 = vmul.f32 %v4095, %v4065
      %v4098 = vmul.f32 %v4096, %v4080
      %v4099 = vsub.f32 0.0, %v4045
      %v4100 = vsub.f32 0.0, %v4046
      %v4101 = vmul.f32 %v4099, %v4045
      %v4102 = vmul.f32 %v4100, %v4046
      %v4103 = vmul.f32 %v4101, 1.442695
      %v4104 = vpow.pop %v4103
      %v4105 = vmul.f32 %v4102, 1.442695
      %v4106 = vpow.pop %v4105
      %v4107 = vmul.f32 %v4097, %v4104
      %v4108 = vmul.f32 %v4098, %v4106
      %v4109 = vsub.f32 1.0, %v4107
      %v4110 = vsub.f32 1.0, %v4108
      %v4111 = vmul.f32 %v4043, %v4109
      %v4112 = vmul.f32 %v4044, %v4110
      %v4113 = vadd.f32 %v4111, 1.0
      %v4114 = vadd.f32 %v4112, 1.0
      %v4115 = vmul.f32 %v4037, %v4113
      %v4116 = vmul.f32 %v4038, %v4114
      %v4118 = vperm.slane %v3524, 0
      %4120 = vmatpush.msra.mxu0 %v3506
      %4121 = vmatpush.msra.mxu0 %v3505
      %4122 = vmatpush.msra.mxu0 %v3504
      %4123 = vmatpush.msra.mxu0 %v3503
      %4124 = vmatpush.msra.mxu0 %v3502
      %4125 = vmatpush.msra.mxu0 %v3501
      %4126 = vmatpush.msra.mxu0 %v3500
      %4127 = vmatpush.msra.mxu0 %v3499
      %4128 = vmatpush.msra.mxu0 %v3498
      %4129 = vmatpush.msra.mxu0 %v3497
      %4130 = vmatpush.msra.mxu0 %v3496
      %4131 = vmatpush.msra.mxu0 %v3495
      %4132 = vmatpush.msra.mxu0 %v3494
      %4133 = vmatpush.msra.mxu0 %v3493
      %4134 = vmatpush.msra.mxu0 %v3492
      %4135 = vmatpush.msra.mxu0 %v3491
      %4136 = vmatmul.f32.gmra.mxu0 %v4115
      %v4137 = vpop.f32.mrf.mxu0
      %v4138 = vadd.f32 %v4118, %v4137
      %4139 = vdwg.mxu0
      %4140 = vmatpush.msra.mxu0 %v3522
      %4141 = vmatpush.msra.mxu0 %v3521
      %4142 = vmatpush.msra.mxu0 %v3520
      %4143 = vmatpush.msra.mxu0 %v3519
      %4144 = vmatpush.msra.mxu0 %v3518
      %4145 = vmatpush.msra.mxu0 %v3517
      %4146 = vmatpush.msra.mxu0 %v3516
      %4147 = vmatpush.msra.mxu0 %v3515
      %4148 = vmatpush.msra.mxu0 %v3514
      %4149 = vmatpush.msra.mxu0 %v3513
      %4150 = vmatpush.msra.mxu0 %v3512
      %4151 = vmatpush.msra.mxu0 %v3511
      %4152 = vmatpush.msra.mxu0 %v3510
      %4153 = vmatpush.msra.mxu0 %v3509
      %4154 = vmatpush.msra.mxu0 %v3508
      %4155 = vmatpush.msra.mxu0 %v3507
      %4156 = vmatmul.f32.gmra.mxu0 %v4116
      %v4157 = vpop.f32.mrf.mxu0
      %v4158 = vadd.f32 %v4138, %v4157
      %4159 = vdwg.mxu0
      %v4160 = vadd.f32 %v3958, %v4158
      %v4161 = vld [vmem:[%s65] sm:$0x1]
      %v4162 = vld [vmem:[%s67] sm:$0x1]
      %v4163 = vsel %vm1274, %v4160, 0.0
      %4164 = vadd.xlane.f32.xlu0 %v4163
      %v4165 = vpop.xlane.xlu0 %4164
      %v4166 = vmul.f32 %v4165, %v1284
      %v4167 = vsub.f32 %v4160, %v4166
      %v4168 = vmul.f32 %v4167, %v4167
      %v4169 = vsel %vm1274, %v4168, 0.0
      %4170 = vadd.xlane.f32.xlu0 %v4169
      %v4171 = vpop.xlane.xlu0 %4170
      %v4172 = vmul.f32 %v4171, %v1284
      %v4173 = vadd.f32 %v4172, 1e-05
      %v4174 = vrsqrt.pop %v4173
      %v4175 = vmul.f32 %v4174, %v4173
      %v4176 = vmul.f32 %v4175, %v4174
      %v4177 = vmul.f32 0.5, %v4176
      %v4178 = vsub.f32 1.5, %v4177
      %v4179 = vmul.f32 %v4174, %v4178
      %vm4180 = vweird.f32 %v4173
      %vm4181 = vweird.f32 %v4174
      %vm4182 = vmor %vm4180, %vm4181
      %v4183 = vsel %vm4182, %v4174, %v4179
      %v4184 = vmul.f32 %v4167, %v4183
      %v4186 = vperm.slane %v4161, 0
      %v4188 = vmul.f32 %v4184, %v4186
      %v4190 = vperm.slane %v4162, 0
      %v4192 = vadd.f32 %v4188, %v4190
      %4193 = vst.msk [vmem:[%s1040] sm:$0xff] %vm1274, %v4192
      %p4194 = scmp.lt.s32.totalorder %s80, 1
      %s4195 = scalar_select %p4194, %s80, 1
      %s4196 = smul.addr %s4195, 8
      %s4197 = scalar_lea.vmem %s69, %s4196
      // Predicated region
      $region157: #{_lambda_.1} parent=155 // pred_check
        %p4198 = pneg %p817
      $region158: #{_lambda_.1} parent=155 // pred_check_branch
        %4200 = sbr.rel (%p4198) target = $region160
      $region159: #{_lambda_.1} parent=155 // pred_region
        _
      $region160: #{_lambda_.1} parent=155 // pred_fallthru
        _
    $region156: #{_lambda_.1} parent=5 // pred_fallthru
      _
    %p4201 = scmp.le.s32.totalorder 2, %s75
    // Predicated region
    $region161: #{_lambda_.1} parent=5 // pred_check
      %p4202 = pneg %p4201
    $region162: #{_lambda_.1} parent=5 // pred_check_branch
      %4204 = sbr.rel (%p4202) target = $region164
    $region163: #{_lambda_.1} parent=5 // pred_region
      %s4205 = ssub.s32 %s75, 2
      // Predicated region
      $region165: #{_lambda_.1} parent=163 // pred_check
        %p4206 = pneg %p823
      $region166: #{_lambda_.1} parent=163 // pred_check_branch
        %4208 = sbr.rel (%p4206) target = $region168
      $region167: #{_lambda_.1} parent=163 // pred_region
        %p4209 = scmp.lt.s32.totalorder %s81, 1
        %s4210 = scalar_select %p4209, %s81, 1
        %s4211 = smul.addr %s4210, 8
        %s4212 = scalar_lea.vmem %s69, %s4211
      $region168: #{_lambda_.1} parent=163 // pred_fallthru
        _
    $region164: #{_lambda_.1} parent=5 // pred_fallthru
      _
  $region6: #{_lambda_.1} parent=0 // loop_footer
    %s79 = sadd.s32 1, %s75
  $region7: #{_lambda_.1} parent=0 // loop_footer_branch
    %74 = sbr.rel target = $region3
  $region8: #{_lambda_.1} parent=0 // loop_exit
    _

</llo_original>
